<compile_context>
chip_gen: v5e
topology: v5e:2x2
jax: 0.10.0
libtpu: 0.0.40
codegen_flags: <defaults>
</compile_context>

<pallas_src>
import functools
import math

import jax
import jax.numpy as jnp
from jax.experimental import pallas as pl
from jax.experimental.pallas import tpu as pltpu

# ---- model constants (from the PyTorch module) --------------------------------
NUM_DECODER_OUTPUT = 88
NUM_DECODER_RBM_HIDDEN = 36
NUM_HIDDEN_DECODER = 100
NUM_OUTPUT = 12
INPUT_SIZE = NUM_OUTPUT + NUM_DECODER_OUTPUT  # 100

# ---- padded (lane-aligned) sizes ----------------------------------------------
HP = 128            # padded hidden size (100 -> 128)
IP = 128            # padded input size  (100 -> 128)
NG = 4 * HP         # [i | f | g | o] gate columns per LSTM (512)
OUTW = 3 * HP       # velocity(88->128) | v_bias(88->128) | h_bias(36->128)

MAX_CHUNK_ROWS = 1024   # rows (= timesteps*batch) per grid chunk; bounds VMEM


def _sig(x):
    # sigmoid via a single EUP tanh push (avoids exp + divide on the serial path)
    return 0.5 * jnp.tanh(0.5 * x) + 0.5


# ---- fused decoder kernel (one grid step == one chunk of `tc` timesteps) ------
def _decoder_kernel(tc, B, unroll,
                    inp_ref, wih_ref, whh_ref, bg_ref, wvel_ref, wbias_ref,
                    bout_ref, out_ref,
                    gxl_scr, gxv_scr, hl_hist, hv_hist,
                    hl_st, cl_st, hv_st, cv_st):
    # zero the persistent recurrent state at the first chunk
    @pl.when(pl.program_id(0) == 0)
    def _():
        hl_st[...] = jnp.zeros_like(hl_st)
        cl_st[...] = jnp.zeros_like(cl_st)
        hv_st[...] = jnp.zeros_like(hv_st)
        cv_st[...] = jnp.zeros_like(cv_st)

    # 1) chunk-wide input projections for BOTH LSTMs (two big MXU matmuls)
    x = inp_ref[...]                                            # (tc*B, IP)
    gxl_scr[...] = jnp.dot(x, wih_ref[0],
                           preferred_element_type=jnp.float32) + bg_ref[0]
    gxv_scr[...] = jnp.dot(x, wih_ref[1],
                           preferred_element_type=jnp.float32) + bg_ref[1]

    whh_l = whh_ref[0]                                          # (HP, NG)
    whh_v = whh_ref[1]

    def lstm_cell(gates, c_prev):
        i = _sig(gates[:, 0:HP])
        f = _sig(gates[:, HP:2 * HP])
        g = jnp.tanh(gates[:, 2 * HP:3 * HP])
        o = _sig(gates[:, 3 * HP:4 * HP])
        c = f * c_prev + i * g
        h = o * jnp.tanh(c)
        return h, c

    # 2) serial recurrence; h/c stay in vregs (fori_loop carry), only the
    #    gx read and the h-history store touch VMEM per step.
    def step(t, carry):
        h_l, c_l, h_v, c_v = carry
        r = pl.ds(t * B, B)
        g_l = gxl_scr[r, :] + jnp.dot(h_l, whh_l,
                                      preferred_element_type=jnp.float32)
        g_v = gxv_scr[r, :] + jnp.dot(h_v, whh_v,
                                      preferred_element_type=jnp.float32)
        h_l, c_l = lstm_cell(g_l, c_l)
        h_v, c_v = lstm_cell(g_v, c_v)
        hl_hist[r, :] = h_l
        hv_hist[r, :] = h_v
        return h_l, c_l, h_v, c_v

    carry0 = (hl_st[...], cl_st[...], hv_st[...], cv_st[...])
    h_l, c_l, h_v, c_v = jax.lax.fori_loop(0, tc, step, carry0, unroll=unroll)
    hl_st[...] = h_l
    cl_st[...] = c_l
    hv_st[...] = h_v
    cv_st[...] = c_v

    # 3) fused, lane-dense output heads for the whole chunk
    y_vel = jnp.dot(hv_hist[...], wvel_ref[...],
                    preferred_element_type=jnp.float32) + bout_ref[:, 0:HP]
    y_b = jnp.dot(hl_hist[...], wbias_ref[...],
                  preferred_element_type=jnp.float32) + bout_ref[:, HP:3 * HP]
    out_ref[:, 0:HP] = _sig(y_vel)            # velocity block
    out_ref[:, HP:3 * HP] = y_b               # v_bias | h_bias blocks


# ---- weight packing (PyTorch layout -> padded kernel layout), done ONCE -------
def _pack_gate_weight(w, in_dim, pad_in):
    """w: PyTorch (4H, in_dim), gate order i,f,g,o -> (pad_in, NG), zero-padded."""
    H = NUM_HIDDEN_DECODER
    w4 = jnp.transpose(w.reshape(4, H, in_dim), (2, 0, 1))       # (in_dim, 4, H)
    w4 = jnp.pad(w4, ((0, pad_in - in_dim), (0, 0), (0, HP - H)))
    return w4.reshape(pad_in, NG)


def pack_params(p):
    H = NUM_HIDDEN_DECODER
    wih = jnp.stack([_pack_gate_weight(p["lstm_w_ih"], INPUT_SIZE, IP),
                     _pack_gate_weight(p["vlstm_w_ih"], INPUT_SIZE, IP)], axis=0)
    whh = jnp.stack([_pack_gate_weight(p["lstm_w_hh"], H, HP),
                     _pack_gate_weight(p["vlstm_w_hh"], H, HP)], axis=0)

    def bias4(b_ih, b_hh):
        return jnp.pad((b_ih + b_hh).reshape(4, H),
                       ((0, 0), (0, HP - H))).reshape(1, NG)

    bg = jnp.stack([bias4(p["lstm_b_ih"], p["lstm_b_hh"]),
                    bias4(p["vlstm_b_ih"], p["vlstm_b_hh"])], axis=0)  # (2,1,NG)

    wvel = jnp.zeros((HP, HP), jnp.float32)
    wvel = wvel.at[0:H, 0:NUM_DECODER_OUTPUT].set(p["vel_w"].T)

    wbias = jnp.zeros((HP, 2 * HP), jnp.float32)
    wbias = wbias.at[0:H, 0:NUM_DECODER_OUTPUT].set(p["vbias_w"].T)
    wbias = wbias.at[0:H, HP:HP + NUM_DECODER_RBM_HIDDEN].set(p["hbias_w"].T)

    bout = jnp.zeros((1, OUTW), jnp.float32)
    bout = bout.at[0, 0:NUM_DECODER_OUTPUT].set(p["vel_b"])
    bout = bout.at[0, HP:HP + NUM_DECODER_OUTPUT].set(p["vbias_b"])
    bout = bout.at[0, 2 * HP:2 * HP + NUM_DECODER_RBM_HIDDEN].set(p["hbias_b"])

    return {"wih": wih, "whh": whh, "bg": bg,
            "wvel": wvel, "wbias": wbias, "bout": bout}


def _chunking(T, B, max_rows):
    """Pick timesteps-per-chunk so chunk rows (tc*B) are sublane aligned."""
    if T * B <= max_rows:
        return T, 1                      # single chunk: block rows == full dim
    step = 8 // math.gcd(B, 8)           # smallest tc with (tc*B) % 8 == 0
    tc = max(1, max_rows // B)
    tc = (tc // step) * step
    if tc <= 0:
        return T, 1
    return tc, -(-T // tc)


# ---- Decoder.forward -----------------------------------------------------------
@functools.partial(jax.jit, static_argnames=("max_chunk_rows",))
def decoder_forward(packed, x, prev_x_decoded, max_chunk_rows=MAX_CHUNK_ROWS):
    T, B, _ = x.shape
    tc, n_chunks = _chunking(T, B, max_chunk_rows)
    Tp = tc * n_chunks
    rows = tc * B
    unroll = max(1, min(tc, 8))

    # torch.cat([x, prev_x_decoded], dim=2), flattened time-major + padding
    inp = jnp.concatenate([x, prev_x_decoded], axis=2).astype(jnp.float32)
    inp = inp.reshape(T * B, INPUT_SIZE)
    inp = jnp.pad(inp, ((0, (Tp - T) * B), (0, IP - INPUT_SIZE)))

    kernel = functools.partial(_decoder_kernel, tc, B, unroll)

    y = pl.pallas_call(
        kernel,
        out_shape=jax.ShapeDtypeStruct((Tp * B, OUTW), jnp.float32),
        grid_spec=pltpu.PrefetchScalarGridSpec(
            num_scalar_prefetch=0,
            grid=(n_chunks,),
            in_specs=[
                pl.BlockSpec((rows, IP), lambda i: (i, 0)),          # inp chunk
                pl.BlockSpec((2, IP, NG), lambda i: (0, 0, 0)),      # wih (both)
                pl.BlockSpec((2, HP, NG), lambda i: (0, 0, 0)),      # whh (both)
                pl.BlockSpec((2, 1, NG), lambda i: (0, 0, 0)),       # gate biases
                pl.BlockSpec((HP, HP), lambda i: (0, 0)),            # velocity head
                pl.BlockSpec((HP, 2 * HP), lambda i: (0, 0)),        # vbias|hbias head
                pl.BlockSpec((1, OUTW), lambda i: (0, 0)),           # head biases
            ],
            out_specs=pl.BlockSpec((rows, OUTW), lambda i: (i, 0)),
            scratch_shapes=[
                pltpu.VMEM((rows, NG), jnp.float32),   # gx decoder LSTM (chunk)
                pltpu.VMEM((rows, NG), jnp.float32),   # gx velocity LSTM (chunk)
                pltpu.VMEM((rows, HP), jnp.float32),   # h history decoder (chunk)
                pltpu.VMEM((rows, HP), jnp.float32),   # h history velocity (chunk)
                pltpu.VMEM((B, HP), jnp.float32),      # persistent h (decoder)
                pltpu.VMEM((B, HP), jnp.float32),      # persistent c (decoder)
                pltpu.VMEM((B, HP), jnp.float32),      # persistent h (velocity)
                pltpu.VMEM((B, HP), jnp.float32),      # persistent c (velocity)
            ],
        ),
        compiler_params=pltpu.CompilerParams(
            dimension_semantics=("arbitrary",),        # state carried across chunks
            vmem_limit_bytes=32 * 1024 * 1024,
        ),
    )(inp, packed["wih"], packed["whh"], packed["bg"],
      packed["wvel"], packed["wbias"], packed["bout"])

    y = y[:T * B]
    velocity = y[:, 0:NUM_DECODER_OUTPUT].reshape(T, B, NUM_DECODER_OUTPUT)
    v_bias = y[:, HP:HP + NUM_DECODER_OUTPUT].reshape(T, B, NUM_DECODER_OUTPUT)
    h_bias = y[:, 2 * HP:2 * HP + NUM_DECODER_RBM_HIDDEN].reshape(
        T, B, NUM_DECODER_RBM_HIDDEN)
    return velocity, v_bias, h_bias


# ---- parameters (PyTorch nn.LSTM / nn.Linear layout) ---------------------------
def init_params(key):
    H = NUM_HIDDEN_DECODER
    k = 1.0 / jnp.sqrt(jnp.float32(H))
    ks = jax.random.split(key, 14)

    def u(kk, shape):
        return jax.random.uniform(kk, shape, jnp.float32, -k, k)

    return {
        "lstm_w_ih": u(ks[0], (4 * H, INPUT_SIZE)),
        "lstm_w_hh": u(ks[1], (4 * H, H)),
        "lstm_b_ih": u(ks[2], (4 * H,)),
        "lstm_b_hh": u(ks[3], (4 * H,)),
        "vlstm_w_ih": u(ks[4], (4 * H, INPUT_SIZE)),
        "vlstm_w_hh": u(ks[5], (4 * H, H)),
        "vlstm_b_ih": u(ks[6], (4 * H,)),
        "vlstm_b_hh": u(ks[7], (4 * H,)),
        "vel_w": u(ks[8], (NUM_DECODER_OUTPUT, H)),
        "vel_b": u(ks[9], (NUM_DECODER_OUTPUT,)),
        "vbias_w": u(ks[10], (NUM_DECODER_OUTPUT, H)),
        "vbias_b": u(ks[11], (NUM_DECODER_OUTPUT,)),
        "hbias_w": u(ks[12], (NUM_DECODER_RBM_HIDDEN, H)),
        "hbias_b": u(ks[13], (NUM_DECODER_RBM_HIDDEN,)),
    }


# ---- pure-JAX reference (PyTorch semantics) for numerical validation ----------
def reference_forward(p, x, prev):
    H = NUM_HIDDEN_DECODER
    inp = jnp.concatenate([x, prev], axis=2)
    B = x.shape[1]

    def run(w_ih, w_hh, b_ih, b_hh):
        def step(carry, x_t):
            h, c = carry
            gates = x_t @ w_ih.T + h @ w_hh.T + b_ih + b_hh
            i = jax.nn.sigmoid(gates[:, 0:H])
            f = jax.nn.sigmoid(gates[:, H:2 * H])
            g = jnp.tanh(gates[:, 2 * H:3 * H])
            o = jax.nn.sigmoid(gates[:, 3 * H:4 * H])
            c = f * c + i * g
            h = o * jnp.tanh(c)
            return (h, c), h

        init = (jnp.zeros((B, H), jnp.float32), jnp.zeros((B, H), jnp.float32))
        _, hs = jax.lax.scan(step, init, inp)
        return hs

    out = run(p["lstm_w_ih"], p["lstm_w_hh"], p["lstm_b_ih"], p["lstm_b_hh"])
    vel = run(p["vlstm_w_ih"], p["vlstm_w_hh"], p["vlstm_b_ih"], p["vlstm_b_hh"])
    velocity = jax.nn.sigmoid(vel @ p["vel_w"].T + p["vel_b"])
    v_bias = out @ p["vbias_w"].T + p["vbias_b"]
    h_bias = out @ p["hbias_w"].T + p["hbias_b"]
    return velocity, v_bias, h_bias


if __name__ == "__main__":
    key = jax.random.PRNGKey(0)
    kp, kx, kpx = jax.random.split(key, 3)

    params = init_params(kp)
    packed = pack_params(params)   # weight packing hoisted out of the call path

    # case 1: init_hidden(1) => batch = 1; short sequence (single chunk)
    T, B = 8, 1
    x = jax.random.normal(kx, (T, B, NUM_OUTPUT), jnp.float32)
    prev_x_decoded = jax.random.normal(kpx, (T, B, NUM_DECODER_OUTPUT), jnp.float32)

    velocity, v_bias, h_bias = decoder_forward(packed, x, prev_x_decoded)
    jax.block_until_ready((velocity, v_bias, h_bias))

    assert velocity.shape == (T, B, NUM_DECODER_OUTPUT)
    assert v_bias.shape == (T, B, NUM_DECODER_OUTPUT)
    assert h_bias.shape == (T, B, NUM_DECODER_RBM_HIDDEN)
    assert bool(jnp.all(jnp.isfinite(velocity)))
    assert bool(jnp.all((velocity >= 0.0) & (velocity <= 1.0)))

    ref_vel, ref_vb, ref_hb = reference_forward(params, x, prev_x_decoded)
    assert float(jnp.max(jnp.abs(velocity - ref_vel))) < 1e-4
    assert float(jnp.max(jnp.abs(v_bias - ref_vb))) < 1e-4
    assert float(jnp.max(jnp.abs(h_bias - ref_hb))) < 1e-4

    # case 2: exercise the multi-chunk grid path (state carried across chunks,
    # trailing time padding sliced off) with a tiny chunk size.
    T2 = 40
    x2 = jax.random.normal(jax.random.fold_in(key, 1), (T2, B, NUM_OUTPUT),
                           jnp.float32)
    prev2 = jax.random.normal(jax.random.fold_in(key, 2),
                              (T2, B, NUM_DECODER_OUTPUT), jnp.float32)
    vel2, vb2, hb2 = decoder_forward(packed, x2, prev2, max_chunk_rows=16)
    jax.block_until_ready((vel2, vb2, hb2))
    rv2, rvb2, rhb2 = reference_forward(params, x2, prev2)
    assert float(jnp.max(jnp.abs(vel2 - rv2))) < 1e-4
    assert float(jnp.max(jnp.abs(vb2 - rvb2))) < 1e-4
    assert float(jnp.max(jnp.abs(hb2 - rhb2))) < 1e-4

    print("KERNEL_OK")
</pallas_src>

<mosaic_0001>
module attributes {stable_mosaic.version = 11 : i64} {
  func.func @_decoder_kernel(%arg0: i32, %arg1: memref<8x128xf32, #tpu.memory_space<vmem>>, %arg2: memref<2x128x512xf32, #tpu.memory_space<vmem>>, %arg3: memref<2x128x512xf32, #tpu.memory_space<vmem>>, %arg4: memref<2x1x512xf32, #tpu.memory_space<vmem>>, %arg5: memref<128x128xf32, #tpu.memory_space<vmem>>, %arg6: memref<128x256xf32, #tpu.memory_space<vmem>>, %arg7: memref<1x384xf32, #tpu.memory_space<vmem>>, %arg8: memref<8x384xf32, #tpu.memory_space<vmem>>, %arg9: memref<8x512xf32, #tpu.memory_space<vmem>>, %arg10: memref<8x512xf32, #tpu.memory_space<vmem>>, %arg11: memref<8x128xf32, #tpu.memory_space<vmem>>, %arg12: memref<8x128xf32, #tpu.memory_space<vmem>>, %arg13: memref<1x128xf32, #tpu.memory_space<vmem>>, %arg14: memref<1x128xf32, #tpu.memory_space<vmem>>, %arg15: memref<1x128xf32, #tpu.memory_space<vmem>>, %arg16: memref<1x128xf32, #tpu.memory_space<vmem>>) attributes {dimension_semantics = [#tpu.dimension_semantics<arbitrary>], iteration_bounds = array<i64: 1>, scalar_prefetch = 0 : i64, scratch_operands = 8 : i64, tpu.core_type = #tpu.core_type<tc>, window_params = [{transform_indices = @transform_0, window_bounds = array<i64: 8, 128>}, {pipeline_mode = #tpu.pipeline_mode<synchronous>, transform_indices = @transform_1, window_bounds = array<i64: 2, 128, 512>}, {pipeline_mode = #tpu.pipeline_mode<synchronous>, transform_indices = @transform_2, window_bounds = array<i64: 2, 128, 512>}, {pipeline_mode = #tpu.pipeline_mode<synchronous>, transform_indices = @transform_3, window_bounds = array<i64: 2, 1, 512>}, {pipeline_mode = #tpu.pipeline_mode<synchronous>, transform_indices = @transform_4, window_bounds = array<i64: 128, 128>}, {pipeline_mode = #tpu.pipeline_mode<synchronous>, transform_indices = @transform_5, window_bounds = array<i64: 128, 256>}, {pipeline_mode = #tpu.pipeline_mode<synchronous>, transform_indices = @transform_6, window_bounds = array<i64: 1, 384>}, {transform_indices = @transform_7, window_bounds = array<i64: 8, 384>}]} {
    %c0_i32 = arith.constant 0 : i32
    %0 = arith.cmpi eq, %arg0, %c0_i32 : i32
    %1 = arith.extui %0 : i1 to i32
    %c0_i32_0 = arith.constant 0 : i32
    %2 = arith.cmpi ne, %1, %c0_i32_0 : i32
    scf.if %2 {
      %cst_261 = arith.constant 0.000000e+00 : f32
      %653 = vector.broadcast %cst_261 : f32 to vector<1x128xf32>
      %c0_262 = arith.constant 0 : index
      %c0_263 = arith.constant 0 : index
      %654 = vector.load %arg13[%c0_262, %c0_263] : memref<1x128xf32, #tpu.memory_space<vmem>>, vector<1x128xf32>
      tpu.vector_store %arg13[%c0_262, %c0_263], %653 {strides = array<i32>} : memref<1x128xf32, #tpu.memory_space<vmem>>, vector<1x128xf32>,
      %cst_264 = arith.constant 0.000000e+00 : f32
      %655 = vector.broadcast %cst_264 : f32 to vector<1x128xf32>
      %c0_265 = arith.constant 0 : index
      %c0_266 = arith.constant 0 : index
      %656 = vector.load %arg14[%c0_265, %c0_266] : memref<1x128xf32, #tpu.memory_space<vmem>>, vector<1x128xf32>
      tpu.vector_store %arg14[%c0_265, %c0_266], %655 {strides = array<i32>} : memref<1x128xf32, #tpu.memory_space<vmem>>, vector<1x128xf32>,
      %cst_267 = arith.constant 0.000000e+00 : f32
      %657 = vector.broadcast %cst_267 : f32 to vector<1x128xf32>
      %c0_268 = arith.constant 0 : index
      %c0_269 = arith.constant 0 : index
      %658 = vector.load %arg15[%c0_268, %c0_269] : memref<1x128xf32, #tpu.memory_space<vmem>>, vector<1x128xf32>
      tpu.vector_store %arg15[%c0_268, %c0_269], %657 {strides = array<i32>} : memref<1x128xf32, #tpu.memory_space<vmem>>, vector<1x128xf32>,
      %cst_270 = arith.constant 0.000000e+00 : f32
      %659 = vector.broadcast %cst_270 : f32 to vector<1x128xf32>
      %c0_271 = arith.constant 0 : index
      %c0_272 = arith.constant 0 : index
      %660 = vector.load %arg16[%c0_271, %c0_272] : memref<1x128xf32, #tpu.memory_space<vmem>>, vector<1x128xf32>
      tpu.vector_store %arg16[%c0_271, %c0_272], %659 {strides = array<i32>} : memref<1x128xf32, #tpu.memory_space<vmem>>, vector<1x128xf32>,
    } else {
    }
    %c0 = arith.constant 0 : index
    %c0_1 = arith.constant 0 : index
    %3 = vector.load %arg1[%c0, %c0_1] : memref<8x128xf32, #tpu.memory_space<vmem>>, vector<8x128xf32>
    %c0_2 = arith.constant 0 : index
    %c0_3 = arith.constant 0 : index
    %c0_4 = arith.constant 0 : index
    %4 = vector.load %arg2[%c0_2, %c0_3, %c0_4] : memref<2x128x512xf32, #tpu.memory_space<vmem>>, vector<1x128x512xf32>
    %5 = vector.shape_cast %4 : vector<1x128x512xf32> to vector<128x512xf32>
    %cst = arith.constant dense<0.000000e+00> : vector<8x512xf32>
    %6 = tpu.matmul %3, %5, %cst {dimension_numbers = #tpu.dot_dimension_numbers<[1], [0], [0], [1], [0, 0, 1, 1], [], []>} : vector<8x128xf32>, vector<128x512xf32>, vector<8x512xf32> -> vector<8x512xf32>
    %c0_5 = arith.constant 0 : index
    %c0_6 = arith.constant 0 : index
    %c0_7 = arith.constant 0 : index
    %7 = vector.load %arg4[%c0_5, %c0_6, %c0_7] : memref<2x1x512xf32, #tpu.memory_space<vmem>>, vector<1x1x512xf32>
    %8 = vector.shape_cast %7 : vector<1x1x512xf32> to vector<1x512xf32>
    %9 = vector.broadcast %8 : vector<1x512xf32> to vector<8x512xf32>
    %10 = arith.addf %6, %9 : vector<8x512xf32>
    %c0_8 = arith.constant 0 : index
    %c0_9 = arith.constant 0 : index
    %11 = vector.load %arg9[%c0_8, %c0_9] : memref<8x512xf32, #tpu.memory_space<vmem>>, vector<8x512xf32>
    tpu.vector_store %arg9[%c0_8, %c0_9], %10 {strides = array<i32>} : memref<8x512xf32, #tpu.memory_space<vmem>>, vector<8x512xf32>,
    %c1 = arith.constant 1 : index
    %c0_10 = arith.constant 0 : index
    %c0_11 = arith.constant 0 : index
    %12 = vector.load %arg2[%c1, %c0_10, %c0_11] : memref<2x128x512xf32, #tpu.memory_space<vmem>>, vector<1x128x512xf32>
    %13 = vector.shape_cast %12 : vector<1x128x512xf32> to vector<128x512xf32>
    %cst_12 = arith.constant dense<0.000000e+00> : vector<8x512xf32>
    %14 = tpu.matmul %3, %13, %cst_12 {dimension_numbers = #tpu.dot_dimension_numbers<[1], [0], [0], [1], [0, 0, 1, 1], [], []>} : vector<8x128xf32>, vector<128x512xf32>, vector<8x512xf32> -> vector<8x512xf32>
    %c1_13 = arith.constant 1 : index
    %c0_14 = arith.constant 0 : index
    %c0_15 = arith.constant 0 : index
    %15 = vector.load %arg4[%c1_13, %c0_14, %c0_15] : memref<2x1x512xf32, #tpu.memory_space<vmem>>, vector<1x1x512xf32>
    %16 = vector.shape_cast %15 : vector<1x1x512xf32> to vector<1x512xf32>
    %17 = vector.broadcast %16 : vector<1x512xf32> to vector<8x512xf32>
    %18 = arith.addf %14, %17 : vector<8x512xf32>
    %c0_16 = arith.constant 0 : index
    %c0_17 = arith.constant 0 : index
    %19 = vector.load %arg10[%c0_16, %c0_17] : memref<8x512xf32, #tpu.memory_space<vmem>>, vector<8x512xf32>
    tpu.vector_store %arg10[%c0_16, %c0_17], %18 {strides = array<i32>} : memref<8x512xf32, #tpu.memory_space<vmem>>, vector<8x512xf32>,
    %c0_18 = arith.constant 0 : index
    %c0_19 = arith.constant 0 : index
    %c0_20 = arith.constant 0 : index
    %20 = vector.load %arg3[%c0_18, %c0_19, %c0_20] : memref<2x128x512xf32, #tpu.memory_space<vmem>>, vector<1x128x512xf32>
    %21 = vector.shape_cast %20 : vector<1x128x512xf32> to vector<128x512xf32>
    %c1_21 = arith.constant 1 : index
    %c0_22 = arith.constant 0 : index
    %c0_23 = arith.constant 0 : index
    %22 = vector.load %arg3[%c1_21, %c0_22, %c0_23] : memref<2x128x512xf32, #tpu.memory_space<vmem>>, vector<1x128x512xf32>
    %23 = vector.shape_cast %22 : vector<1x128x512xf32> to vector<128x512xf32>
    %c0_24 = arith.constant 0 : index
    %c0_25 = arith.constant 0 : index
    %24 = vector.load %arg13[%c0_24, %c0_25] : memref<1x128xf32, #tpu.memory_space<vmem>>, vector<1x128xf32>
    %c0_26 = arith.constant 0 : index
    %c0_27 = arith.constant 0 : index
    %25 = vector.load %arg14[%c0_26, %c0_27] : memref<1x128xf32, #tpu.memory_space<vmem>>, vector<1x128xf32>
    %c0_28 = arith.constant 0 : index
    %c0_29 = arith.constant 0 : index
    %26 = vector.load %arg15[%c0_28, %c0_29] : memref<1x128xf32, #tpu.memory_space<vmem>>, vector<1x128xf32>
    %c0_30 = arith.constant 0 : index
    %c0_31 = arith.constant 0 : index
    %27 = vector.load %arg16[%c0_30, %c0_31] : memref<1x128xf32, #tpu.memory_space<vmem>>, vector<1x128xf32>
    %c0_i32_32 = arith.constant 0 : i32
    %c1_i32 = arith.constant 1 : i32
    %28 = arith.muli %c0_i32_32, %c1_i32 : i32
    %29 = arith.index_cast %28 : i32 to index
    %c0_33 = arith.constant 0 : index
    %30 = vector.load %arg9[%29, %c0_33] : memref<8x512xf32, #tpu.memory_space<vmem>>, vector<1x512xf32>
    %cst_34 = arith.constant dense<0.000000e+00> : vector<1x512xf32>
    %31 = tpu.matmul %24, %21, %cst_34 {dimension_numbers = #tpu.dot_dimension_numbers<[1], [0], [0], [1], [0, 0, 1, 1], [], []>} : vector<1x128xf32>, vector<128x512xf32>, vector<1x512xf32> -> vector<1x512xf32>
    %32 = arith.addf %30, %31 : vector<1x512xf32>
    %33 = arith.index_cast %28 : i32 to index
    %c0_35 = arith.constant 0 : index
    %34 = vector.load %arg10[%33, %c0_35] : memref<8x512xf32, #tpu.memory_space<vmem>>, vector<1x512xf32>
    %cst_36 = arith.constant dense<0.000000e+00> : vector<1x512xf32>
    %35 = tpu.matmul %26, %23, %cst_36 {dimension_numbers = #tpu.dot_dimension_numbers<[1], [0], [0], [1], [0, 0, 1, 1], [], []>} : vector<1x128xf32>, vector<128x512xf32>, vector<1x512xf32> -> vector<1x512xf32>
    %36 = arith.addf %34, %35 : vector<1x512xf32>
    %37 = vector.extract_strided_slice %32 {offsets = [0, 0], sizes = [1, 128], strides = [1, 1]} : vector<1x512xf32> to vector<1x128xf32>
    %cst_37 = arith.constant 5.000000e-01 : f32
    %38 = vector.broadcast %cst_37 : f32 to vector<1x128xf32>
    %39 = arith.mulf %38, %37 : vector<1x128xf32>
    %40 = math.tanh %39 : vector<1x128xf32>
    %cst_38 = arith.constant 5.000000e-01 : f32
    %41 = vector.broadcast %cst_38 : f32 to vector<1x128xf32>
    %42 = arith.mulf %41, %40 : vector<1x128xf32>
    %cst_39 = arith.constant 5.000000e-01 : f32
    %43 = vector.broadcast %cst_39 : f32 to vector<1x128xf32>
    %44 = arith.addf %42, %43 : vector<1x128xf32>
    %45 = vector.extract_strided_slice %32 {offsets = [0, 128], sizes = [1, 128], strides = [1, 1]} : vector<1x512xf32> to vector<1x128xf32>
    %cst_40 = arith.constant 5.000000e-01 : f32
    %46 = vector.broadcast %cst_40 : f32 to vector<1x128xf32>
    %47 = arith.mulf %46, %45 : vector<1x128xf32>
    %48 = math.tanh %47 : vector<1x128xf32>
    %cst_41 = arith.constant 5.000000e-01 : f32
    %49 = vector.broadcast %cst_41 : f32 to vector<1x128xf32>
    %50 = arith.mulf %49, %48 : vector<1x128xf32>
    %cst_42 = arith.constant 5.000000e-01 : f32
    %51 = vector.broadcast %cst_42 : f32 to vector<1x128xf32>
    %52 = arith.addf %50, %51 : vector<1x128xf32>
    %53 = vector.extract_strided_slice %32 {offsets = [0, 256], sizes = [1, 128], strides = [1, 1]} : vector<1x512xf32> to vector<1x128xf32>
    %54 = math.tanh %53 : vector<1x128xf32>
    %55 = vector.extract_strided_slice %32 {offsets = [0, 384], sizes = [1, 128], strides = [1, 1]} : vector<1x512xf32> to vector<1x128xf32>
    %cst_43 = arith.constant 5.000000e-01 : f32
    %56 = vector.broadcast %cst_43 : f32 to vector<1x128xf32>
    %57 = arith.mulf %56, %55 : vector<1x128xf32>
    %58 = math.tanh %57 : vector<1x128xf32>
    %cst_44 = arith.constant 5.000000e-01 : f32
    %59 = vector.broadcast %cst_44 : f32 to vector<1x128xf32>
    %60 = arith.mulf %59, %58 : vector<1x128xf32>
    %cst_45 = arith.constant 5.000000e-01 : f32
    %61 = vector.broadcast %cst_45 : f32 to vector<1x128xf32>
    %62 = arith.addf %60, %61 : vector<1x128xf32>
    %63 = arith.mulf %52, %25 : vector<1x128xf32>
    %64 = arith.mulf %44, %54 : vector<1x128xf32>
    %65 = arith.addf %63, %64 : vector<1x128xf32>
    %66 = math.tanh %65 : vector<1x128xf32>
    %67 = arith.mulf %62, %66 : vector<1x128xf32>
    %68 = vector.extract_strided_slice %36 {offsets = [0, 0], sizes = [1, 128], strides = [1, 1]} : vector<1x512xf32> to vector<1x128xf32>
    %cst_46 = arith.constant 5.000000e-01 : f32
    %69 = vector.broadcast %cst_46 : f32 to vector<1x128xf32>
    %70 = arith.mulf %69, %68 : vector<1x128xf32>
    %71 = math.tanh %70 : vector<1x128xf32>
    %cst_47 = arith.constant 5.000000e-01 : f32
    %72 = vector.broadcast %cst_47 : f32 to vector<1x128xf32>
    %73 = arith.mulf %72, %71 : vector<1x128xf32>
    %cst_48 = arith.constant 5.000000e-01 : f32
    %74 = vector.broadcast %cst_48 : f32 to vector<1x128xf32>
    %75 = arith.addf %73, %74 : vector<1x128xf32>
    %76 = vector.extract_strided_slice %36 {offsets = [0, 128], sizes = [1, 128], strides = [1, 1]} : vector<1x512xf32> to vector<1x128xf32>
    %cst_49 = arith.constant 5.000000e-01 : f32
    %77 = vector.broadcast %cst_49 : f32 to vector<1x128xf32>
    %78 = arith.mulf %77, %76 : vector<1x128xf32>
    %79 = math.tanh %78 : vector<1x128xf32>
    %cst_50 = arith.constant 5.000000e-01 : f32
    %80 = vector.broadcast %cst_50 : f32 to vector<1x128xf32>
    %81 = arith.mulf %80, %79 : vector<1x128xf32>
    %cst_51 = arith.constant 5.000000e-01 : f32
    %82 = vector.broadcast %cst_51 : f32 to vector<1x128xf32>
    %83 = arith.addf %81, %82 : vector<1x128xf32>
    %84 = vector.extract_strided_slice %36 {offsets = [0, 256], sizes = [1, 128], strides = [1, 1]} : vector<1x512xf32> to vector<1x128xf32>
    %85 = math.tanh %84 : vector<1x128xf32>
    %86 = vector.extract_strided_slice %36 {offsets = [0, 384], sizes = [1, 128], strides = [1, 1]} : vector<1x512xf32> to vector<1x128xf32>
    %cst_52 = arith.constant 5.000000e-01 : f32
    %87 = vector.broadcast %cst_52 : f32 to vector<1x128xf32>
    %88 = arith.mulf %87, %86 : vector<1x128xf32>
    %89 = math.tanh %88 : vector<1x128xf32>
    %cst_53 = arith.constant 5.000000e-01 : f32
    %90 = vector.broadcast %cst_53 : f32 to vector<1x128xf32>
    %91 = arith.mulf %90, %89 : vector<1x128xf32>
    %cst_54 = arith.constant 5.000000e-01 : f32
    %92 = vector.broadcast %cst_54 : f32 to vector<1x128xf32>
    %93 = arith.addf %91, %92 : vector<1x128xf32>
    %94 = arith.mulf %83, %27 : vector<1x128xf32>
    %95 = arith.mulf %75, %85 : vector<1x128xf32>
    %96 = arith.addf %94, %95 : vector<1x128xf32>
    %97 = math.tanh %96 : vector<1x128xf32>
    %98 = arith.mulf %93, %97 : vector<1x128xf32>
    %99 = arith.index_cast %28 : i32 to index
    %c0_55 = arith.constant 0 : index
    %100 = vector.load %arg11[%99, %c0_55] : memref<8x128xf32, #tpu.memory_space<vmem>>, vector<1x128xf32>
    tpu.vector_store %arg11[%99, %c0_55], %67 {strides = array<i32>} : memref<8x128xf32, #tpu.memory_space<vmem>>, vector<1x128xf32>,
    %101 = arith.index_cast %28 : i32 to index
    %c0_56 = arith.constant 0 : index
    %102 = vector.load %arg12[%101, %c0_56] : memref<8x128xf32, #tpu.memory_space<vmem>>, vector<1x128xf32>
    tpu.vector_store %arg12[%101, %c0_56], %98 {strides = array<i32>} : memref<8x128xf32, #tpu.memory_space<vmem>>, vector<1x128xf32>,
    %c1_i32_57 = arith.constant 1 : i32
    %c1_i32_58 = arith.constant 1 : i32
    %103 = arith.muli %c1_i32_57, %c1_i32_58 : i32
    %104 = arith.index_cast %103 : i32 to index
    %c0_59 = arith.constant 0 : index
    %105 = vector.load %arg9[%104, %c0_59] : memref<8x512xf32, #tpu.memory_space<vmem>>, vector<1x512xf32>
    %cst_60 = arith.constant dense<0.000000e+00> : vector<1x512xf32>
    %106 = tpu.matmul %67, %21, %cst_60 {dimension_numbers = #tpu.dot_dimension_numbers<[1], [0], [0], [1], [0, 0, 1, 1], [], []>} : vector<1x128xf32>, vector<128x512xf32>, vector<1x512xf32> -> vector<1x512xf32>
    %107 = arith.addf %105, %106 : vector<1x512xf32>
    %108 = arith.index_cast %103 : i32 to index
    %c0_61 = arith.constant 0 : index
    %109 = vector.load %arg10[%108, %c0_61] : memref<8x512xf32, #tpu.memory_space<vmem>>, vector<1x512xf32>
    %cst_62 = arith.constant dense<0.000000e+00> : vector<1x512xf32>
    %110 = tpu.matmul %98, %23, %cst_62 {dimension_numbers = #tpu.dot_dimension_numbers<[1], [0], [0], [1], [0, 0, 1, 1], [], []>} : vector<1x128xf32>, vector<128x512xf32>, vector<1x512xf32> -> vector<1x512xf32>
    %111 = arith.addf %109, %110 : vector<1x512xf32>
    %112 = vector.extract_strided_slice %107 {offsets = [0, 0], sizes = [1, 128], strides = [1, 1]} : vector<1x512xf32> to vector<1x128xf32>
    %cst_63 = arith.constant 5.000000e-01 : f32
    %113 = vector.broadcast %cst_63 : f32 to vector<1x128xf32>
    %114 = arith.mulf %113, %112 : vector<1x128xf32>
    %115 = math.tanh %114 : vector<1x128xf32>
    %cst_64 = arith.constant 5.000000e-01 : f32
    %116 = vector.broadcast %cst_64 : f32 to vector<1x128xf32>
    %117 = arith.mulf %116, %115 : vector<1x128xf32>
    %cst_65 = arith.constant 5.000000e-01 : f32
    %118 = vector.broadcast %cst_65 : f32 to vector<1x128xf32>
    %119 = arith.addf %117, %118 : vector<1x128xf32>
    %120 = vector.extract_strided_slice %107 {offsets = [0, 128], sizes = [1, 128], strides = [1, 1]} : vector<1x512xf32> to vector<1x128xf32>
    %cst_66 = arith.constant 5.000000e-01 : f32
    %121 = vector.broadcast %cst_66 : f32 to vector<1x128xf32>
    %122 = arith.mulf %121, %120 : vector<1x128xf32>
    %123 = math.tanh %122 : vector<1x128xf32>
    %cst_67 = arith.constant 5.000000e-01 : f32
    %124 = vector.broadcast %cst_67 : f32 to vector<1x128xf32>
    %125 = arith.mulf %124, %123 : vector<1x128xf32>
    %cst_68 = arith.constant 5.000000e-01 : f32
    %126 = vector.broadcast %cst_68 : f32 to vector<1x128xf32>
    %127 = arith.addf %125, %126 : vector<1x128xf32>
    %128 = vector.extract_strided_slice %107 {offsets = [0, 256], sizes = [1, 128], strides = [1, 1]} : vector<1x512xf32> to vector<1x128xf32>
    %129 = math.tanh %128 : vector<1x128xf32>
    %130 = vector.extract_strided_slice %107 {offsets = [0, 384], sizes = [1, 128], strides = [1, 1]} : vector<1x512xf32> to vector<1x128xf32>
    %cst_69 = arith.constant 5.000000e-01 : f32
    %131 = vector.broadcast %cst_69 : f32 to vector<1x128xf32>
    %132 = arith.mulf %131, %130 : vector<1x128xf32>
    %133 = math.tanh %132 : vector<1x128xf32>
    %cst_70 = arith.constant 5.000000e-01 : f32
    %134 = vector.broadcast %cst_70 : f32 to vector<1x128xf32>
    %135 = arith.mulf %134, %133 : vector<1x128xf32>
    %cst_71 = arith.constant 5.000000e-01 : f32
    %136 = vector.broadcast %cst_71 : f32 to vector<1x128xf32>
    %137 = arith.addf %135, %136 : vector<1x128xf32>
    %138 = arith.mulf %127, %65 : vector<1x128xf32>
    %139 = arith.mulf %119, %129 : vector<1x128xf32>
    %140 = arith.addf %138, %139 : vector<1x128xf32>
    %141 = math.tanh %140 : vector<1x128xf32>
    %142 = arith.mulf %137, %141 : vector<1x128xf32>
    %143 = vector.extract_strided_slice %111 {offsets = [0, 0], sizes = [1, 128], strides = [1, 1]} : vector<1x512xf32> to vector<1x128xf32>
    %cst_72 = arith.constant 5.000000e-01 : f32
    %144 = vector.broadcast %cst_72 : f32 to vector<1x128xf32>
    %145 = arith.mulf %144, %143 : vector<1x128xf32>
    %146 = math.tanh %145 : vector<1x128xf32>
    %cst_73 = arith.constant 5.000000e-01 : f32
    %147 = vector.broadcast %cst_73 : f32 to vector<1x128xf32>
    %148 = arith.mulf %147, %146 : vector<1x128xf32>
    %cst_74 = arith.constant 5.000000e-01 : f32
    %149 = vector.broadcast %cst_74 : f32 to vector<1x128xf32>
    %150 = arith.addf %148, %149 : vector<1x128xf32>
    %151 = vector.extract_strided_slice %111 {offsets = [0, 128], sizes = [1, 128], strides = [1, 1]} : vector<1x512xf32> to vector<1x128xf32>
    %cst_75 = arith.constant 5.000000e-01 : f32
    %152 = vector.broadcast %cst_75 : f32 to vector<1x128xf32>
    %153 = arith.mulf %152, %151 : vector<1x128xf32>
    %154 = math.tanh %153 : vector<1x128xf32>
    %cst_76 = arith.constant 5.000000e-01 : f32
    %155 = vector.broadcast %cst_76 : f32 to vector<1x128xf32>
    %156 = arith.mulf %155, %154 : vector<1x128xf32>
    %cst_77 = arith.constant 5.000000e-01 : f32
    %157 = vector.broadcast %cst_77 : f32 to vector<1x128xf32>
    %158 = arith.addf %156, %157 : vector<1x128xf32>
    %159 = vector.extract_strided_slice %111 {offsets = [0, 256], sizes = [1, 128], strides = [1, 1]} : vector<1x512xf32> to vector<1x128xf32>
    %160 = math.tanh %159 : vector<1x128xf32>
    %161 = vector.extract_strided_slice %111 {offsets = [0, 384], sizes = [1, 128], strides = [1, 1]} : vector<1x512xf32> to vector<1x128xf32>
    %cst_78 = arith.constant 5.000000e-01 : f32
    %162 = vector.broadcast %cst_78 : f32 to vector<1x128xf32>
    %163 = arith.mulf %162, %161 : vector<1x128xf32>
    %164 = math.tanh %163 : vector<1x128xf32>
    %cst_79 = arith.constant 5.000000e-01 : f32
    %165 = vector.broadcast %cst_79 : f32 to vector<1x128xf32>
    %166 = arith.mulf %165, %164 : vector<1x128xf32>
    %cst_80 = arith.constant 5.000000e-01 : f32
    %167 = vector.broadcast %cst_80 : f32 to vector<1x128xf32>
    %168 = arith.addf %166, %167 : vector<1x128xf32>
    %169 = arith.mulf %158, %96 : vector<1x128xf32>
    %170 = arith.mulf %150, %160 : vector<1x128xf32>
    %171 = arith.addf %169, %170 : vector<1x128xf32>
    %172 = math.tanh %171 : vector<1x128xf32>
    %173 = arith.mulf %168, %172 : vector<1x128xf32>
    %174 = arith.index_cast %103 : i32 to index
    %c0_81 = arith.constant 0 : index
    %175 = vector.load %arg11[%174, %c0_81] : memref<8x128xf32, #tpu.memory_space<vmem>>, vector<1x128xf32>
    tpu.vector_store %arg11[%174, %c0_81], %142 {strides = array<i32>} : memref<8x128xf32, #tpu.memory_space<vmem>>, vector<1x128xf32>,
    %176 = arith.index_cast %103 : i32 to index
    %c0_82 = arith.constant 0 : index
    %177 = vector.load %arg12[%176, %c0_82] : memref<8x128xf32, #tpu.memory_space<vmem>>, vector<1x128xf32>
    tpu.vector_store %arg12[%176, %c0_82], %173 {strides = array<i32>} : memref<8x128xf32, #tpu.memory_space<vmem>>, vector<1x128xf32>,
    %c2_i32 = arith.constant 2 : i32
    %c1_i32_83 = arith.constant 1 : i32
    %178 = arith.muli %c2_i32, %c1_i32_83 : i32
    %179 = arith.index_cast %178 : i32 to index
    %c0_84 = arith.constant 0 : index
    %180 = vector.load %arg9[%179, %c0_84] : memref<8x512xf32, #tpu.memory_space<vmem>>, vector<1x512xf32>
    %cst_85 = arith.constant dense<0.000000e+00> : vector<1x512xf32>
    %181 = tpu.matmul %142, %21, %cst_85 {dimension_numbers = #tpu.dot_dimension_numbers<[1], [0], [0], [1], [0, 0, 1, 1], [], []>} : vector<1x128xf32>, vector<128x512xf32>, vector<1x512xf32> -> vector<1x512xf32>
    %182 = arith.addf %180, %181 : vector<1x512xf32>
    %183 = arith.index_cast %178 : i32 to index
    %c0_86 = arith.constant 0 : index
    %184 = vector.load %arg10[%183, %c0_86] : memref<8x512xf32, #tpu.memory_space<vmem>>, vector<1x512xf32>
    %cst_87 = arith.constant dense<0.000000e+00> : vector<1x512xf32>
    %185 = tpu.matmul %173, %23, %cst_87 {dimension_numbers = #tpu.dot_dimension_numbers<[1], [0], [0], [1], [0, 0, 1, 1], [], []>} : vector<1x128xf32>, vector<128x512xf32>, vector<1x512xf32> -> vector<1x512xf32>
    %186 = arith.addf %184, %185 : vector<1x512xf32>
    %187 = vector.extract_strided_slice %182 {offsets = [0, 0], sizes = [1, 128], strides = [1, 1]} : vector<1x512xf32> to vector<1x128xf32>
    %cst_88 = arith.constant 5.000000e-01 : f32
    %188 = vector.broadcast %cst_88 : f32 to vector<1x128xf32>
    %189 = arith.mulf %188, %187 : vector<1x128xf32>
    %190 = math.tanh %189 : vector<1x128xf32>
    %cst_89 = arith.constant 5.000000e-01 : f32
    %191 = vector.broadcast %cst_89 : f32 to vector<1x128xf32>
    %192 = arith.mulf %191, %190 : vector<1x128xf32>
    %cst_90 = arith.constant 5.000000e-01 : f32
    %193 = vector.broadcast %cst_90 : f32 to vector<1x128xf32>
    %194 = arith.addf %192, %193 : vector<1x128xf32>
    %195 = vector.extract_strided_slice %182 {offsets = [0, 128], sizes = [1, 128], strides = [1, 1]} : vector<1x512xf32> to vector<1x128xf32>
    %cst_91 = arith.constant 5.000000e-01 : f32
    %196 = vector.broadcast %cst_91 : f32 to vector<1x128xf32>
    %197 = arith.mulf %196, %195 : vector<1x128xf32>
    %198 = math.tanh %197 : vector<1x128xf32>
    %cst_92 = arith.constant 5.000000e-01 : f32
    %199 = vector.broadcast %cst_92 : f32 to vector<1x128xf32>
    %200 = arith.mulf %199, %198 : vector<1x128xf32>
    %cst_93 = arith.constant 5.000000e-01 : f32
    %201 = vector.broadcast %cst_93 : f32 to vector<1x128xf32>
    %202 = arith.addf %200, %201 : vector<1x128xf32>
    %203 = vector.extract_strided_slice %182 {offsets = [0, 256], sizes = [1, 128], strides = [1, 1]} : vector<1x512xf32> to vector<1x128xf32>
    %204 = math.tanh %203 : vector<1x128xf32>
    %205 = vector.extract_strided_slice %182 {offsets = [0, 384], sizes = [1, 128], strides = [1, 1]} : vector<1x512xf32> to vector<1x128xf32>
    %cst_94 = arith.constant 5.000000e-01 : f32
    %206 = vector.broadcast %cst_94 : f32 to vector<1x128xf32>
    %207 = arith.mulf %206, %205 : vector<1x128xf32>
    %208 = math.tanh %207 : vector<1x128xf32>
    %cst_95 = arith.constant 5.000000e-01 : f32
    %209 = vector.broadcast %cst_95 : f32 to vector<1x128xf32>
    %210 = arith.mulf %209, %208 : vector<1x128xf32>
    %cst_96 = arith.constant 5.000000e-01 : f32
    %211 = vector.broadcast %cst_96 : f32 to vector<1x128xf32>
    %212 = arith.addf %210, %211 : vector<1x128xf32>
    %213 = arith.mulf %202, %140 : vector<1x128xf32>
    %214 = arith.mulf %194, %204 : vector<1x128xf32>
    %215 = arith.addf %213, %214 : vector<1x128xf32>
    %216 = math.tanh %215 : vector<1x128xf32>
    %217 = arith.mulf %212, %216 : vector<1x128xf32>
    %218 = vector.extract_strided_slice %186 {offsets = [0, 0], sizes = [1, 128], strides = [1, 1]} : vector<1x512xf32> to vector<1x128xf32>
    %cst_97 = arith.constant 5.000000e-01 : f32
    %219 = vector.broadcast %cst_97 : f32 to vector<1x128xf32>
    %220 = arith.mulf %219, %218 : vector<1x128xf32>
    %221 = math.tanh %220 : vector<1x128xf32>
    %cst_98 = arith.constant 5.000000e-01 : f32
    %222 = vector.broadcast %cst_98 : f32 to vector<1x128xf32>
    %223 = arith.mulf %222, %221 : vector<1x128xf32>
    %cst_99 = arith.constant 5.000000e-01 : f32
    %224 = vector.broadcast %cst_99 : f32 to vector<1x128xf32>
    %225 = arith.addf %223, %224 : vector<1x128xf32>
    %226 = vector.extract_strided_slice %186 {offsets = [0, 128], sizes = [1, 128], strides = [1, 1]} : vector<1x512xf32> to vector<1x128xf32>
    %cst_100 = arith.constant 5.000000e-01 : f32
    %227 = vector.broadcast %cst_100 : f32 to vector<1x128xf32>
    %228 = arith.mulf %227, %226 : vector<1x128xf32>
    %229 = math.tanh %228 : vector<1x128xf32>
    %cst_101 = arith.constant 5.000000e-01 : f32
    %230 = vector.broadcast %cst_101 : f32 to vector<1x128xf32>
    %231 = arith.mulf %230, %229 : vector<1x128xf32>
    %cst_102 = arith.constant 5.000000e-01 : f32
    %232 = vector.broadcast %cst_102 : f32 to vector<1x128xf32>
    %233 = arith.addf %231, %232 : vector<1x128xf32>
    %234 = vector.extract_strided_slice %186 {offsets = [0, 256], sizes = [1, 128], strides = [1, 1]} : vector<1x512xf32> to vector<1x128xf32>
    %235 = math.tanh %234 : vector<1x128xf32>
    %236 = vector.extract_strided_slice %186 {offsets = [0, 384], sizes = [1, 128], strides = [1, 1]} : vector<1x512xf32> to vector<1x128xf32>
    %cst_103 = arith.constant 5.000000e-01 : f32
    %237 = vector.broadcast %cst_103 : f32 to vector<1x128xf32>
    %238 = arith.mulf %237, %236 : vector<1x128xf32>
    %239 = math.tanh %238 : vector<1x128xf32>
    %cst_104 = arith.constant 5.000000e-01 : f32
    %240 = vector.broadcast %cst_104 : f32 to vector<1x128xf32>
    %241 = arith.mulf %240, %239 : vector<1x128xf32>
    %cst_105 = arith.constant 5.000000e-01 : f32
    %242 = vector.broadcast %cst_105 : f32 to vector<1x128xf32>
    %243 = arith.addf %241, %242 : vector<1x128xf32>
    %244 = arith.mulf %233, %171 : vector<1x128xf32>
    %245 = arith.mulf %225, %235 : vector<1x128xf32>
    %246 = arith.addf %244, %245 : vector<1x128xf32>
    %247 = math.tanh %246 : vector<1x128xf32>
    %248 = arith.mulf %243, %247 : vector<1x128xf32>
    %249 = arith.index_cast %178 : i32 to index
    %c0_106 = arith.constant 0 : index
    %250 = vector.load %arg11[%249, %c0_106] : memref<8x128xf32, #tpu.memory_space<vmem>>, vector<1x128xf32>
    tpu.vector_store %arg11[%249, %c0_106], %217 {strides = array<i32>} : memref<8x128xf32, #tpu.memory_space<vmem>>, vector<1x128xf32>,
    %251 = arith.index_cast %178 : i32 to index
    %c0_107 = arith.constant 0 : index
    %252 = vector.load %arg12[%251, %c0_107] : memref<8x128xf32, #tpu.memory_space<vmem>>, vector<1x128xf32>
    tpu.vector_store %arg12[%251, %c0_107], %248 {strides = array<i32>} : memref<8x128xf32, #tpu.memory_space<vmem>>, vector<1x128xf32>,
    %c3_i32 = arith.constant 3 : i32
    %c1_i32_108 = arith.constant 1 : i32
    %253 = arith.muli %c3_i32, %c1_i32_108 : i32
    %254 = arith.index_cast %253 : i32 to index
    %c0_109 = arith.constant 0 : index
    %255 = vector.load %arg9[%254, %c0_109] : memref<8x512xf32, #tpu.memory_space<vmem>>, vector<1x512xf32>
    %cst_110 = arith.constant dense<0.000000e+00> : vector<1x512xf32>
    %256 = tpu.matmul %217, %21, %cst_110 {dimension_numbers = #tpu.dot_dimension_numbers<[1], [0], [0], [1], [0, 0, 1, 1], [], []>} : vector<1x128xf32>, vector<128x512xf32>, vector<1x512xf32> -> vector<1x512xf32>
    %257 = arith.addf %255, %256 : vector<1x512xf32>
    %258 = arith.index_cast %253 : i32 to index
    %c0_111 = arith.constant 0 : index
    %259 = vector.load %arg10[%258, %c0_111] : memref<8x512xf32, #tpu.memory_space<vmem>>, vector<1x512xf32>
    %cst_112 = arith.constant dense<0.000000e+00> : vector<1x512xf32>
    %260 = tpu.matmul %248, %23, %cst_112 {dimension_numbers = #tpu.dot_dimension_numbers<[1], [0], [0], [1], [0, 0, 1, 1], [], []>} : vector<1x128xf32>, vector<128x512xf32>, vector<1x512xf32> -> vector<1x512xf32>
    %261 = arith.addf %259, %260 : vector<1x512xf32>
    %262 = vector.extract_strided_slice %257 {offsets = [0, 0], sizes = [1, 128], strides = [1, 1]} : vector<1x512xf32> to vector<1x128xf32>
    %cst_113 = arith.constant 5.000000e-01 : f32
    %263 = vector.broadcast %cst_113 : f32 to vector<1x128xf32>
    %264 = arith.mulf %263, %262 : vector<1x128xf32>
    %265 = math.tanh %264 : vector<1x128xf32>
    %cst_114 = arith.constant 5.000000e-01 : f32
    %266 = vector.broadcast %cst_114 : f32 to vector<1x128xf32>
    %267 = arith.mulf %266, %265 : vector<1x128xf32>
    %cst_115 = arith.constant 5.000000e-01 : f32
    %268 = vector.broadcast %cst_115 : f32 to vector<1x128xf32>
    %269 = arith.addf %267, %268 : vector<1x128xf32>
    %270 = vector.extract_strided_slice %257 {offsets = [0, 128], sizes = [1, 128], strides = [1, 1]} : vector<1x512xf32> to vector<1x128xf32>
    %cst_116 = arith.constant 5.000000e-01 : f32
    %271 = vector.broadcast %cst_116 : f32 to vector<1x128xf32>
    %272 = arith.mulf %271, %270 : vector<1x128xf32>
    %273 = math.tanh %272 : vector<1x128xf32>
    %cst_117 = arith.constant 5.000000e-01 : f32
    %274 = vector.broadcast %cst_117 : f32 to vector<1x128xf32>
    %275 = arith.mulf %274, %273 : vector<1x128xf32>
    %cst_118 = arith.constant 5.000000e-01 : f32
    %276 = vector.broadcast %cst_118 : f32 to vector<1x128xf32>
    %277 = arith.addf %275, %276 : vector<1x128xf32>
    %278 = vector.extract_strided_slice %257 {offsets = [0, 256], sizes = [1, 128], strides = [1, 1]} : vector<1x512xf32> to vector<1x128xf32>
    %279 = math.tanh %278 : vector<1x128xf32>
    %280 = vector.extract_strided_slice %257 {offsets = [0, 384], sizes = [1, 128], strides = [1, 1]} : vector<1x512xf32> to vector<1x128xf32>
    %cst_119 = arith.constant 5.000000e-01 : f32
    %281 = vector.broadcast %cst_119 : f32 to vector<1x128xf32>
    %282 = arith.mulf %281, %280 : vector<1x128xf32>
    %283 = math.tanh %282 : vector<1x128xf32>
    %cst_120 = arith.constant 5.000000e-01 : f32
    %284 = vector.broadcast %cst_120 : f32 to vector<1x128xf32>
    %285 = arith.mulf %284, %283 : vector<1x128xf32>
    %cst_121 = arith.constant 5.000000e-01 : f32
    %286 = vector.broadcast %cst_121 : f32 to vector<1x128xf32>
    %287 = arith.addf %285, %286 : vector<1x128xf32>
    %288 = arith.mulf %277, %215 : vector<1x128xf32>
    %289 = arith.mulf %269, %279 : vector<1x128xf32>
    %290 = arith.addf %288, %289 : vector<1x128xf32>
    %291 = math.tanh %290 : vector<1x128xf32>
    %292 = arith.mulf %287, %291 : vector<1x128xf32>
    %293 = vector.extract_strided_slice %261 {offsets = [0, 0], sizes = [1, 128], strides = [1, 1]} : vector<1x512xf32> to vector<1x128xf32>
    %cst_122 = arith.constant 5.000000e-01 : f32
    %294 = vector.broadcast %cst_122 : f32 to vector<1x128xf32>
    %295 = arith.mulf %294, %293 : vector<1x128xf32>
    %296 = math.tanh %295 : vector<1x128xf32>
    %cst_123 = arith.constant 5.000000e-01 : f32
    %297 = vector.broadcast %cst_123 : f32 to vector<1x128xf32>
    %298 = arith.mulf %297, %296 : vector<1x128xf32>
    %cst_124 = arith.constant 5.000000e-01 : f32
    %299 = vector.broadcast %cst_124 : f32 to vector<1x128xf32>
    %300 = arith.addf %298, %299 : vector<1x128xf32>
    %301 = vector.extract_strided_slice %261 {offsets = [0, 128], sizes = [1, 128], strides = [1, 1]} : vector<1x512xf32> to vector<1x128xf32>
    %cst_125 = arith.constant 5.000000e-01 : f32
    %302 = vector.broadcast %cst_125 : f32 to vector<1x128xf32>
    %303 = arith.mulf %302, %301 : vector<1x128xf32>
    %304 = math.tanh %303 : vector<1x128xf32>
    %cst_126 = arith.constant 5.000000e-01 : f32
    %305 = vector.broadcast %cst_126 : f32 to vector<1x128xf32>
    %306 = arith.mulf %305, %304 : vector<1x128xf32>
    %cst_127 = arith.constant 5.000000e-01 : f32
    %307 = vector.broadcast %cst_127 : f32 to vector<1x128xf32>
    %308 = arith.addf %306, %307 : vector<1x128xf32>
    %309 = vector.extract_strided_slice %261 {offsets = [0, 256], sizes = [1, 128], strides = [1, 1]} : vector<1x512xf32> to vector<1x128xf32>
    %310 = math.tanh %309 : vector<1x128xf32>
    %311 = vector.extract_strided_slice %261 {offsets = [0, 384], sizes = [1, 128], strides = [1, 1]} : vector<1x512xf32> to vector<1x128xf32>
    %cst_128 = arith.constant 5.000000e-01 : f32
    %312 = vector.broadcast %cst_128 : f32 to vector<1x128xf32>
    %313 = arith.mulf %312, %311 : vector<1x128xf32>
    %314 = math.tanh %313 : vector<1x128xf32>
    %cst_129 = arith.constant 5.000000e-01 : f32
    %315 = vector.broadcast %cst_129 : f32 to vector<1x128xf32>
    %316 = arith.mulf %315, %314 : vector<1x128xf32>
    %cst_130 = arith.constant 5.000000e-01 : f32
    %317 = vector.broadcast %cst_130 : f32 to vector<1x128xf32>
    %318 = arith.addf %316, %317 : vector<1x128xf32>
    %319 = arith.mulf %308, %246 : vector<1x128xf32>
    %320 = arith.mulf %300, %310 : vector<1x128xf32>
    %321 = arith.addf %319, %320 : vector<1x128xf32>
    %322 = math.tanh %321 : vector<1x128xf32>
    %323 = arith.mulf %318, %322 : vector<1x128xf32>
    %324 = arith.index_cast %253 : i32 to index
    %c0_131 = arith.constant 0 : index
    %325 = vector.load %arg11[%324, %c0_131] : memref<8x128xf32, #tpu.memory_space<vmem>>, vector<1x128xf32>
    tpu.vector_store %arg11[%324, %c0_131], %292 {strides = array<i32>} : memref<8x128xf32, #tpu.memory_space<vmem>>, vector<1x128xf32>,
    %326 = arith.index_cast %253 : i32 to index
    %c0_132 = arith.constant 0 : index
    %327 = vector.load %arg12[%326, %c0_132] : memref<8x128xf32, #tpu.memory_space<vmem>>, vector<1x128xf32>
    tpu.vector_store %arg12[%326, %c0_132], %323 {strides = array<i32>} : memref<8x128xf32, #tpu.memory_space<vmem>>, vector<1x128xf32>,
    %c4_i32 = arith.constant 4 : i32
    %c1_i32_133 = arith.constant 1 : i32
    %328 = arith.muli %c4_i32, %c1_i32_133 : i32
    %329 = arith.index_cast %328 : i32 to index
    %c0_134 = arith.constant 0 : index
    %330 = vector.load %arg9[%329, %c0_134] : memref<8x512xf32, #tpu.memory_space<vmem>>, vector<1x512xf32>
    %cst_135 = arith.constant dense<0.000000e+00> : vector<1x512xf32>
    %331 = tpu.matmul %292, %21, %cst_135 {dimension_numbers = #tpu.dot_dimension_numbers<[1], [0], [0], [1], [0, 0, 1, 1], [], []>} : vector<1x128xf32>, vector<128x512xf32>, vector<1x512xf32> -> vector<1x512xf32>
    %332 = arith.addf %330, %331 : vector<1x512xf32>
    %333 = arith.index_cast %328 : i32 to index
    %c0_136 = arith.constant 0 : index
    %334 = vector.load %arg10[%333, %c0_136] : memref<8x512xf32, #tpu.memory_space<vmem>>, vector<1x512xf32>
    %cst_137 = arith.constant dense<0.000000e+00> : vector<1x512xf32>
    %335 = tpu.matmul %323, %23, %cst_137 {dimension_numbers = #tpu.dot_dimension_numbers<[1], [0], [0], [1], [0, 0, 1, 1], [], []>} : vector<1x128xf32>, vector<128x512xf32>, vector<1x512xf32> -> vector<1x512xf32>
    %336 = arith.addf %334, %335 : vector<1x512xf32>
    %337 = vector.extract_strided_slice %332 {offsets = [0, 0], sizes = [1, 128], strides = [1, 1]} : vector<1x512xf32> to vector<1x128xf32>
    %cst_138 = arith.constant 5.000000e-01 : f32
    %338 = vector.broadcast %cst_138 : f32 to vector<1x128xf32>
    %339 = arith.mulf %338, %337 : vector<1x128xf32>
    %340 = math.tanh %339 : vector<1x128xf32>
    %cst_139 = arith.constant 5.000000e-01 : f32
    %341 = vector.broadcast %cst_139 : f32 to vector<1x128xf32>
    %342 = arith.mulf %341, %340 : vector<1x128xf32>
    %cst_140 = arith.constant 5.000000e-01 : f32
    %343 = vector.broadcast %cst_140 : f32 to vector<1x128xf32>
    %344 = arith.addf %342, %343 : vector<1x128xf32>
    %345 = vector.extract_strided_slice %332 {offsets = [0, 128], sizes = [1, 128], strides = [1, 1]} : vector<1x512xf32> to vector<1x128xf32>
    %cst_141 = arith.constant 5.000000e-01 : f32
    %346 = vector.broadcast %cst_141 : f32 to vector<1x128xf32>
    %347 = arith.mulf %346, %345 : vector<1x128xf32>
    %348 = math.tanh %347 : vector<1x128xf32>
    %cst_142 = arith.constant 5.000000e-01 : f32
    %349 = vector.broadcast %cst_142 : f32 to vector<1x128xf32>
    %350 = arith.mulf %349, %348 : vector<1x128xf32>
    %cst_143 = arith.constant 5.000000e-01 : f32
    %351 = vector.broadcast %cst_143 : f32 to vector<1x128xf32>
    %352 = arith.addf %350, %351 : vector<1x128xf32>
    %353 = vector.extract_strided_slice %332 {offsets = [0, 256], sizes = [1, 128], strides = [1, 1]} : vector<1x512xf32> to vector<1x128xf32>
    %354 = math.tanh %353 : vector<1x128xf32>
    %355 = vector.extract_strided_slice %332 {offsets = [0, 384], sizes = [1, 128], strides = [1, 1]} : vector<1x512xf32> to vector<1x128xf32>
    %cst_144 = arith.constant 5.000000e-01 : f32
    %356 = vector.broadcast %cst_144 : f32 to vector<1x128xf32>
    %357 = arith.mulf %356, %355 : vector<1x128xf32>
    %358 = math.tanh %357 : vector<1x128xf32>
    %cst_145 = arith.constant 5.000000e-01 : f32
    %359 = vector.broadcast %cst_145 : f32 to vector<1x128xf32>
    %360 = arith.mulf %359, %358 : vector<1x128xf32>
    %cst_146 = arith.constant 5.000000e-01 : f32
    %361 = vector.broadcast %cst_146 : f32 to vector<1x128xf32>
    %362 = arith.addf %360, %361 : vector<1x128xf32>
    %363 = arith.mulf %352, %290 : vector<1x128xf32>
    %364 = arith.mulf %344, %354 : vector<1x128xf32>
    %365 = arith.addf %363, %364 : vector<1x128xf32>
    %366 = math.tanh %365 : vector<1x128xf32>
    %367 = arith.mulf %362, %366 : vector<1x128xf32>
    %368 = vector.extract_strided_slice %336 {offsets = [0, 0], sizes = [1, 128], strides = [1, 1]} : vector<1x512xf32> to vector<1x128xf32>
    %cst_147 = arith.constant 5.000000e-01 : f32
    %369 = vector.broadcast %cst_147 : f32 to vector<1x128xf32>
    %370 = arith.mulf %369, %368 : vector<1x128xf32>
    %371 = math.tanh %370 : vector<1x128xf32>
    %cst_148 = arith.constant 5.000000e-01 : f32
    %372 = vector.broadcast %cst_148 : f32 to vector<1x128xf32>
    %373 = arith.mulf %372, %371 : vector<1x128xf32>
    %cst_149 = arith.constant 5.000000e-01 : f32
    %374 = vector.broadcast %cst_149 : f32 to vector<1x128xf32>
    %375 = arith.addf %373, %374 : vector<1x128xf32>
    %376 = vector.extract_strided_slice %336 {offsets = [0, 128], sizes = [1, 128], strides = [1, 1]} : vector<1x512xf32> to vector<1x128xf32>
    %cst_150 = arith.constant 5.000000e-01 : f32
    %377 = vector.broadcast %cst_150 : f32 to vector<1x128xf32>
    %378 = arith.mulf %377, %376 : vector<1x128xf32>
    %379 = math.tanh %378 : vector<1x128xf32>
    %cst_151 = arith.constant 5.000000e-01 : f32
    %380 = vector.broadcast %cst_151 : f32 to vector<1x128xf32>
    %381 = arith.mulf %380, %379 : vector<1x128xf32>
    %cst_152 = arith.constant 5.000000e-01 : f32
    %382 = vector.broadcast %cst_152 : f32 to vector<1x128xf32>
    %383 = arith.addf %381, %382 : vector<1x128xf32>
    %384 = vector.extract_strided_slice %336 {offsets = [0, 256], sizes = [1, 128], strides = [1, 1]} : vector<1x512xf32> to vector<1x128xf32>
    %385 = math.tanh %384 : vector<1x128xf32>
    %386 = vector.extract_strided_slice %336 {offsets = [0, 384], sizes = [1, 128], strides = [1, 1]} : vector<1x512xf32> to vector<1x128xf32>
    %cst_153 = arith.constant 5.000000e-01 : f32
    %387 = vector.broadcast %cst_153 : f32 to vector<1x128xf32>
    %388 = arith.mulf %387, %386 : vector<1x128xf32>
    %389 = math.tanh %388 : vector<1x128xf32>
    %cst_154 = arith.constant 5.000000e-01 : f32
    %390 = vector.broadcast %cst_154 : f32 to vector<1x128xf32>
    %391 = arith.mulf %390, %389 : vector<1x128xf32>
    %cst_155 = arith.constant 5.000000e-01 : f32
    %392 = vector.broadcast %cst_155 : f32 to vector<1x128xf32>
    %393 = arith.addf %391, %392 : vector<1x128xf32>
    %394 = arith.mulf %383, %321 : vector<1x128xf32>
    %395 = arith.mulf %375, %385 : vector<1x128xf32>
    %396 = arith.addf %394, %395 : vector<1x128xf32>
    %397 = math.tanh %396 : vector<1x128xf32>
    %398 = arith.mulf %393, %397 : vector<1x128xf32>
    %399 = arith.index_cast %328 : i32 to index
    %c0_156 = arith.constant 0 : index
    %400 = vector.load %arg11[%399, %c0_156] : memref<8x128xf32, #tpu.memory_space<vmem>>, vector<1x128xf32>
    tpu.vector_store %arg11[%399, %c0_156], %367 {strides = array<i32>} : memref<8x128xf32, #tpu.memory_space<vmem>>, vector<1x128xf32>,
    %401 = arith.index_cast %328 : i32 to index
    %c0_157 = arith.constant 0 : index
    %402 = vector.load %arg12[%401, %c0_157] : memref<8x128xf32, #tpu.memory_space<vmem>>, vector<1x128xf32>
    tpu.vector_store %arg12[%401, %c0_157], %398 {strides = array<i32>} : memref<8x128xf32, #tpu.memory_space<vmem>>, vector<1x128xf32>,
    %c5_i32 = arith.constant 5 : i32
    %c1_i32_158 = arith.constant 1 : i32
    %403 = arith.muli %c5_i32, %c1_i32_158 : i32
    %404 = arith.index_cast %403 : i32 to index
    %c0_159 = arith.constant 0 : index
    %405 = vector.load %arg9[%404, %c0_159] : memref<8x512xf32, #tpu.memory_space<vmem>>, vector<1x512xf32>
    %cst_160 = arith.constant dense<0.000000e+00> : vector<1x512xf32>
    %406 = tpu.matmul %367, %21, %cst_160 {dimension_numbers = #tpu.dot_dimension_numbers<[1], [0], [0], [1], [0, 0, 1, 1], [], []>} : vector<1x128xf32>, vector<128x512xf32>, vector<1x512xf32> -> vector<1x512xf32>
    %407 = arith.addf %405, %406 : vector<1x512xf32>
    %408 = arith.index_cast %403 : i32 to index
    %c0_161 = arith.constant 0 : index
    %409 = vector.load %arg10[%408, %c0_161] : memref<8x512xf32, #tpu.memory_space<vmem>>, vector<1x512xf32>
    %cst_162 = arith.constant dense<0.000000e+00> : vector<1x512xf32>
    %410 = tpu.matmul %398, %23, %cst_162 {dimension_numbers = #tpu.dot_dimension_numbers<[1], [0], [0], [1], [0, 0, 1, 1], [], []>} : vector<1x128xf32>, vector<128x512xf32>, vector<1x512xf32> -> vector<1x512xf32>
    %411 = arith.addf %409, %410 : vector<1x512xf32>
    %412 = vector.extract_strided_slice %407 {offsets = [0, 0], sizes = [1, 128], strides = [1, 1]} : vector<1x512xf32> to vector<1x128xf32>
    %cst_163 = arith.constant 5.000000e-01 : f32
    %413 = vector.broadcast %cst_163 : f32 to vector<1x128xf32>
    %414 = arith.mulf %413, %412 : vector<1x128xf32>
    %415 = math.tanh %414 : vector<1x128xf32>
    %cst_164 = arith.constant 5.000000e-01 : f32
    %416 = vector.broadcast %cst_164 : f32 to vector<1x128xf32>
    %417 = arith.mulf %416, %415 : vector<1x128xf32>
    %cst_165 = arith.constant 5.000000e-01 : f32
    %418 = vector.broadcast %cst_165 : f32 to vector<1x128xf32>
    %419 = arith.addf %417, %418 : vector<1x128xf32>
    %420 = vector.extract_strided_slice %407 {offsets = [0, 128], sizes = [1, 128], strides = [1, 1]} : vector<1x512xf32> to vector<1x128xf32>
    %cst_166 = arith.constant 5.000000e-01 : f32
    %421 = vector.broadcast %cst_166 : f32 to vector<1x128xf32>
    %422 = arith.mulf %421, %420 : vector<1x128xf32>
    %423 = math.tanh %422 : vector<1x128xf32>
    %cst_167 = arith.constant 5.000000e-01 : f32
    %424 = vector.broadcast %cst_167 : f32 to vector<1x128xf32>
    %425 = arith.mulf %424, %423 : vector<1x128xf32>
    %cst_168 = arith.constant 5.000000e-01 : f32
    %426 = vector.broadcast %cst_168 : f32 to vector<1x128xf32>
    %427 = arith.addf %425, %426 : vector<1x128xf32>
    %428 = vector.extract_strided_slice %407 {offsets = [0, 256], sizes = [1, 128], strides = [1, 1]} : vector<1x512xf32> to vector<1x128xf32>
    %429 = math.tanh %428 : vector<1x128xf32>
    %430 = vector.extract_strided_slice %407 {offsets = [0, 384], sizes = [1, 128], strides = [1, 1]} : vector<1x512xf32> to vector<1x128xf32>
    %cst_169 = arith.constant 5.000000e-01 : f32
    %431 = vector.broadcast %cst_169 : f32 to vector<1x128xf32>
    %432 = arith.mulf %431, %430 : vector<1x128xf32>
    %433 = math.tanh %432 : vector<1x128xf32>
    %cst_170 = arith.constant 5.000000e-01 : f32
    %434 = vector.broadcast %cst_170 : f32 to vector<1x128xf32>
    %435 = arith.mulf %434, %433 : vector<1x128xf32>
    %cst_171 = arith.constant 5.000000e-01 : f32
    %436 = vector.broadcast %cst_171 : f32 to vector<1x128xf32>
    %437 = arith.addf %435, %436 : vector<1x128xf32>
    %438 = arith.mulf %427, %365 : vector<1x128xf32>
    %439 = arith.mulf %419, %429 : vector<1x128xf32>
    %440 = arith.addf %438, %439 : vector<1x128xf32>
    %441 = math.tanh %440 : vector<1x128xf32>
    %442 = arith.mulf %437, %441 : vector<1x128xf32>
    %443 = vector.extract_strided_slice %411 {offsets = [0, 0], sizes = [1, 128], strides = [1, 1]} : vector<1x512xf32> to vector<1x128xf32>
    %cst_172 = arith.constant 5.000000e-01 : f32
    %444 = vector.broadcast %cst_172 : f32 to vector<1x128xf32>
    %445 = arith.mulf %444, %443 : vector<1x128xf32>
    %446 = math.tanh %445 : vector<1x128xf32>
    %cst_173 = arith.constant 5.000000e-01 : f32
    %447 = vector.broadcast %cst_173 : f32 to vector<1x128xf32>
    %448 = arith.mulf %447, %446 : vector<1x128xf32>
    %cst_174 = arith.constant 5.000000e-01 : f32
    %449 = vector.broadcast %cst_174 : f32 to vector<1x128xf32>
    %450 = arith.addf %448, %449 : vector<1x128xf32>
    %451 = vector.extract_strided_slice %411 {offsets = [0, 128], sizes = [1, 128], strides = [1, 1]} : vector<1x512xf32> to vector<1x128xf32>
    %cst_175 = arith.constant 5.000000e-01 : f32
    %452 = vector.broadcast %cst_175 : f32 to vector<1x128xf32>
    %453 = arith.mulf %452, %451 : vector<1x128xf32>
    %454 = math.tanh %453 : vector<1x128xf32>
    %cst_176 = arith.constant 5.000000e-01 : f32
    %455 = vector.broadcast %cst_176 : f32 to vector<1x128xf32>
    %456 = arith.mulf %455, %454 : vector<1x128xf32>
    %cst_177 = arith.constant 5.000000e-01 : f32
    %457 = vector.broadcast %cst_177 : f32 to vector<1x128xf32>
    %458 = arith.addf %456, %457 : vector<1x128xf32>
    %459 = vector.extract_strided_slice %411 {offsets = [0, 256], sizes = [1, 128], strides = [1, 1]} : vector<1x512xf32> to vector<1x128xf32>
    %460 = math.tanh %459 : vector<1x128xf32>
    %461 = vector.extract_strided_slice %411 {offsets = [0, 384], sizes = [1, 128], strides = [1, 1]} : vector<1x512xf32> to vector<1x128xf32>
    %cst_178 = arith.constant 5.000000e-01 : f32
    %462 = vector.broadcast %cst_178 : f32 to vector<1x128xf32>
    %463 = arith.mulf %462, %461 : vector<1x128xf32>
    %464 = math.tanh %463 : vector<1x128xf32>
    %cst_179 = arith.constant 5.000000e-01 : f32
    %465 = vector.broadcast %cst_179 : f32 to vector<1x128xf32>
    %466 = arith.mulf %465, %464 : vector<1x128xf32>
    %cst_180 = arith.constant 5.000000e-01 : f32
    %467 = vector.broadcast %cst_180 : f32 to vector<1x128xf32>
    %468 = arith.addf %466, %467 : vector<1x128xf32>
    %469 = arith.mulf %458, %396 : vector<1x128xf32>
    %470 = arith.mulf %450, %460 : vector<1x128xf32>
    %471 = arith.addf %469, %470 : vector<1x128xf32>
    %472 = math.tanh %471 : vector<1x128xf32>
    %473 = arith.mulf %468, %472 : vector<1x128xf32>
    %474 = arith.index_cast %403 : i32 to index
    %c0_181 = arith.constant 0 : index
    %475 = vector.load %arg11[%474, %c0_181] : memref<8x128xf32, #tpu.memory_space<vmem>>, vector<1x128xf32>
    tpu.vector_store %arg11[%474, %c0_181], %442 {strides = array<i32>} : memref<8x128xf32, #tpu.memory_space<vmem>>, vector<1x128xf32>,
    %476 = arith.index_cast %403 : i32 to index
    %c0_182 = arith.constant 0 : index
    %477 = vector.load %arg12[%476, %c0_182] : memref<8x128xf32, #tpu.memory_space<vmem>>, vector<1x128xf32>
    tpu.vector_store %arg12[%476, %c0_182], %473 {strides = array<i32>} : memref<8x128xf32, #tpu.memory_space<vmem>>, vector<1x128xf32>,
    %c6_i32 = arith.constant 6 : i32
    %c1_i32_183 = arith.constant 1 : i32
    %478 = arith.muli %c6_i32, %c1_i32_183 : i32
    %479 = arith.index_cast %478 : i32 to index
    %c0_184 = arith.constant 0 : index
    %480 = vector.load %arg9[%479, %c0_184] : memref<8x512xf32, #tpu.memory_space<vmem>>, vector<1x512xf32>
    %cst_185 = arith.constant dense<0.000000e+00> : vector<1x512xf32>
    %481 = tpu.matmul %442, %21, %cst_185 {dimension_numbers = #tpu.dot_dimension_numbers<[1], [0], [0], [1], [0, 0, 1, 1], [], []>} : vector<1x128xf32>, vector<128x512xf32>, vector<1x512xf32> -> vector<1x512xf32>
    %482 = arith.addf %480, %481 : vector<1x512xf32>
    %483 = arith.index_cast %478 : i32 to index
    %c0_186 = arith.constant 0 : index
    %484 = vector.load %arg10[%483, %c0_186] : memref<8x512xf32, #tpu.memory_space<vmem>>, vector<1x512xf32>
    %cst_187 = arith.constant dense<0.000000e+00> : vector<1x512xf32>
    %485 = tpu.matmul %473, %23, %cst_187 {dimension_numbers = #tpu.dot_dimension_numbers<[1], [0], [0], [1], [0, 0, 1, 1], [], []>} : vector<1x128xf32>, vector<128x512xf32>, vector<1x512xf32> -> vector<1x512xf32>
    %486 = arith.addf %484, %485 : vector<1x512xf32>
    %487 = vector.extract_strided_slice %482 {offsets = [0, 0], sizes = [1, 128], strides = [1, 1]} : vector<1x512xf32> to vector<1x128xf32>
    %cst_188 = arith.constant 5.000000e-01 : f32
    %488 = vector.broadcast %cst_188 : f32 to vector<1x128xf32>
    %489 = arith.mulf %488, %487 : vector<1x128xf32>
    %490 = math.tanh %489 : vector<1x128xf32>
    %cst_189 = arith.constant 5.000000e-01 : f32
    %491 = vector.broadcast %cst_189 : f32 to vector<1x128xf32>
    %492 = arith.mulf %491, %490 : vector<1x128xf32>
    %cst_190 = arith.constant 5.000000e-01 : f32
    %493 = vector.broadcast %cst_190 : f32 to vector<1x128xf32>
    %494 = arith.addf %492, %493 : vector<1x128xf32>
    %495 = vector.extract_strided_slice %482 {offsets = [0, 128], sizes = [1, 128], strides = [1, 1]} : vector<1x512xf32> to vector<1x128xf32>
    %cst_191 = arith.constant 5.000000e-01 : f32
    %496 = vector.broadcast %cst_191 : f32 to vector<1x128xf32>
    %497 = arith.mulf %496, %495 : vector<1x128xf32>
    %498 = math.tanh %497 : vector<1x128xf32>
    %cst_192 = arith.constant 5.000000e-01 : f32
    %499 = vector.broadcast %cst_192 : f32 to vector<1x128xf32>
    %500 = arith.mulf %499, %498 : vector<1x128xf32>
    %cst_193 = arith.constant 5.000000e-01 : f32
    %501 = vector.broadcast %cst_193 : f32 to vector<1x128xf32>
    %502 = arith.addf %500, %501 : vector<1x128xf32>
    %503 = vector.extract_strided_slice %482 {offsets = [0, 256], sizes = [1, 128], strides = [1, 1]} : vector<1x512xf32> to vector<1x128xf32>
    %504 = math.tanh %503 : vector<1x128xf32>
    %505 = vector.extract_strided_slice %482 {offsets = [0, 384], sizes = [1, 128], strides = [1, 1]} : vector<1x512xf32> to vector<1x128xf32>
    %cst_194 = arith.constant 5.000000e-01 : f32
    %506 = vector.broadcast %cst_194 : f32 to vector<1x128xf32>
    %507 = arith.mulf %506, %505 : vector<1x128xf32>
    %508 = math.tanh %507 : vector<1x128xf32>
    %cst_195 = arith.constant 5.000000e-01 : f32
    %509 = vector.broadcast %cst_195 : f32 to vector<1x128xf32>
    %510 = arith.mulf %509, %508 : vector<1x128xf32>
    %cst_196 = arith.constant 5.000000e-01 : f32
    %511 = vector.broadcast %cst_196 : f32 to vector<1x128xf32>
    %512 = arith.addf %510, %511 : vector<1x128xf32>
    %513 = arith.mulf %502, %440 : vector<1x128xf32>
    %514 = arith.mulf %494, %504 : vector<1x128xf32>
    %515 = arith.addf %513, %514 : vector<1x128xf32>
    %516 = math.tanh %515 : vector<1x128xf32>
    %517 = arith.mulf %512, %516 : vector<1x128xf32>
    %518 = vector.extract_strided_slice %486 {offsets = [0, 0], sizes = [1, 128], strides = [1, 1]} : vector<1x512xf32> to vector<1x128xf32>
    %cst_197 = arith.constant 5.000000e-01 : f32
    %519 = vector.broadcast %cst_197 : f32 to vector<1x128xf32>
    %520 = arith.mulf %519, %518 : vector<1x128xf32>
    %521 = math.tanh %520 : vector<1x128xf32>
    %cst_198 = arith.constant 5.000000e-01 : f32
    %522 = vector.broadcast %cst_198 : f32 to vector<1x128xf32>
    %523 = arith.mulf %522, %521 : vector<1x128xf32>
    %cst_199 = arith.constant 5.000000e-01 : f32
    %524 = vector.broadcast %cst_199 : f32 to vector<1x128xf32>
    %525 = arith.addf %523, %524 : vector<1x128xf32>
    %526 = vector.extract_strided_slice %486 {offsets = [0, 128], sizes = [1, 128], strides = [1, 1]} : vector<1x512xf32> to vector<1x128xf32>
    %cst_200 = arith.constant 5.000000e-01 : f32
    %527 = vector.broadcast %cst_200 : f32 to vector<1x128xf32>
    %528 = arith.mulf %527, %526 : vector<1x128xf32>
    %529 = math.tanh %528 : vector<1x128xf32>
    %cst_201 = arith.constant 5.000000e-01 : f32
    %530 = vector.broadcast %cst_201 : f32 to vector<1x128xf32>
    %531 = arith.mulf %530, %529 : vector<1x128xf32>
    %cst_202 = arith.constant 5.000000e-01 : f32
    %532 = vector.broadcast %cst_202 : f32 to vector<1x128xf32>
    %533 = arith.addf %531, %532 : vector<1x128xf32>
    %534 = vector.extract_strided_slice %486 {offsets = [0, 256], sizes = [1, 128], strides = [1, 1]} : vector<1x512xf32> to vector<1x128xf32>
    %535 = math.tanh %534 : vector<1x128xf32>
    %536 = vector.extract_strided_slice %486 {offsets = [0, 384], sizes = [1, 128], strides = [1, 1]} : vector<1x512xf32> to vector<1x128xf32>
    %cst_203 = arith.constant 5.000000e-01 : f32
    %537 = vector.broadcast %cst_203 : f32 to vector<1x128xf32>
    %538 = arith.mulf %537, %536 : vector<1x128xf32>
    %539 = math.tanh %538 : vector<1x128xf32>
    %cst_204 = arith.constant 5.000000e-01 : f32
    %540 = vector.broadcast %cst_204 : f32 to vector<1x128xf32>
    %541 = arith.mulf %540, %539 : vector<1x128xf32>
    %cst_205 = arith.constant 5.000000e-01 : f32
    %542 = vector.broadcast %cst_205 : f32 to vector<1x128xf32>
    %543 = arith.addf %541, %542 : vector<1x128xf32>
    %544 = arith.mulf %533, %471 : vector<1x128xf32>
    %545 = arith.mulf %525, %535 : vector<1x128xf32>
    %546 = arith.addf %544, %545 : vector<1x128xf32>
    %547 = math.tanh %546 : vector<1x128xf32>
    %548 = arith.mulf %543, %547 : vector<1x128xf32>
    %549 = arith.index_cast %478 : i32 to index
    %c0_206 = arith.constant 0 : index
    %550 = vector.load %arg11[%549, %c0_206] : memref<8x128xf32, #tpu.memory_space<vmem>>, vector<1x128xf32>
    tpu.vector_store %arg11[%549, %c0_206], %517 {strides = array<i32>} : memref<8x128xf32, #tpu.memory_space<vmem>>, vector<1x128xf32>,
    %551 = arith.index_cast %478 : i32 to index
    %c0_207 = arith.constant 0 : index
    %552 = vector.load %arg12[%551, %c0_207] : memref<8x128xf32, #tpu.memory_space<vmem>>, vector<1x128xf32>
    tpu.vector_store %arg12[%551, %c0_207], %548 {strides = array<i32>} : memref<8x128xf32, #tpu.memory_space<vmem>>, vector<1x128xf32>,
    %c7_i32 = arith.constant 7 : i32
    %c1_i32_208 = arith.constant 1 : i32
    %553 = arith.muli %c7_i32, %c1_i32_208 : i32
    %554 = arith.index_cast %553 : i32 to index
    %c0_209 = arith.constant 0 : index
    %555 = vector.load %arg9[%554, %c0_209] : memref<8x512xf32, #tpu.memory_space<vmem>>, vector<1x512xf32>
    %cst_210 = arith.constant dense<0.000000e+00> : vector<1x512xf32>
    %556 = tpu.matmul %517, %21, %cst_210 {dimension_numbers = #tpu.dot_dimension_numbers<[1], [0], [0], [1], [0, 0, 1, 1], [], []>} : vector<1x128xf32>, vector<128x512xf32>, vector<1x512xf32> -> vector<1x512xf32>
    %557 = arith.addf %555, %556 : vector<1x512xf32>
    %558 = arith.index_cast %553 : i32 to index
    %c0_211 = arith.constant 0 : index
    %559 = vector.load %arg10[%558, %c0_211] : memref<8x512xf32, #tpu.memory_space<vmem>>, vector<1x512xf32>
    %cst_212 = arith.constant dense<0.000000e+00> : vector<1x512xf32>
    %560 = tpu.matmul %548, %23, %cst_212 {dimension_numbers = #tpu.dot_dimension_numbers<[1], [0], [0], [1], [0, 0, 1, 1], [], []>} : vector<1x128xf32>, vector<128x512xf32>, vector<1x512xf32> -> vector<1x512xf32>
    %561 = arith.addf %559, %560 : vector<1x512xf32>
    %562 = vector.extract_strided_slice %557 {offsets = [0, 0], sizes = [1, 128], strides = [1, 1]} : vector<1x512xf32> to vector<1x128xf32>
    %cst_213 = arith.constant 5.000000e-01 : f32
    %563 = vector.broadcast %cst_213 : f32 to vector<1x128xf32>
    %564 = arith.mulf %563, %562 : vector<1x128xf32>
    %565 = math.tanh %564 : vector<1x128xf32>
    %cst_214 = arith.constant 5.000000e-01 : f32
    %566 = vector.broadcast %cst_214 : f32 to vector<1x128xf32>
    %567 = arith.mulf %566, %565 : vector<1x128xf32>
    %cst_215 = arith.constant 5.000000e-01 : f32
    %568 = vector.broadcast %cst_215 : f32 to vector<1x128xf32>
    %569 = arith.addf %567, %568 : vector<1x128xf32>
    %570 = vector.extract_strided_slice %557 {offsets = [0, 128], sizes = [1, 128], strides = [1, 1]} : vector<1x512xf32> to vector<1x128xf32>
    %cst_216 = arith.constant 5.000000e-01 : f32
    %571 = vector.broadcast %cst_216 : f32 to vector<1x128xf32>
    %572 = arith.mulf %571, %570 : vector<1x128xf32>
    %573 = math.tanh %572 : vector<1x128xf32>
    %cst_217 = arith.constant 5.000000e-01 : f32
    %574 = vector.broadcast %cst_217 : f32 to vector<1x128xf32>
    %575 = arith.mulf %574, %573 : vector<1x128xf32>
    %cst_218 = arith.constant 5.000000e-01 : f32
    %576 = vector.broadcast %cst_218 : f32 to vector<1x128xf32>
    %577 = arith.addf %575, %576 : vector<1x128xf32>
    %578 = vector.extract_strided_slice %557 {offsets = [0, 256], sizes = [1, 128], strides = [1, 1]} : vector<1x512xf32> to vector<1x128xf32>
    %579 = math.tanh %578 : vector<1x128xf32>
    %580 = vector.extract_strided_slice %557 {offsets = [0, 384], sizes = [1, 128], strides = [1, 1]} : vector<1x512xf32> to vector<1x128xf32>
    %cst_219 = arith.constant 5.000000e-01 : f32
    %581 = vector.broadcast %cst_219 : f32 to vector<1x128xf32>
    %582 = arith.mulf %581, %580 : vector<1x128xf32>
    %583 = math.tanh %582 : vector<1x128xf32>
    %cst_220 = arith.constant 5.000000e-01 : f32
    %584 = vector.broadcast %cst_220 : f32 to vector<1x128xf32>
    %585 = arith.mulf %584, %583 : vector<1x128xf32>
    %cst_221 = arith.constant 5.000000e-01 : f32
    %586 = vector.broadcast %cst_221 : f32 to vector<1x128xf32>
    %587 = arith.addf %585, %586 : vector<1x128xf32>
    %588 = arith.mulf %577, %515 : vector<1x128xf32>
    %589 = arith.mulf %569, %579 : vector<1x128xf32>
    %590 = arith.addf %588, %589 : vector<1x128xf32>
    %591 = math.tanh %590 : vector<1x128xf32>
    %592 = arith.mulf %587, %591 : vector<1x128xf32>
    %593 = vector.extract_strided_slice %561 {offsets = [0, 0], sizes = [1, 128], strides = [1, 1]} : vector<1x512xf32> to vector<1x128xf32>
    %cst_222 = arith.constant 5.000000e-01 : f32
    %594 = vector.broadcast %cst_222 : f32 to vector<1x128xf32>
    %595 = arith.mulf %594, %593 : vector<1x128xf32>
    %596 = math.tanh %595 : vector<1x128xf32>
    %cst_223 = arith.constant 5.000000e-01 : f32
    %597 = vector.broadcast %cst_223 : f32 to vector<1x128xf32>
    %598 = arith.mulf %597, %596 : vector<1x128xf32>
    %cst_224 = arith.constant 5.000000e-01 : f32
    %599 = vector.broadcast %cst_224 : f32 to vector<1x128xf32>
    %600 = arith.addf %598, %599 : vector<1x128xf32>
    %601 = vector.extract_strided_slice %561 {offsets = [0, 128], sizes = [1, 128], strides = [1, 1]} : vector<1x512xf32> to vector<1x128xf32>
    %cst_225 = arith.constant 5.000000e-01 : f32
    %602 = vector.broadcast %cst_225 : f32 to vector<1x128xf32>
    %603 = arith.mulf %602, %601 : vector<1x128xf32>
    %604 = math.tanh %603 : vector<1x128xf32>
    %cst_226 = arith.constant 5.000000e-01 : f32
    %605 = vector.broadcast %cst_226 : f32 to vector<1x128xf32>
    %606 = arith.mulf %605, %604 : vector<1x128xf32>
    %cst_227 = arith.constant 5.000000e-01 : f32
    %607 = vector.broadcast %cst_227 : f32 to vector<1x128xf32>
    %608 = arith.addf %606, %607 : vector<1x128xf32>
    %609 = vector.extract_strided_slice %561 {offsets = [0, 256], sizes = [1, 128], strides = [1, 1]} : vector<1x512xf32> to vector<1x128xf32>
    %610 = math.tanh %609 : vector<1x128xf32>
    %611 = vector.extract_strided_slice %561 {offsets = [0, 384], sizes = [1, 128], strides = [1, 1]} : vector<1x512xf32> to vector<1x128xf32>
    %cst_228 = arith.constant 5.000000e-01 : f32
    %612 = vector.broadcast %cst_228 : f32 to vector<1x128xf32>
    %613 = arith.mulf %612, %611 : vector<1x128xf32>
    %614 = math.tanh %613 : vector<1x128xf32>
    %cst_229 = arith.constant 5.000000e-01 : f32
    %615 = vector.broadcast %cst_229 : f32 to vector<1x128xf32>
    %616 = arith.mulf %615, %614 : vector<1x128xf32>
    %cst_230 = arith.constant 5.000000e-01 : f32
    %617 = vector.broadcast %cst_230 : f32 to vector<1x128xf32>
    %618 = arith.addf %616, %617 : vector<1x128xf32>
    %619 = arith.mulf %608, %546 : vector<1x128xf32>
    %620 = arith.mulf %600, %610 : vector<1x128xf32>
    %621 = arith.addf %619, %620 : vector<1x128xf32>
    %622 = math.tanh %621 : vector<1x128xf32>
    %623 = arith.mulf %618, %622 : vector<1x128xf32>
    %624 = arith.index_cast %553 : i32 to index
    %c0_231 = arith.constant 0 : index
    %625 = vector.load %arg11[%624, %c0_231] : memref<8x128xf32, #tpu.memory_space<vmem>>, vector<1x128xf32>
    tpu.vector_store %arg11[%624, %c0_231], %592 {strides = array<i32>} : memref<8x128xf32, #tpu.memory_space<vmem>>, vector<1x128xf32>,
    %626 = arith.index_cast %553 : i32 to index
    %c0_232 = arith.constant 0 : index
    %627 = vector.load %arg12[%626, %c0_232] : memref<8x128xf32, #tpu.memory_space<vmem>>, vector<1x128xf32>
    tpu.vector_store %arg12[%626, %c0_232], %623 {strides = array<i32>} : memref<8x128xf32, #tpu.memory_space<vmem>>, vector<1x128xf32>,
    %c8_i32 = arith.constant 8 : i32
    %c0_233 = arith.constant 0 : index
    %c0_234 = arith.constant 0 : index
    %628 = vector.load %arg13[%c0_233, %c0_234] : memref<1x128xf32, #tpu.memory_space<vmem>>, vector<1x128xf32>
    tpu.vector_store %arg13[%c0_233, %c0_234], %592 {strides = array<i32>} : memref<1x128xf32, #tpu.memory_space<vmem>>, vector<1x128xf32>,
    %c0_235 = arith.constant 0 : index
    %c0_236 = arith.constant 0 : index
    %629 = vector.load %arg14[%c0_235, %c0_236] : memref<1x128xf32, #tpu.memory_space<vmem>>, vector<1x128xf32>
    tpu.vector_store %arg14[%c0_235, %c0_236], %590 {strides = array<i32>} : memref<1x128xf32, #tpu.memory_space<vmem>>, vector<1x128xf32>,
    %c0_237 = arith.constant 0 : index
    %c0_238 = arith.constant 0 : index
    %630 = vector.load %arg15[%c0_237, %c0_238] : memref<1x128xf32, #tpu.memory_space<vmem>>, vector<1x128xf32>
    tpu.vector_store %arg15[%c0_237, %c0_238], %623 {strides = array<i32>} : memref<1x128xf32, #tpu.memory_space<vmem>>, vector<1x128xf32>,
    %c0_239 = arith.constant 0 : index
    %c0_240 = arith.constant 0 : index
    %631 = vector.load %arg16[%c0_239, %c0_240] : memref<1x128xf32, #tpu.memory_space<vmem>>, vector<1x128xf32>
    tpu.vector_store %arg16[%c0_239, %c0_240], %621 {strides = array<i32>} : memref<1x128xf32, #tpu.memory_space<vmem>>, vector<1x128xf32>,
    %c0_241 = arith.constant 0 : index
    %c0_242 = arith.constant 0 : index
    %632 = vector.load %arg12[%c0_241, %c0_242] : memref<8x128xf32, #tpu.memory_space<vmem>>, vector<8x128xf32>
    %c0_243 = arith.constant 0 : index
    %c0_244 = arith.constant 0 : index
    %633 = vector.load %arg5[%c0_243, %c0_244] : memref<128x128xf32, #tpu.memory_space<vmem>>, vector<128x128xf32>
    %cst_245 = arith.constant dense<0.000000e+00> : vector<8x128xf32>
    %634 = tpu.matmul %632, %633, %cst_245 {dimension_numbers = #tpu.dot_dimension_numbers<[1], [0], [0], [1], [0, 0, 1, 1], [], []>} : vector<8x128xf32>, vector<128x128xf32>, vector<8x128xf32> -> vector<8x128xf32>
    %c0_246 = arith.constant 0 : index
    %c0_247 = arith.constant 0 : index
    %635 = vector.load %arg7[%c0_246, %c0_247] : memref<1x384xf32, #tpu.memory_space<vmem>>, vector<1x128xf32>
    %636 = vector.broadcast %635 : vector<1x128xf32> to vector<8x128xf32>
    %637 = arith.addf %634, %636 : vector<8x128xf32>
    %c0_248 = arith.constant 0 : index
    %c0_249 = arith.constant 0 : index
    %638 = vector.load %arg11[%c0_248, %c0_249] : memref<8x128xf32, #tpu.memory_space<vmem>>, vector<8x128xf32>
    %c0_250 = arith.constant 0 : index
    %c0_251 = arith.constant 0 : index
    %639 = vector.load %arg6[%c0_250, %c0_251] : memref<128x256xf32, #tpu.memory_space<vmem>>, vector<128x256xf32>
    %cst_252 = arith.constant dense<0.000000e+00> : vector<8x256xf32>
    %640 = tpu.matmul %638, %639, %cst_252 {dimension_numbers = #tpu.dot_dimension_numbers<[1], [0], [0], [1], [0, 0, 1, 1], [], []>} : vector<8x128xf32>, vector<128x256xf32>, vector<8x256xf32> -> vector<8x256xf32>
    %c0_253 = arith.constant 0 : index
    %c128 = arith.constant 128 : index
    %641 = vector.load %arg7[%c0_253, %c128] : memref<1x384xf32, #tpu.memory_space<vmem>>, vector<1x256xf32>
    %642 = vector.broadcast %641 : vector<1x256xf32> to vector<8x256xf32>
    %643 = arith.addf %640, %642 : vector<8x256xf32>
    %cst_254 = arith.constant 5.000000e-01 : f32
    %644 = vector.broadcast %cst_254 : f32 to vector<8x128xf32>
    %645 = arith.mulf %644, %637 : vector<8x128xf32>
    %646 = math.tanh %645 : vector<8x128xf32>
    %cst_255 = arith.constant 5.000000e-01 : f32
    %647 = vector.broadcast %cst_255 : f32 to vector<8x128xf32>
    %648 = arith.mulf %647, %646 : vector<8x128xf32>
    %cst_256 = arith.constant 5.000000e-01 : f32
    %649 = vector.broadcast %cst_256 : f32 to vector<8x128xf32>
    %650 = arith.addf %648, %649 : vector<8x128xf32>
    %c0_257 = arith.constant 0 : index
    %c0_258 = arith.constant 0 : index
    %651 = vector.load %arg8[%c0_257, %c0_258] : memref<8x384xf32, #tpu.memory_space<vmem>>, vector<8x128xf32>
    tpu.vector_store %arg8[%c0_257, %c0_258], %650 {strides = array<i32>} : memref<8x384xf32, #tpu.memory_space<vmem>>, vector<8x128xf32>,
    %c0_259 = arith.constant 0 : index
    %c128_260 = arith.constant 128 : index
    %652 = vector.load %arg8[%c0_259, %c128_260] : memref<8x384xf32, #tpu.memory_space<vmem>>, vector<8x256xf32>
    tpu.vector_store %arg8[%c0_259, %c128_260], %643 {strides = array<i32>} : memref<8x384xf32, #tpu.memory_space<vmem>>, vector<8x256xf32>,
    return
  }
  func.func @transform_0(%arg0: i32) -> (i32, i32) {
    %c0_i32 = arith.constant 0 : i32
    %c0_i32_0 = arith.constant 0 : i32
    return %arg0, %c0_i32 : i32, i32
  }
  func.func @transform_1(%arg0: i32) -> (i32, i32, i32) {
    %c0_i32 = arith.constant 0 : i32
    %c0_i32_0 = arith.constant 0 : i32
    %c0_i32_1 = arith.constant 0 : i32
    %c0_i32_2 = arith.constant 0 : i32
    return %c0_i32, %c0_i32_0, %c0_i32_1 : i32, i32, i32
  }
  func.func @transform_2(%arg0: i32) -> (i32, i32, i32) {
    %c0_i32 = arith.constant 0 : i32
    %c0_i32_0 = arith.constant 0 : i32
    %c0_i32_1 = arith.constant 0 : i32
    %c0_i32_2 = arith.constant 0 : i32
    return %c0_i32, %c0_i32_0, %c0_i32_1 : i32, i32, i32
  }
  func.func @transform_3(%arg0: i32) -> (i32, i32, i32) {
    %c0_i32 = arith.constant 0 : i32
    %c0_i32_0 = arith.constant 0 : i32
    %c0_i32_1 = arith.constant 0 : i32
    %c0_i32_2 = arith.constant 0 : i32
    return %c0_i32, %c0_i32_0, %c0_i32_1 : i32, i32, i32
  }
  func.func @transform_4(%arg0: i32) -> (i32, i32) {
    %c0_i32 = arith.constant 0 : i32
    %c0_i32_0 = arith.constant 0 : i32
    %c0_i32_1 = arith.constant 0 : i32
    return %c0_i32, %c0_i32_0 : i32, i32
  }
  func.func @transform_5(%arg0: i32) -> (i32, i32) {
    %c0_i32 = arith.constant 0 : i32
    %c0_i32_0 = arith.constant 0 : i32
    %c0_i32_1 = arith.constant 0 : i32
    return %c0_i32, %c0_i32_0 : i32, i32
  }
  func.func @transform_6(%arg0: i32) -> (i32, i32) {
    %c0_i32 = arith.constant 0 : i32
    %c0_i32_0 = arith.constant 0 : i32
    %c0_i32_1 = arith.constant 0 : i32
    return %c0_i32, %c0_i32_0 : i32, i32
  }
  func.func @transform_7(%arg0: i32) -> (i32, i32) {
    %c0_i32 = arith.constant 0 : i32
    %c0_i32_0 = arith.constant 0 : i32
    return %arg0, %c0_i32 : i32, i32
  }
}

</mosaic_0001>

<llo_original>
// kernel: decoder_forward.1
$region0: #{decoder_forward.1}
  #allocation0 [shape = 'u32[]', space=smem, size = 0x4, offset = 0x4, fixed_abs, tag = 'smem constant byte address 0x4 - core index']
  #allocation1 [shape = 'u32[72,128]{1,0:T(1,128)}', space=vmem, size = 0x9000, scoped, tag = 'internal scratch']
  #allocation2 [shape = 'f32[8,512]{1,0:T(8,128)}', space=vmem, size = 0x4000, scoped, tag = 'scratch operand']
  #allocation3 [shape = 'f32[8,512]{1,0:T(8,128)}', space=vmem, size = 0x4000, scoped, tag = 'scratch operand']
  #allocation4 [shape = 'f32[8,128]{1,0:T(8,128)}', space=vmem, size = 0x1000, scoped, tag = 'scratch operand']
  #allocation5 [shape = 'f32[8,128]{1,0:T(8,128)}', space=vmem, size = 0x1000, scoped, tag = 'scratch operand']
  #allocation6 [shape = 'f32[1,128]{1,0:T(1,128)}', space=vmem, size = 0x200, scoped, tag = 'scratch operand']
  #allocation7 [shape = 'f32[1,128]{1,0:T(1,128)}', space=vmem, size = 0x200, scoped, tag = 'scratch operand']
  #allocation8 [shape = 'f32[1,128]{1,0:T(1,128)}', space=vmem, size = 0x200, scoped, tag = 'scratch operand']
  #allocation9 [shape = 'f32[1,128]{1,0:T(1,128)}', space=vmem, size = 0x200, scoped, tag = 'scratch operand']
  %s0 = inlined_call_operand.vmem [shape: f32[8,128], index: 0, kind: input, shape index: {}]
  %s1 = inlined_call_operand.hbm [shape: f32[2,128,512], index: 1, kind: input, shape index: {}]
  %s2 = inlined_call_operand.hbm [shape: f32[2,128,512], index: 2, kind: input, shape index: {}]
  %s3 = inlined_call_operand.vmem [shape: f32[2,1,512], index: 3, kind: input, shape index: {}]
  %s4 = inlined_call_operand.hbm [shape: f32[128,128], index: 4, kind: input, shape index: {}]
  %s5 = inlined_call_operand.hbm [shape: f32[128,256], index: 5, kind: input, shape index: {}]
  %s6 = inlined_call_operand.vmem [shape: f32[1,384], index: 6, kind: input, shape index: {}]
  %s7 = inlined_call_operand.vmem [shape: f32[8,384], index: 7, kind: output, shape index: {}]
  %s8 = sld [smem:[#allocation0]]
  $region58: #{decoder_forward.1} parent=0
    _
  %s10 = ssub.s32 1, %s8
  %s11 = scalar_select 0, %s10, %s8
  $region1: #{decoder_forward.1} parent=0
    #allocation10 [shape = 'u8[524288]{0}', space=vmem, size = 0x80000, scoped, tag = 'input window, operand 1, single buffered']
    #allocation11 [shape = 's32[1]{0}', space=sflag, size = 0x4, scoped, tag = 'scoped memory for decoder_forward.1']
    #allocation12 [shape = 'u8[524288]{0}', space=vmem, size = 0x80000, scoped, tag = 'input window, operand 2, single buffered']
    #allocation13 [shape = 's32[1]{0}', space=sflag, size = 0x4, scoped, tag = 'scoped memory for decoder_forward.1']
    #allocation14 [shape = 'u8[65536]{0}', space=vmem, size = 0x10000, scoped, tag = 'input window, operand 4, single buffered']
    #allocation15 [shape = 'u8[131072]{0}', space=vmem, size = 0x20000, scoped, tag = 'input window, operand 5, single buffered']
    #allocation16 [shape = 's32[1]{0}', space=sflag, size = 0x4, scoped, tag = 'scoped memory for decoder_forward.1']
    %12 = vsyncpa [#allocation11], 0
    %13 = vsyncpa [#allocation13], 0
    %14 = vsyncpa [#allocation16], 0
    // Predicated region
    $region2: #{decoder_forward.1} parent=1 // pred_check
      _
    $region3: #{decoder_forward.1} parent=1 // pred_check_branch
      %16 = sbr.rel (0) target = $region5
    $region4: #{decoder_forward.1} parent=1 // pred_region
      _
    $region5: #{decoder_forward.1} parent=1 // pred_fallthru
      _
    // Predicated region
    $region6: #{decoder_forward.1} parent=1 // pred_check
      _
    $region7: #{decoder_forward.1} parent=1 // pred_check_branch
      %18 = sbr.rel (0) target = $region9
    $region8: #{decoder_forward.1} parent=1 // pred_region
      %20 = vsyncadd [#allocation11], 0
      %s21 = sshll.u32 %s1, 4
      %s22 = int_to_ptr.hbm [resolvable:$true] %s21
      %s23 = sshll.u32 [#allocation10], 4
      %s24 = int_to_ptr.vmem [resolvable:$true] %s23
      %29 = dma.hbm_to_vmem [thread:$0]  %s22, 16384, %s24, [#allocation11], 512, 512, 32
    $region9: #{decoder_forward.1} parent=1 // pred_fallthru
      _
    // Predicated region
    $region10: #{decoder_forward.1} parent=1 // pred_check
      _
    $region11: #{decoder_forward.1} parent=1 // pred_check_branch
      %31 = sbr.rel (0) target = $region13
    $region12: #{decoder_forward.1} parent=1 // pred_region
      %33 = vsyncadd [#allocation13], 0
      %s34 = sshll.u32 %s2, 4
      %s35 = int_to_ptr.hbm [resolvable:$true] %s34
      %s36 = sshll.u32 [#allocation12], 4
      %s37 = int_to_ptr.vmem [resolvable:$true] %s36
      %42 = dma.hbm_to_vmem [thread:$0]  %s35, 16384, %s37, [#allocation13], 512, 512, 32
    $region13: #{decoder_forward.1} parent=1 // pred_fallthru
      _
    // Predicated region
    $region14: #{decoder_forward.1} parent=1 // pred_check
      _
    $region15: #{decoder_forward.1} parent=1 // pred_check_branch
      %44 = sbr.rel (0) target = $region17
    $region16: #{decoder_forward.1} parent=1 // pred_region
      _
    $region17: #{decoder_forward.1} parent=1 // pred_fallthru
      _
    // Predicated region
    $region18: #{decoder_forward.1} parent=1 // pred_check
      _
    $region19: #{decoder_forward.1} parent=1 // pred_check_branch
      %46 = sbr.rel (0) target = $region21
    $region20: #{decoder_forward.1} parent=1 // pred_region
      %48 = vsyncadd [#allocation13], 0
      %s49 = sshll.u32 %s4, 4
      %s50 = int_to_ptr.hbm [resolvable:$true] %s49
      %s51 = sshll.u32 [#allocation14], 4
      %s52 = int_to_ptr.vmem [resolvable:$true] %s51
      %57 = dma.hbm_to_vmem [thread:$0]  %s50, 2048, %s52, [#allocation13], 128, 128, 8
    $region21: #{decoder_forward.1} parent=1 // pred_fallthru
      _
    // Predicated region
    $region22: #{decoder_forward.1} parent=1 // pred_check
      _
    $region23: #{decoder_forward.1} parent=1 // pred_check_branch
      %59 = sbr.rel (0) target = $region25
    $region24: #{decoder_forward.1} parent=1 // pred_region
      %61 = vsyncadd [#allocation16], 0
      %s62 = sshll.u32 %s5, 4
      %s63 = int_to_ptr.hbm [resolvable:$true] %s62
      %s64 = sshll.u32 [#allocation15], 4
      %s65 = int_to_ptr.vmem [resolvable:$true] %s64
      %70 = dma.hbm_to_vmem [thread:$0]  %s63, 4096, %s65, [#allocation16], 256, 256, 16
    $region25: #{decoder_forward.1} parent=1 // pred_fallthru
      _
    // Predicated region
    $region26: #{decoder_forward.1} parent=1 // pred_check
      _
    $region27: #{decoder_forward.1} parent=1 // pred_check_branch
      %72 = sbr.rel (0) target = $region29
    $region28: #{decoder_forward.1} parent=1 // pred_region
      _
    $region29: #{decoder_forward.1} parent=1 // pred_fallthru
      _
    // Predicated region
    $region30: #{decoder_forward.1} parent=1 // pred_check
      _
    $region31: #{decoder_forward.1} parent=1 // pred_check_branch
      %74 = sbr.rel (0) target = $region33
    $region32: #{decoder_forward.1} parent=1 // pred_region
      %76 = dma.done [#allocation11], 16384
    $region33: #{decoder_forward.1} parent=1 // pred_fallthru
      _
    // Predicated region
    $region34: #{decoder_forward.1} parent=1 // pred_check
      _
    $region35: #{decoder_forward.1} parent=1 // pred_check_branch
      %78 = sbr.rel (0) target = $region37
    $region36: #{decoder_forward.1} parent=1 // pred_region
      %80 = dma.done [#allocation13], 16384
    $region37: #{decoder_forward.1} parent=1 // pred_fallthru
      _
    // Predicated region
    $region38: #{decoder_forward.1} parent=1 // pred_check
      _
    $region39: #{decoder_forward.1} parent=1 // pred_check_branch
      %82 = sbr.rel (0) target = $region41
    $region40: #{decoder_forward.1} parent=1 // pred_region
      %84 = dma.done [#allocation13], 2048
    $region41: #{decoder_forward.1} parent=1 // pred_fallthru
      _
    // Predicated region
    $region42: #{decoder_forward.1} parent=1 // pred_check
      _
    $region43: #{decoder_forward.1} parent=1 // pred_check_branch
      %86 = sbr.rel (0) target = $region45
    $region44: #{decoder_forward.1} parent=1 // pred_region
      %88 = dma.done [#allocation16], 4096
    $region45: #{decoder_forward.1} parent=1 // pred_fallthru
      _
    %p89 = scmp.eq.s32.totalorder 0, 0
    // Predicated region
    $region46: #{decoder_forward.1} parent=1 // pred_check
      %p90 = pneg %p89
    $region47: #{decoder_forward.1} parent=1 // pred_check_branch
      %92 = sbr.rel (%p90) target = $region49
    $region48: #{decoder_forward.1} parent=1 // pred_region
      %93 = vst [vmem:[#allocation6] sm:$0x1] 0.0
      %94 = vst [vmem:[#allocation7] sm:$0x1] 0.0
      %95 = vst [vmem:[#allocation8] sm:$0x1] 0.0
      %96 = vst [vmem:[#allocation9] sm:$0x1] 0.0
    $region49: #{decoder_forward.1} parent=1 // pred_fallthru
      _
    %v97 = vld [vmem:[%s0] sm:$0xff]
    %v98 = vld [vmem:[#allocation10] sm:$0xff]
    %v99 = vld [vmem:[#allocation10 + $0x8] sm:$0xff]
    %v100 = vld [vmem:[#allocation10 + $0x10] sm:$0xff]
    %v101 = vld [vmem:[#allocation10 + $0x18] sm:$0xff]
    %v102 = vld [vmem:[#allocation10 + $0x20] sm:$0xff]
    %v103 = vld [vmem:[#allocation10 + $0x28] sm:$0xff]
    %v104 = vld [vmem:[#allocation10 + $0x30] sm:$0xff]
    %v105 = vld [vmem:[#allocation10 + $0x38] sm:$0xff]
    %v106 = vld [vmem:[#allocation10 + $0x40] sm:$0xff]
    %v107 = vld [vmem:[#allocation10 + $0x48] sm:$0xff]
    %v108 = vld [vmem:[#allocation10 + $0x50] sm:$0xff]
    %v109 = vld [vmem:[#allocation10 + $0x58] sm:$0xff]
    %v110 = vld [vmem:[#allocation10 + $0x60] sm:$0xff]
    %v111 = vld [vmem:[#allocation10 + $0x68] sm:$0xff]
    %v112 = vld [vmem:[#allocation10 + $0x70] sm:$0xff]
    %v113 = vld [vmem:[#allocation10 + $0x78] sm:$0xff]
    %v114 = vld [vmem:[#allocation10 + $0x80] sm:$0xff]
    %v115 = vld [vmem:[#allocation10 + $0x88] sm:$0xff]
    %v116 = vld [vmem:[#allocation10 + $0x90] sm:$0xff]
    %v117 = vld [vmem:[#allocation10 + $0x98] sm:$0xff]
    %v118 = vld [vmem:[#allocation10 + $0xa0] sm:$0xff]
    %v119 = vld [vmem:[#allocation10 + $0xa8] sm:$0xff]
    %v120 = vld [vmem:[#allocation10 + $0xb0] sm:$0xff]
    %v121 = vld [vmem:[#allocation10 + $0xb8] sm:$0xff]
    %v122 = vld [vmem:[#allocation10 + $0xc0] sm:$0xff]
    %v123 = vld [vmem:[#allocation10 + $0xc8] sm:$0xff]
    %v124 = vld [vmem:[#allocation10 + $0xd0] sm:$0xff]
    %v125 = vld [vmem:[#allocation10 + $0xd8] sm:$0xff]
    %v126 = vld [vmem:[#allocation10 + $0xe0] sm:$0xff]
    %v127 = vld [vmem:[#allocation10 + $0xe8] sm:$0xff]
    %v128 = vld [vmem:[#allocation10 + $0xf0] sm:$0xff]
    %v129 = vld [vmem:[#allocation10 + $0xf8] sm:$0xff]
    %v130 = vld [vmem:[#allocation10 + $0x100] sm:$0xff]
    %v131 = vld [vmem:[#allocation10 + $0x108] sm:$0xff]
    %v132 = vld [vmem:[#allocation10 + $0x110] sm:$0xff]
    %v133 = vld [vmem:[#allocation10 + $0x118] sm:$0xff]
    %v134 = vld [vmem:[#allocation10 + $0x120] sm:$0xff]
    %v135 = vld [vmem:[#allocation10 + $0x128] sm:$0xff]
    %v136 = vld [vmem:[#allocation10 + $0x130] sm:$0xff]
    %v137 = vld [vmem:[#allocation10 + $0x138] sm:$0xff]
    %v138 = vld [vmem:[#allocation10 + $0x140] sm:$0xff]
    %v139 = vld [vmem:[#allocation10 + $0x148] sm:$0xff]
    %v140 = vld [vmem:[#allocation10 + $0x150] sm:$0xff]
    %v141 = vld [vmem:[#allocation10 + $0x158] sm:$0xff]
    %v142 = vld [vmem:[#allocation10 + $0x160] sm:$0xff]
    %v143 = vld [vmem:[#allocation10 + $0x168] sm:$0xff]
    %v144 = vld [vmem:[#allocation10 + $0x170] sm:$0xff]
    %v145 = vld [vmem:[#allocation10 + $0x178] sm:$0xff]
    %v146 = vld [vmem:[#allocation10 + $0x180] sm:$0xff]
    %v147 = vld [vmem:[#allocation10 + $0x188] sm:$0xff]
    %v148 = vld [vmem:[#allocation10 + $0x190] sm:$0xff]
    %v149 = vld [vmem:[#allocation10 + $0x198] sm:$0xff]
    %v150 = vld [vmem:[#allocation10 + $0x1a0] sm:$0xff]
    %v151 = vld [vmem:[#allocation10 + $0x1a8] sm:$0xff]
    %v152 = vld [vmem:[#allocation10 + $0x1b0] sm:$0xff]
    %v153 = vld [vmem:[#allocation10 + $0x1b8] sm:$0xff]
    %v154 = vld [vmem:[#allocation10 + $0x1c0] sm:$0xff]
    %v155 = vld [vmem:[#allocation10 + $0x1c8] sm:$0xff]
    %v156 = vld [vmem:[#allocation10 + $0x1d0] sm:$0xff]
    %v157 = vld [vmem:[#allocation10 + $0x1d8] sm:$0xff]
    %v158 = vld [vmem:[#allocation10 + $0x1e0] sm:$0xff]
    %v159 = vld [vmem:[#allocation10 + $0x1e8] sm:$0xff]
    %v160 = vld [vmem:[#allocation10 + $0x1f0] sm:$0xff]
    %v161 = vld [vmem:[#allocation10 + $0x1f8] sm:$0xff]
    %v162 = vld [vmem:[%s3] sm:$0xf]
    %v164 = vperm.slane %v162, 0
    %v165 = vperm.slane %v162, 1
    %v166 = vperm.slane %v162, 2
    %v167 = vperm.slane %v162, 3
    %172 = vmatpush.msra.mxu0 %v158
    %173 = vmatpush.msra.mxu0 %v154
    %174 = vmatpush.msra.mxu0 %v150
    %175 = vmatpush.msra.mxu0 %v146
    %176 = vmatpush.msra.mxu0 %v142
    %177 = vmatpush.msra.mxu0 %v138
    %178 = vmatpush.msra.mxu0 %v134
    %179 = vmatpush.msra.mxu0 %v130
    %180 = vmatpush.msra.mxu0 %v126
    %181 = vmatpush.msra.mxu0 %v122
    %182 = vmatpush.msra.mxu0 %v118
    %183 = vmatpush.msra.mxu0 %v114
    %184 = vmatpush.msra.mxu0 %v110
    %185 = vmatpush.msra.mxu0 %v106
    %186 = vmatpush.msra.mxu0 %v102
    %187 = vmatpush.msra.mxu0 %v98
    %188 = vmatmul.f32.gmra.mxu0 %v97
    %v189 = vpop.f32.mrf.mxu0
    %v190 = vadd.f32 %v164, %v189
    %191 = vdwg.mxu0
    %192 = vmatpush.msra.mxu0 %v159
    %193 = vmatpush.msra.mxu0 %v155
    %194 = vmatpush.msra.mxu0 %v151
    %195 = vmatpush.msra.mxu0 %v147
    %196 = vmatpush.msra.mxu0 %v143
    %197 = vmatpush.msra.mxu0 %v139
    %198 = vmatpush.msra.mxu0 %v135
    %199 = vmatpush.msra.mxu0 %v131
    %200 = vmatpush.msra.mxu0 %v127
    %201 = vmatpush.msra.mxu0 %v123
    %202 = vmatpush.msra.mxu0 %v119
    %203 = vmatpush.msra.mxu0 %v115
    %204 = vmatpush.msra.mxu0 %v111
    %205 = vmatpush.msra.mxu0 %v107
    %206 = vmatpush.msra.mxu0 %v103
    %207 = vmatpush.msra.mxu0 %v99
    %208 = vmatmul.f32.gmra.mxu0 %v97
    %v209 = vpop.f32.mrf.mxu0
    %v210 = vadd.f32 %v165, %v209
    %211 = vdwg.mxu0
    %212 = vmatpush.msra.mxu0 %v160
    %213 = vmatpush.msra.mxu0 %v156
    %214 = vmatpush.msra.mxu0 %v152
    %215 = vmatpush.msra.mxu0 %v148
    %216 = vmatpush.msra.mxu0 %v144
    %217 = vmatpush.msra.mxu0 %v140
    %218 = vmatpush.msra.mxu0 %v136
    %219 = vmatpush.msra.mxu0 %v132
    %220 = vmatpush.msra.mxu0 %v128
    %221 = vmatpush.msra.mxu0 %v124
    %222 = vmatpush.msra.mxu0 %v120
    %223 = vmatpush.msra.mxu0 %v116
    %224 = vmatpush.msra.mxu0 %v112
    %225 = vmatpush.msra.mxu0 %v108
    %226 = vmatpush.msra.mxu0 %v104
    %227 = vmatpush.msra.mxu0 %v100
    %228 = vmatmul.f32.gmra.mxu0 %v97
    %v229 = vpop.f32.mrf.mxu0
    %v230 = vadd.f32 %v166, %v229
    %231 = vdwg.mxu0
    %232 = vmatpush.msra.mxu0 %v161
    %233 = vmatpush.msra.mxu0 %v157
    %234 = vmatpush.msra.mxu0 %v153
    %235 = vmatpush.msra.mxu0 %v149
    %236 = vmatpush.msra.mxu0 %v145
    %237 = vmatpush.msra.mxu0 %v141
    %238 = vmatpush.msra.mxu0 %v137
    %239 = vmatpush.msra.mxu0 %v133
    %240 = vmatpush.msra.mxu0 %v129
    %241 = vmatpush.msra.mxu0 %v125
    %242 = vmatpush.msra.mxu0 %v121
    %243 = vmatpush.msra.mxu0 %v117
    %244 = vmatpush.msra.mxu0 %v113
    %245 = vmatpush.msra.mxu0 %v109
    %246 = vmatpush.msra.mxu0 %v105
    %247 = vmatpush.msra.mxu0 %v101
    %248 = vmatmul.f32.gmra.mxu0 %v97
    %v249 = vpop.f32.mrf.mxu0
    %v250 = vadd.f32 %v167, %v249
    %251 = vdwg.mxu0
    %252 = vst [vmem:[#allocation2] sm:$0xff] %v190
    %253 = vst [vmem:[#allocation2 + $0x8] sm:$0xff] %v210
    %254 = vst [vmem:[#allocation2 + $0x10] sm:$0xff] %v230
    %255 = vst [vmem:[#allocation2 + $0x18] sm:$0xff] %v250
    %s256 = scalar_lea.vmem [#allocation10], 512
    %v257 = vld [vmem:[%s256] sm:$0xff]
    %v258 = vld [vmem:[%s256 + $0x8] sm:$0xff]
    %v259 = vld [vmem:[%s256 + $0x10] sm:$0xff]
    %v260 = vld [vmem:[%s256 + $0x18] sm:$0xff]
    %v261 = vld [vmem:[%s256 + $0x20] sm:$0xff]
    %v262 = vld [vmem:[%s256 + $0x28] sm:$0xff]
    %v263 = vld [vmem:[%s256 + $0x30] sm:$0xff]
    %v264 = vld [vmem:[%s256 + $0x38] sm:$0xff]
    %v265 = vld [vmem:[%s256 + $0x40] sm:$0xff]
    %v266 = vld [vmem:[%s256 + $0x48] sm:$0xff]
    %v267 = vld [vmem:[%s256 + $0x50] sm:$0xff]
    %v268 = vld [vmem:[%s256 + $0x58] sm:$0xff]
    %v269 = vld [vmem:[%s256 + $0x60] sm:$0xff]
    %v270 = vld [vmem:[%s256 + $0x68] sm:$0xff]
    %v271 = vld [vmem:[%s256 + $0x70] sm:$0xff]
    %v272 = vld [vmem:[%s256 + $0x78] sm:$0xff]
    %v273 = vld [vmem:[%s256 + $0x80] sm:$0xff]
    %v274 = vld [vmem:[%s256 + $0x88] sm:$0xff]
    %v275 = vld [vmem:[%s256 + $0x90] sm:$0xff]
    %v276 = vld [vmem:[%s256 + $0x98] sm:$0xff]
    %v277 = vld [vmem:[%s256 + $0xa0] sm:$0xff]
    %v278 = vld [vmem:[%s256 + $0xa8] sm:$0xff]
    %v279 = vld [vmem:[%s256 + $0xb0] sm:$0xff]
    %v280 = vld [vmem:[%s256 + $0xb8] sm:$0xff]
    %v281 = vld [vmem:[%s256 + $0xc0] sm:$0xff]
    %v282 = vld [vmem:[%s256 + $0xc8] sm:$0xff]
    %v283 = vld [vmem:[%s256 + $0xd0] sm:$0xff]
    %v284 = vld [vmem:[%s256 + $0xd8] sm:$0xff]
    %v285 = vld [vmem:[%s256 + $0xe0] sm:$0xff]
    %v286 = vld [vmem:[%s256 + $0xe8] sm:$0xff]
    %v287 = vld [vmem:[%s256 + $0xf0] sm:$0xff]
    %v288 = vld [vmem:[%s256 + $0xf8] sm:$0xff]
    %v289 = vld [vmem:[%s256 + $0x100] sm:$0xff]
    %v290 = vld [vmem:[%s256 + $0x108] sm:$0xff]
    %v291 = vld [vmem:[%s256 + $0x110] sm:$0xff]
    %v292 = vld [vmem:[%s256 + $0x118] sm:$0xff]
    %v293 = vld [vmem:[%s256 + $0x120] sm:$0xff]
    %v294 = vld [vmem:[%s256 + $0x128] sm:$0xff]
    %v295 = vld [vmem:[%s256 + $0x130] sm:$0xff]
    %v296 = vld [vmem:[%s256 + $0x138] sm:$0xff]
    %v297 = vld [vmem:[%s256 + $0x140] sm:$0xff]
    %v298 = vld [vmem:[%s256 + $0x148] sm:$0xff]
    %v299 = vld [vmem:[%s256 + $0x150] sm:$0xff]
    %v300 = vld [vmem:[%s256 + $0x158] sm:$0xff]
    %v301 = vld [vmem:[%s256 + $0x160] sm:$0xff]
    %v302 = vld [vmem:[%s256 + $0x168] sm:$0xff]
    %v303 = vld [vmem:[%s256 + $0x170] sm:$0xff]
    %v304 = vld [vmem:[%s256 + $0x178] sm:$0xff]
    %v305 = vld [vmem:[%s256 + $0x180] sm:$0xff]
    %v306 = vld [vmem:[%s256 + $0x188] sm:$0xff]
    %v307 = vld [vmem:[%s256 + $0x190] sm:$0xff]
    %v308 = vld [vmem:[%s256 + $0x198] sm:$0xff]
    %v309 = vld [vmem:[%s256 + $0x1a0] sm:$0xff]
    %v310 = vld [vmem:[%s256 + $0x1a8] sm:$0xff]
    %v311 = vld [vmem:[%s256 + $0x1b0] sm:$0xff]
    %v312 = vld [vmem:[%s256 + $0x1b8] sm:$0xff]
    %v313 = vld [vmem:[%s256 + $0x1c0] sm:$0xff]
    %v314 = vld [vmem:[%s256 + $0x1c8] sm:$0xff]
    %v315 = vld [vmem:[%s256 + $0x1d0] sm:$0xff]
    %v316 = vld [vmem:[%s256 + $0x1d8] sm:$0xff]
    %v317 = vld [vmem:[%s256 + $0x1e0] sm:$0xff]
    %v318 = vld [vmem:[%s256 + $0x1e8] sm:$0xff]
    %v319 = vld [vmem:[%s256 + $0x1f0] sm:$0xff]
    %v320 = vld [vmem:[%s256 + $0x1f8] sm:$0xff]
    %s321 = scalar_lea.vmem %s3, 4
    %v322 = vld [vmem:[%s321] sm:$0xf]
    %v324 = vperm.slane %v322, 0
    %v325 = vperm.slane %v322, 1
    %v326 = vperm.slane %v322, 2
    %v327 = vperm.slane %v322, 3
    %332 = vmatpush.msra.mxu0 %v317
    %333 = vmatpush.msra.mxu0 %v313
    %334 = vmatpush.msra.mxu0 %v309
    %335 = vmatpush.msra.mxu0 %v305
    %336 = vmatpush.msra.mxu0 %v301
    %337 = vmatpush.msra.mxu0 %v297
    %338 = vmatpush.msra.mxu0 %v293
    %339 = vmatpush.msra.mxu0 %v289
    %340 = vmatpush.msra.mxu0 %v285
    %341 = vmatpush.msra.mxu0 %v281
    %342 = vmatpush.msra.mxu0 %v277
    %343 = vmatpush.msra.mxu0 %v273
    %344 = vmatpush.msra.mxu0 %v269
    %345 = vmatpush.msra.mxu0 %v265
    %346 = vmatpush.msra.mxu0 %v261
    %347 = vmatpush.msra.mxu0 %v257
    %348 = vmatmul.f32.gmra.mxu0 %v97
    %v349 = vpop.f32.mrf.mxu0
    %v350 = vadd.f32 %v324, %v349
    %351 = vdwg.mxu0
    %352 = vmatpush.msra.mxu0 %v318
    %353 = vmatpush.msra.mxu0 %v314
    %354 = vmatpush.msra.mxu0 %v310
    %355 = vmatpush.msra.mxu0 %v306
    %356 = vmatpush.msra.mxu0 %v302
    %357 = vmatpush.msra.mxu0 %v298
    %358 = vmatpush.msra.mxu0 %v294
    %359 = vmatpush.msra.mxu0 %v290
    %360 = vmatpush.msra.mxu0 %v286
    %361 = vmatpush.msra.mxu0 %v282
    %362 = vmatpush.msra.mxu0 %v278
    %363 = vmatpush.msra.mxu0 %v274
    %364 = vmatpush.msra.mxu0 %v270
    %365 = vmatpush.msra.mxu0 %v266
    %366 = vmatpush.msra.mxu0 %v262
    %367 = vmatpush.msra.mxu0 %v258
    %368 = vmatmul.f32.gmra.mxu0 %v97
    %v369 = vpop.f32.mrf.mxu0
    %v370 = vadd.f32 %v325, %v369
    %371 = vdwg.mxu0
    %372 = vmatpush.msra.mxu0 %v319
    %373 = vmatpush.msra.mxu0 %v315
    %374 = vmatpush.msra.mxu0 %v311
    %375 = vmatpush.msra.mxu0 %v307
    %376 = vmatpush.msra.mxu0 %v303
    %377 = vmatpush.msra.mxu0 %v299
    %378 = vmatpush.msra.mxu0 %v295
    %379 = vmatpush.msra.mxu0 %v291
    %380 = vmatpush.msra.mxu0 %v287
    %381 = vmatpush.msra.mxu0 %v283
    %382 = vmatpush.msra.mxu0 %v279
    %383 = vmatpush.msra.mxu0 %v275
    %384 = vmatpush.msra.mxu0 %v271
    %385 = vmatpush.msra.mxu0 %v267
    %386 = vmatpush.msra.mxu0 %v263
    %387 = vmatpush.msra.mxu0 %v259
    %388 = vmatmul.f32.gmra.mxu0 %v97
    %v389 = vpop.f32.mrf.mxu0
    %v390 = vadd.f32 %v326, %v389
    %391 = vdwg.mxu0
    %392 = vmatpush.msra.mxu0 %v320
    %393 = vmatpush.msra.mxu0 %v316
    %394 = vmatpush.msra.mxu0 %v312
    %395 = vmatpush.msra.mxu0 %v308
    %396 = vmatpush.msra.mxu0 %v304
    %397 = vmatpush.msra.mxu0 %v300
    %398 = vmatpush.msra.mxu0 %v296
    %399 = vmatpush.msra.mxu0 %v292
    %400 = vmatpush.msra.mxu0 %v288
    %401 = vmatpush.msra.mxu0 %v284
    %402 = vmatpush.msra.mxu0 %v280
    %403 = vmatpush.msra.mxu0 %v276
    %404 = vmatpush.msra.mxu0 %v272
    %405 = vmatpush.msra.mxu0 %v268
    %406 = vmatpush.msra.mxu0 %v264
    %407 = vmatpush.msra.mxu0 %v260
    %408 = vmatmul.f32.gmra.mxu0 %v97
    %v409 = vpop.f32.mrf.mxu0
    %v410 = vadd.f32 %v327, %v409
    %411 = vdwg.mxu0
    %412 = vst [vmem:[#allocation3] sm:$0xff] %v350
    %413 = vst [vmem:[#allocation3 + $0x8] sm:$0xff] %v370
    %414 = vst [vmem:[#allocation3 + $0x10] sm:$0xff] %v390
    %415 = vst [vmem:[#allocation3 + $0x18] sm:$0xff] %v410
    %v416 = vld [vmem:[#allocation12] sm:$0xff]
    %v417 = vld [vmem:[#allocation12 + $0x8] sm:$0xff]
    %v418 = vld [vmem:[#allocation12 + $0x10] sm:$0xff]
    %v419 = vld [vmem:[#allocation12 + $0x18] sm:$0xff]
    %v420 = vld [vmem:[#allocation12 + $0x20] sm:$0xff]
    %v421 = vld [vmem:[#allocation12 + $0x28] sm:$0xff]
    %v422 = vld [vmem:[#allocation12 + $0x30] sm:$0xff]
    %v423 = vld [vmem:[#allocation12 + $0x38] sm:$0xff]
    %v424 = vld [vmem:[#allocation12 + $0x40] sm:$0xff]
    %v425 = vld [vmem:[#allocation12 + $0x48] sm:$0xff]
    %v426 = vld [vmem:[#allocation12 + $0x50] sm:$0xff]
    %v427 = vld [vmem:[#allocation12 + $0x58] sm:$0xff]
    %v428 = vld [vmem:[#allocation12 + $0x60] sm:$0xff]
    %v429 = vld [vmem:[#allocation12 + $0x68] sm:$0xff]
    %v430 = vld [vmem:[#allocation12 + $0x70] sm:$0xff]
    %v431 = vld [vmem:[#allocation12 + $0x78] sm:$0xff]
    %v432 = vld [vmem:[#allocation12 + $0x80] sm:$0xff]
    %v433 = vld [vmem:[#allocation12 + $0x88] sm:$0xff]
    %v434 = vld [vmem:[#allocation12 + $0x90] sm:$0xff]
    %v435 = vld [vmem:[#allocation12 + $0x98] sm:$0xff]
    %v436 = vld [vmem:[#allocation12 + $0xa0] sm:$0xff]
    %v437 = vld [vmem:[#allocation12 + $0xa8] sm:$0xff]
    %v438 = vld [vmem:[#allocation12 + $0xb0] sm:$0xff]
    %v439 = vld [vmem:[#allocation12 + $0xb8] sm:$0xff]
    %v440 = vld [vmem:[#allocation12 + $0xc0] sm:$0xff]
    %v441 = vld [vmem:[#allocation12 + $0xc8] sm:$0xff]
    %v442 = vld [vmem:[#allocation12 + $0xd0] sm:$0xff]
    %v443 = vld [vmem:[#allocation12 + $0xd8] sm:$0xff]
    %v444 = vld [vmem:[#allocation12 + $0xe0] sm:$0xff]
    %v445 = vld [vmem:[#allocation12 + $0xe8] sm:$0xff]
    %v446 = vld [vmem:[#allocation12 + $0xf0] sm:$0xff]
    %v447 = vld [vmem:[#allocation12 + $0xf8] sm:$0xff]
    %v448 = vld [vmem:[#allocation12 + $0x100] sm:$0xff]
    %v449 = vld [vmem:[#allocation12 + $0x108] sm:$0xff]
    %v450 = vld [vmem:[#allocation12 + $0x110] sm:$0xff]
    %v451 = vld [vmem:[#allocation12 + $0x118] sm:$0xff]
    %v452 = vld [vmem:[#allocation12 + $0x120] sm:$0xff]
    %v453 = vld [vmem:[#allocation12 + $0x128] sm:$0xff]
    %v454 = vld [vmem:[#allocation12 + $0x130] sm:$0xff]
    %v455 = vld [vmem:[#allocation12 + $0x138] sm:$0xff]
    %v456 = vld [vmem:[#allocation12 + $0x140] sm:$0xff]
    %v457 = vld [vmem:[#allocation12 + $0x148] sm:$0xff]
    %v458 = vld [vmem:[#allocation12 + $0x150] sm:$0xff]
    %v459 = vld [vmem:[#allocation12 + $0x158] sm:$0xff]
    %v460 = vld [vmem:[#allocation12 + $0x160] sm:$0xff]
    %v461 = vld [vmem:[#allocation12 + $0x168] sm:$0xff]
    %v462 = vld [vmem:[#allocation12 + $0x170] sm:$0xff]
    %v463 = vld [vmem:[#allocation12 + $0x178] sm:$0xff]
    %v464 = vld [vmem:[#allocation12 + $0x180] sm:$0xff]
    %v465 = vld [vmem:[#allocation12 + $0x188] sm:$0xff]
    %v466 = vld [vmem:[#allocation12 + $0x190] sm:$0xff]
    %v467 = vld [vmem:[#allocation12 + $0x198] sm:$0xff]
    %v468 = vld [vmem:[#allocation12 + $0x1a0] sm:$0xff]
    %v469 = vld [vmem:[#allocation12 + $0x1a8] sm:$0xff]
    %v470 = vld [vmem:[#allocation12 + $0x1b0] sm:$0xff]
    %v471 = vld [vmem:[#allocation12 + $0x1b8] sm:$0xff]
    %v472 = vld [vmem:[#allocation12 + $0x1c0] sm:$0xff]
    %v473 = vld [vmem:[#allocation12 + $0x1c8] sm:$0xff]
    %v474 = vld [vmem:[#allocation12 + $0x1d0] sm:$0xff]
    %v475 = vld [vmem:[#allocation12 + $0x1d8] sm:$0xff]
    %v476 = vld [vmem:[#allocation12 + $0x1e0] sm:$0xff]
    %v477 = vld [vmem:[#allocation12 + $0x1e8] sm:$0xff]
    %v478 = vld [vmem:[#allocation12 + $0x1f0] sm:$0xff]
    %v479 = vld [vmem:[#allocation12 + $0x1f8] sm:$0xff]
    %s480 = scalar_lea.vmem [#allocation12], 512
    %v481 = vld [vmem:[%s480] sm:$0xff]
    %v482 = vld [vmem:[%s480 + $0x8] sm:$0xff]
    %v483 = vld [vmem:[%s480 + $0x10] sm:$0xff]
    %v484 = vld [vmem:[%s480 + $0x18] sm:$0xff]
    %v485 = vld [vmem:[%s480 + $0x20] sm:$0xff]
    %v486 = vld [vmem:[%s480 + $0x28] sm:$0xff]
    %v487 = vld [vmem:[%s480 + $0x30] sm:$0xff]
    %v488 = vld [vmem:[%s480 + $0x38] sm:$0xff]
    %v489 = vld [vmem:[%s480 + $0x40] sm:$0xff]
    %v490 = vld [vmem:[%s480 + $0x48] sm:$0xff]
    %v491 = vld [vmem:[%s480 + $0x50] sm:$0xff]
    %v492 = vld [vmem:[%s480 + $0x58] sm:$0xff]
    %v493 = vld [vmem:[%s480 + $0x60] sm:$0xff]
    %v494 = vld [vmem:[%s480 + $0x68] sm:$0xff]
    %v495 = vld [vmem:[%s480 + $0x70] sm:$0xff]
    %v496 = vld [vmem:[%s480 + $0x78] sm:$0xff]
    %v497 = vld [vmem:[%s480 + $0x80] sm:$0xff]
    %v498 = vld [vmem:[%s480 + $0x88] sm:$0xff]
    %v499 = vld [vmem:[%s480 + $0x90] sm:$0xff]
    %v500 = vld [vmem:[%s480 + $0x98] sm:$0xff]
    %v501 = vld [vmem:[%s480 + $0xa0] sm:$0xff]
    %v502 = vld [vmem:[%s480 + $0xa8] sm:$0xff]
    %v503 = vld [vmem:[%s480 + $0xb0] sm:$0xff]
    %v504 = vld [vmem:[%s480 + $0xb8] sm:$0xff]
    %v505 = vld [vmem:[%s480 + $0xc0] sm:$0xff]
    %v506 = vld [vmem:[%s480 + $0xc8] sm:$0xff]
    %v507 = vld [vmem:[%s480 + $0xd0] sm:$0xff]
    %v508 = vld [vmem:[%s480 + $0xd8] sm:$0xff]
    %v509 = vld [vmem:[%s480 + $0xe0] sm:$0xff]
    %v510 = vld [vmem:[%s480 + $0xe8] sm:$0xff]
    %v511 = vld [vmem:[%s480 + $0xf0] sm:$0xff]
    %v512 = vld [vmem:[%s480 + $0xf8] sm:$0xff]
    %v513 = vld [vmem:[%s480 + $0x100] sm:$0xff]
    %v514 = vld [vmem:[%s480 + $0x108] sm:$0xff]
    %v515 = vld [vmem:[%s480 + $0x110] sm:$0xff]
    %v516 = vld [vmem:[%s480 + $0x118] sm:$0xff]
    %v517 = vld [vmem:[%s480 + $0x120] sm:$0xff]
    %v518 = vld [vmem:[%s480 + $0x128] sm:$0xff]
    %v519 = vld [vmem:[%s480 + $0x130] sm:$0xff]
    %v520 = vld [vmem:[%s480 + $0x138] sm:$0xff]
    %v521 = vld [vmem:[%s480 + $0x140] sm:$0xff]
    %v522 = vld [vmem:[%s480 + $0x148] sm:$0xff]
    %v523 = vld [vmem:[%s480 + $0x150] sm:$0xff]
    %v524 = vld [vmem:[%s480 + $0x158] sm:$0xff]
    %v525 = vld [vmem:[%s480 + $0x160] sm:$0xff]
    %v526 = vld [vmem:[%s480 + $0x168] sm:$0xff]
    %v527 = vld [vmem:[%s480 + $0x170] sm:$0xff]
    %v528 = vld [vmem:[%s480 + $0x178] sm:$0xff]
    %v529 = vld [vmem:[%s480 + $0x180] sm:$0xff]
    %v530 = vld [vmem:[%s480 + $0x188] sm:$0xff]
    %v531 = vld [vmem:[%s480 + $0x190] sm:$0xff]
    %v532 = vld [vmem:[%s480 + $0x198] sm:$0xff]
    %v533 = vld [vmem:[%s480 + $0x1a0] sm:$0xff]
    %v534 = vld [vmem:[%s480 + $0x1a8] sm:$0xff]
    %v535 = vld [vmem:[%s480 + $0x1b0] sm:$0xff]
    %v536 = vld [vmem:[%s480 + $0x1b8] sm:$0xff]
    %v537 = vld [vmem:[%s480 + $0x1c0] sm:$0xff]
    %v538 = vld [vmem:[%s480 + $0x1c8] sm:$0xff]
    %v539 = vld [vmem:[%s480 + $0x1d0] sm:$0xff]
    %v540 = vld [vmem:[%s480 + $0x1d8] sm:$0xff]
    %v541 = vld [vmem:[%s480 + $0x1e0] sm:$0xff]
    %v542 = vld [vmem:[%s480 + $0x1e8] sm:$0xff]
    %v543 = vld [vmem:[%s480 + $0x1f0] sm:$0xff]
    %v544 = vld [vmem:[%s480 + $0x1f8] sm:$0xff]
    %v545 = vld [vmem:[#allocation6] sm:$0x1]
    %v546 = vld [vmem:[#allocation7] sm:$0x1]
    %v547 = vld [vmem:[#allocation8] sm:$0x1]
    %v548 = vld [vmem:[#allocation9] sm:$0x1]
    %v549 = vld [vmem:[#allocation2] ss:$8 sm:$0xf]
    %550 = vmatpush.msra.mxu0 %v476
    %551 = vmatpush.msra.mxu0 %v472
    %552 = vmatpush.msra.mxu0 %v468
    %553 = vmatpush.msra.mxu0 %v464
    %554 = vmatpush.msra.mxu0 %v460
    %555 = vmatpush.msra.mxu0 %v456
    %556 = vmatpush.msra.mxu0 %v452
    %557 = vmatpush.msra.mxu0 %v448
    %558 = vmatpush.msra.mxu0 %v444
    %559 = vmatpush.msra.mxu0 %v440
    %560 = vmatpush.msra.mxu0 %v436
    %561 = vmatpush.msra.mxu0 %v432
    %562 = vmatpush.msra.mxu0 %v428
    %563 = vmatpush.msra.mxu0 %v424
    %564 = vmatpush.msra.mxu0 %v420
    %565 = vmatpush.msra.mxu0 %v416
    %566 = vmatmul.f32.gmra.mxu0 %v545
    %v567 = vpop.f32.mrf.mxu0
    %v568 = vadd.f32 0.0, %v567
    %569 = vdwg.mxu0
    %570 = vmatpush.msra.mxu0 %v477
    %571 = vmatpush.msra.mxu0 %v473
    %572 = vmatpush.msra.mxu0 %v469
    %573 = vmatpush.msra.mxu0 %v465
    %574 = vmatpush.msra.mxu0 %v461
    %575 = vmatpush.msra.mxu0 %v457
    %576 = vmatpush.msra.mxu0 %v453
    %577 = vmatpush.msra.mxu0 %v449
    %578 = vmatpush.msra.mxu0 %v445
    %579 = vmatpush.msra.mxu0 %v441
    %580 = vmatpush.msra.mxu0 %v437
    %581 = vmatpush.msra.mxu0 %v433
    %582 = vmatpush.msra.mxu0 %v429
    %583 = vmatpush.msra.mxu0 %v425
    %584 = vmatpush.msra.mxu0 %v421
    %585 = vmatpush.msra.mxu0 %v417
    %586 = vmatmul.f32.gmra.mxu0 %v545
    %v587 = vpop.f32.mrf.mxu0
    %v588 = vadd.f32 0.0, %v587
    %589 = vdwg.mxu0
    %590 = vmatpush.msra.mxu0 %v478
    %591 = vmatpush.msra.mxu0 %v474
    %592 = vmatpush.msra.mxu0 %v470
    %593 = vmatpush.msra.mxu0 %v466
    %594 = vmatpush.msra.mxu0 %v462
    %595 = vmatpush.msra.mxu0 %v458
    %596 = vmatpush.msra.mxu0 %v454
    %597 = vmatpush.msra.mxu0 %v450
    %598 = vmatpush.msra.mxu0 %v446
    %599 = vmatpush.msra.mxu0 %v442
    %600 = vmatpush.msra.mxu0 %v438
    %601 = vmatpush.msra.mxu0 %v434
    %602 = vmatpush.msra.mxu0 %v430
    %603 = vmatpush.msra.mxu0 %v426
    %604 = vmatpush.msra.mxu0 %v422
    %605 = vmatpush.msra.mxu0 %v418
    %606 = vmatmul.f32.gmra.mxu0 %v545
    %v607 = vpop.f32.mrf.mxu0
    %v608 = vadd.f32 0.0, %v607
    %609 = vdwg.mxu0
    %610 = vmatpush.msra.mxu0 %v479
    %611 = vmatpush.msra.mxu0 %v475
    %612 = vmatpush.msra.mxu0 %v471
    %613 = vmatpush.msra.mxu0 %v467
    %614 = vmatpush.msra.mxu0 %v463
    %615 = vmatpush.msra.mxu0 %v459
    %616 = vmatpush.msra.mxu0 %v455
    %617 = vmatpush.msra.mxu0 %v451
    %618 = vmatpush.msra.mxu0 %v447
    %619 = vmatpush.msra.mxu0 %v443
    %620 = vmatpush.msra.mxu0 %v439
    %621 = vmatpush.msra.mxu0 %v435
    %622 = vmatpush.msra.mxu0 %v431
    %623 = vmatpush.msra.mxu0 %v427
    %624 = vmatpush.msra.mxu0 %v423
    %625 = vmatpush.msra.mxu0 %v419
    %626 = vmatmul.f32.gmra.mxu0 %v545
    %v627 = vpop.f32.mrf.mxu0
    %v628 = vadd.f32 0.0, %v627
    %629 = vdwg.mxu0
    %v634 = vrot.slane %v588, 7
    %v635 = vrot.slane %v608, 6
    %v636 = vrot.slane %v628, 5
    %vm637 = vcmask 1040384
    %v638 = vsel %vm637, %v568, %v634
    %vm639 = vcmask 1042434
    %v640 = vsel %vm639, %v635, %v636
    %vm641 = vcmask 1041408
    %v642 = vsel %vm641, %v638, %v640
    %v644 = vadd.f32 %v549, %v642
    %v645 = vld [vmem:[#allocation3] ss:$8 sm:$0xf]
    %646 = vmatpush.msra.mxu0 %v541
    %647 = vmatpush.msra.mxu0 %v537
    %648 = vmatpush.msra.mxu0 %v533
    %649 = vmatpush.msra.mxu0 %v529
    %650 = vmatpush.msra.mxu0 %v525
    %651 = vmatpush.msra.mxu0 %v521
    %652 = vmatpush.msra.mxu0 %v517
    %653 = vmatpush.msra.mxu0 %v513
    %654 = vmatpush.msra.mxu0 %v509
    %655 = vmatpush.msra.mxu0 %v505
    %656 = vmatpush.msra.mxu0 %v501
    %657 = vmatpush.msra.mxu0 %v497
    %658 = vmatpush.msra.mxu0 %v493
    %659 = vmatpush.msra.mxu0 %v489
    %660 = vmatpush.msra.mxu0 %v485
    %661 = vmatpush.msra.mxu0 %v481
    %662 = vmatmul.f32.gmra.mxu0 %v547
    %v663 = vpop.f32.mrf.mxu0
    %v664 = vadd.f32 0.0, %v663
    %665 = vdwg.mxu0
    %666 = vmatpush.msra.mxu0 %v542
    %667 = vmatpush.msra.mxu0 %v538
    %668 = vmatpush.msra.mxu0 %v534
    %669 = vmatpush.msra.mxu0 %v530
    %670 = vmatpush.msra.mxu0 %v526
    %671 = vmatpush.msra.mxu0 %v522
    %672 = vmatpush.msra.mxu0 %v518
    %673 = vmatpush.msra.mxu0 %v514
    %674 = vmatpush.msra.mxu0 %v510
    %675 = vmatpush.msra.mxu0 %v506
    %676 = vmatpush.msra.mxu0 %v502
    %677 = vmatpush.msra.mxu0 %v498
    %678 = vmatpush.msra.mxu0 %v494
    %679 = vmatpush.msra.mxu0 %v490
    %680 = vmatpush.msra.mxu0 %v486
    %681 = vmatpush.msra.mxu0 %v482
    %682 = vmatmul.f32.gmra.mxu0 %v547
    %v683 = vpop.f32.mrf.mxu0
    %v684 = vadd.f32 0.0, %v683
    %685 = vdwg.mxu0
    %686 = vmatpush.msra.mxu0 %v543
    %687 = vmatpush.msra.mxu0 %v539
    %688 = vmatpush.msra.mxu0 %v535
    %689 = vmatpush.msra.mxu0 %v531
    %690 = vmatpush.msra.mxu0 %v527
    %691 = vmatpush.msra.mxu0 %v523
    %692 = vmatpush.msra.mxu0 %v519
    %693 = vmatpush.msra.mxu0 %v515
    %694 = vmatpush.msra.mxu0 %v511
    %695 = vmatpush.msra.mxu0 %v507
    %696 = vmatpush.msra.mxu0 %v503
    %697 = vmatpush.msra.mxu0 %v499
    %698 = vmatpush.msra.mxu0 %v495
    %699 = vmatpush.msra.mxu0 %v491
    %700 = vmatpush.msra.mxu0 %v487
    %701 = vmatpush.msra.mxu0 %v483
    %702 = vmatmul.f32.gmra.mxu0 %v547
    %v703 = vpop.f32.mrf.mxu0
    %v704 = vadd.f32 0.0, %v703
    %705 = vdwg.mxu0
    %706 = vmatpush.msra.mxu0 %v544
    %707 = vmatpush.msra.mxu0 %v540
    %708 = vmatpush.msra.mxu0 %v536
    %709 = vmatpush.msra.mxu0 %v532
    %710 = vmatpush.msra.mxu0 %v528
    %711 = vmatpush.msra.mxu0 %v524
    %712 = vmatpush.msra.mxu0 %v520
    %713 = vmatpush.msra.mxu0 %v516
    %714 = vmatpush.msra.mxu0 %v512
    %715 = vmatpush.msra.mxu0 %v508
    %716 = vmatpush.msra.mxu0 %v504
    %717 = vmatpush.msra.mxu0 %v500
    %718 = vmatpush.msra.mxu0 %v496
    %719 = vmatpush.msra.mxu0 %v492
    %720 = vmatpush.msra.mxu0 %v488
    %721 = vmatpush.msra.mxu0 %v484
    %722 = vmatmul.f32.gmra.mxu0 %v547
    %v723 = vpop.f32.mrf.mxu0
    %v724 = vadd.f32 0.0, %v723
    %725 = vdwg.mxu0
    %v730 = vrot.slane %v684, 7
    %v731 = vrot.slane %v704, 6
    %v732 = vrot.slane %v724, 5
    %v733 = vsel %vm637, %v664, %v730
    %v734 = vsel %vm639, %v731, %v732
    %v735 = vsel %vm641, %v733, %v734
    %v737 = vadd.f32 %v645, %v735
    %v738 = vmul.f32 %v644, 0.5
    %v739 = vtanh.pop %v738
    %v740 = vmul.f32 %v739, 0.5
    %v741 = vadd.f32 %v740, 0.5
    %v743 = vrot.slane %v644, 1
    %v745 = vmul.f32 %v743, 0.5
    %v746 = vtanh.pop %v745
    %v747 = vmul.f32 %v746, 0.5
    %v748 = vadd.f32 %v747, 0.5
    %v749 = vrot.slane %v644, 2
    %v751 = vtanh.pop %v749
    %v752 = vrot.slane %v644, 3
    %v754 = vmul.f32 %v752, 0.5
    %v755 = vtanh.pop %v754
    %v756 = vmul.f32 %v755, 0.5
    %v757 = vadd.f32 %v756, 0.5
    %v758 = vmul.f32 %v748, %v546
    %v759 = vmul.f32 %v741, %v751
    %v760 = vadd.f32 %v758, %v759
    %v761 = vtanh.pop %v760
    %v762 = vmul.f32 %v757, %v761
    %v763 = vmul.f32 %v737, 0.5
    %v764 = vtanh.pop %v763
    %v765 = vmul.f32 %v764, 0.5
    %v766 = vadd.f32 %v765, 0.5
    %v768 = vrot.slane %v737, 1
    %v770 = vmul.f32 %v768, 0.5
    %v771 = vtanh.pop %v770
    %v772 = vmul.f32 %v771, 0.5
    %v773 = vadd.f32 %v772, 0.5
    %v774 = vrot.slane %v737, 2
    %v776 = vtanh.pop %v774
    %v777 = vrot.slane %v737, 3
    %v779 = vmul.f32 %v777, 0.5
    %v780 = vtanh.pop %v779
    %v781 = vmul.f32 %v780, 0.5
    %v782 = vadd.f32 %v781, 0.5
    %v783 = vmul.f32 %v773, %v548
    %v784 = vmul.f32 %v766, %v776
    %v785 = vadd.f32 %v783, %v784
    %v786 = vtanh.pop %v785
    %v787 = vmul.f32 %v782, %v786
    %788 = vst [vmem:[#allocation4] sm:$0x1] %v762
    %789 = vst [vmem:[#allocation5] sm:$0x1] %v787
    %s790 = scalar_lea.vmem [#allocation2], 1
    %v791 = vld [vmem:[%s790] ss:$8 sm:$0xf]
    %792 = vmatpush.msra.mxu0 %v476
    %793 = vmatpush.msra.mxu0 %v472
    %794 = vmatpush.msra.mxu0 %v468
    %795 = vmatpush.msra.mxu0 %v464
    %796 = vmatpush.msra.mxu0 %v460
    %797 = vmatpush.msra.mxu0 %v456
    %798 = vmatpush.msra.mxu0 %v452
    %799 = vmatpush.msra.mxu0 %v448
    %800 = vmatpush.msra.mxu0 %v444
    %801 = vmatpush.msra.mxu0 %v440
    %802 = vmatpush.msra.mxu0 %v436
    %803 = vmatpush.msra.mxu0 %v432
    %804 = vmatpush.msra.mxu0 %v428
    %805 = vmatpush.msra.mxu0 %v424
    %806 = vmatpush.msra.mxu0 %v420
    %807 = vmatpush.msra.mxu0 %v416
    %808 = vmatmul.f32.gmra.mxu0 %v762
    %v809 = vpop.f32.mrf.mxu0
    %v810 = vadd.f32 0.0, %v809
    %811 = vdwg.mxu0
    %812 = vmatpush.msra.mxu0 %v477
    %813 = vmatpush.msra.mxu0 %v473
    %814 = vmatpush.msra.mxu0 %v469
    %815 = vmatpush.msra.mxu0 %v465
    %816 = vmatpush.msra.mxu0 %v461
    %817 = vmatpush.msra.mxu0 %v457
    %818 = vmatpush.msra.mxu0 %v453
    %819 = vmatpush.msra.mxu0 %v449
    %820 = vmatpush.msra.mxu0 %v445
    %821 = vmatpush.msra.mxu0 %v441
    %822 = vmatpush.msra.mxu0 %v437
    %823 = vmatpush.msra.mxu0 %v433
    %824 = vmatpush.msra.mxu0 %v429
    %825 = vmatpush.msra.mxu0 %v425
    %826 = vmatpush.msra.mxu0 %v421
    %827 = vmatpush.msra.mxu0 %v417
    %828 = vmatmul.f32.gmra.mxu0 %v762
    %v829 = vpop.f32.mrf.mxu0
    %v830 = vadd.f32 0.0, %v829
    %831 = vdwg.mxu0
    %832 = vmatpush.msra.mxu0 %v478
    %833 = vmatpush.msra.mxu0 %v474
    %834 = vmatpush.msra.mxu0 %v470
    %835 = vmatpush.msra.mxu0 %v466
    %836 = vmatpush.msra.mxu0 %v462
    %837 = vmatpush.msra.mxu0 %v458
    %838 = vmatpush.msra.mxu0 %v454
    %839 = vmatpush.msra.mxu0 %v450
    %840 = vmatpush.msra.mxu0 %v446
    %841 = vmatpush.msra.mxu0 %v442
    %842 = vmatpush.msra.mxu0 %v438
    %843 = vmatpush.msra.mxu0 %v434
    %844 = vmatpush.msra.mxu0 %v430
    %845 = vmatpush.msra.mxu0 %v426
    %846 = vmatpush.msra.mxu0 %v422
    %847 = vmatpush.msra.mxu0 %v418
    %848 = vmatmul.f32.gmra.mxu0 %v762
    %v849 = vpop.f32.mrf.mxu0
    %v850 = vadd.f32 0.0, %v849
    %851 = vdwg.mxu0
    %852 = vmatpush.msra.mxu0 %v479
    %853 = vmatpush.msra.mxu0 %v475
    %854 = vmatpush.msra.mxu0 %v471
    %855 = vmatpush.msra.mxu0 %v467
    %856 = vmatpush.msra.mxu0 %v463
    %857 = vmatpush.msra.mxu0 %v459
    %858 = vmatpush.msra.mxu0 %v455
    %859 = vmatpush.msra.mxu0 %v451
    %860 = vmatpush.msra.mxu0 %v447
    %861 = vmatpush.msra.mxu0 %v443
    %862 = vmatpush.msra.mxu0 %v439
    %863 = vmatpush.msra.mxu0 %v435
    %864 = vmatpush.msra.mxu0 %v431
    %865 = vmatpush.msra.mxu0 %v427
    %866 = vmatpush.msra.mxu0 %v423
    %867 = vmatpush.msra.mxu0 %v419
    %868 = vmatmul.f32.gmra.mxu0 %v762
    %v869 = vpop.f32.mrf.mxu0
    %v870 = vadd.f32 0.0, %v869
    %871 = vdwg.mxu0
    %v876 = vrot.slane %v830, 7
    %v877 = vrot.slane %v850, 6
    %v878 = vrot.slane %v870, 5
    %v879 = vsel %vm637, %v810, %v876
    %v880 = vsel %vm639, %v877, %v878
    %v881 = vsel %vm641, %v879, %v880
    %v883 = vadd.f32 %v791, %v881
    %s884 = scalar_lea.vmem [#allocation3], 1
    %v885 = vld [vmem:[%s884] ss:$8 sm:$0xf]
    %886 = vmatpush.msra.mxu0 %v541
    %887 = vmatpush.msra.mxu0 %v537
    %888 = vmatpush.msra.mxu0 %v533
    %889 = vmatpush.msra.mxu0 %v529
    %890 = vmatpush.msra.mxu0 %v525
    %891 = vmatpush.msra.mxu0 %v521
    %892 = vmatpush.msra.mxu0 %v517
    %893 = vmatpush.msra.mxu0 %v513
    %894 = vmatpush.msra.mxu0 %v509
    %895 = vmatpush.msra.mxu0 %v505
    %896 = vmatpush.msra.mxu0 %v501
    %897 = vmatpush.msra.mxu0 %v497
    %898 = vmatpush.msra.mxu0 %v493
    %899 = vmatpush.msra.mxu0 %v489
    %900 = vmatpush.msra.mxu0 %v485
    %901 = vmatpush.msra.mxu0 %v481
    %902 = vmatmul.f32.gmra.mxu0 %v787
    %v903 = vpop.f32.mrf.mxu0
    %v904 = vadd.f32 0.0, %v903
    %905 = vdwg.mxu0
    %906 = vmatpush.msra.mxu0 %v542
    %907 = vmatpush.msra.mxu0 %v538
    %908 = vmatpush.msra.mxu0 %v534
    %909 = vmatpush.msra.mxu0 %v530
    %910 = vmatpush.msra.mxu0 %v526
    %911 = vmatpush.msra.mxu0 %v522
    %912 = vmatpush.msra.mxu0 %v518
    %913 = vmatpush.msra.mxu0 %v514
    %914 = vmatpush.msra.mxu0 %v510
    %915 = vmatpush.msra.mxu0 %v506
    %916 = vmatpush.msra.mxu0 %v502
    %917 = vmatpush.msra.mxu0 %v498
    %918 = vmatpush.msra.mxu0 %v494
    %919 = vmatpush.msra.mxu0 %v490
    %920 = vmatpush.msra.mxu0 %v486
    %921 = vmatpush.msra.mxu0 %v482
    %922 = vmatmul.f32.gmra.mxu0 %v787
    %v923 = vpop.f32.mrf.mxu0
    %v924 = vadd.f32 0.0, %v923
    %925 = vdwg.mxu0
    %926 = vmatpush.msra.mxu0 %v543
    %927 = vmatpush.msra.mxu0 %v539
    %928 = vmatpush.msra.mxu0 %v535
    %929 = vmatpush.msra.mxu0 %v531
    %930 = vmatpush.msra.mxu0 %v527
    %931 = vmatpush.msra.mxu0 %v523
    %932 = vmatpush.msra.mxu0 %v519
    %933 = vmatpush.msra.mxu0 %v515
    %934 = vmatpush.msra.mxu0 %v511
    %935 = vmatpush.msra.mxu0 %v507
    %936 = vmatpush.msra.mxu0 %v503
    %937 = vmatpush.msra.mxu0 %v499
    %938 = vmatpush.msra.mxu0 %v495
    %939 = vmatpush.msra.mxu0 %v491
    %940 = vmatpush.msra.mxu0 %v487
    %941 = vmatpush.msra.mxu0 %v483
    %942 = vmatmul.f32.gmra.mxu0 %v787
    %v943 = vpop.f32.mrf.mxu0
    %v944 = vadd.f32 0.0, %v943
    %945 = vdwg.mxu0
    %946 = vmatpush.msra.mxu0 %v544
    %947 = vmatpush.msra.mxu0 %v540
    %948 = vmatpush.msra.mxu0 %v536
    %949 = vmatpush.msra.mxu0 %v532
    %950 = vmatpush.msra.mxu0 %v528
    %951 = vmatpush.msra.mxu0 %v524
    %952 = vmatpush.msra.mxu0 %v520
    %953 = vmatpush.msra.mxu0 %v516
    %954 = vmatpush.msra.mxu0 %v512
    %955 = vmatpush.msra.mxu0 %v508
    %956 = vmatpush.msra.mxu0 %v504
    %957 = vmatpush.msra.mxu0 %v500
    %958 = vmatpush.msra.mxu0 %v496
    %959 = vmatpush.msra.mxu0 %v492
    %960 = vmatpush.msra.mxu0 %v488
    %961 = vmatpush.msra.mxu0 %v484
    %962 = vmatmul.f32.gmra.mxu0 %v787
    %v963 = vpop.f32.mrf.mxu0
    %v964 = vadd.f32 0.0, %v963
    %965 = vdwg.mxu0
    %v970 = vrot.slane %v924, 7
    %v971 = vrot.slane %v944, 6
    %v972 = vrot.slane %v964, 5
    %v973 = vsel %vm637, %v904, %v970
    %v974 = vsel %vm639, %v971, %v972
    %v975 = vsel %vm641, %v973, %v974
    %v977 = vadd.f32 %v885, %v975
    %v978 = vmul.f32 %v883, 0.5
    %v979 = vtanh.pop %v978
    %v980 = vmul.f32 %v979, 0.5
    %v981 = vadd.f32 %v980, 0.5
    %v983 = vrot.slane %v883, 1
    %v985 = vmul.f32 %v983, 0.5
    %v986 = vtanh.pop %v985
    %v987 = vmul.f32 %v986, 0.5
    %v988 = vadd.f32 %v987, 0.5
    %v989 = vrot.slane %v883, 2
    %v991 = vtanh.pop %v989
    %v992 = vrot.slane %v883, 3
    %v994 = vmul.f32 %v992, 0.5
    %v995 = vtanh.pop %v994
    %v996 = vmul.f32 %v995, 0.5
    %v997 = vadd.f32 %v996, 0.5
    %v998 = vmul.f32 %v988, %v760
    %v999 = vmul.f32 %v981, %v991
    %v1000 = vadd.f32 %v998, %v999
    %v1001 = vtanh.pop %v1000
    %v1002 = vmul.f32 %v997, %v1001
    %v1003 = vmul.f32 %v977, 0.5
    %v1004 = vtanh.pop %v1003
    %v1005 = vmul.f32 %v1004, 0.5
    %v1006 = vadd.f32 %v1005, 0.5
    %v1008 = vrot.slane %v977, 1
    %v1010 = vmul.f32 %v1008, 0.5
    %v1011 = vtanh.pop %v1010
    %v1012 = vmul.f32 %v1011, 0.5
    %v1013 = vadd.f32 %v1012, 0.5
    %v1014 = vrot.slane %v977, 2
    %v1016 = vtanh.pop %v1014
    %v1017 = vrot.slane %v977, 3
    %v1019 = vmul.f32 %v1017, 0.5
    %v1020 = vtanh.pop %v1019
    %v1021 = vmul.f32 %v1020, 0.5
    %v1022 = vadd.f32 %v1021, 0.5
    %v1023 = vmul.f32 %v1013, %v785
    %v1024 = vmul.f32 %v1006, %v1016
    %v1025 = vadd.f32 %v1023, %v1024
    %v1026 = vtanh.pop %v1025
    %v1027 = vmul.f32 %v1022, %v1026
    %1028 = vst [vmem:[#allocation4 + $0x1] sm:$0x1] %v1002
    %1029 = vst [vmem:[#allocation5 + $0x1] sm:$0x1] %v1027
    %s1030 = scalar_lea.vmem [#allocation2], 2
    %v1031 = vld [vmem:[%s1030] ss:$8 sm:$0xf]
    %1032 = vmatpush.msra.mxu0 %v476
    %1033 = vmatpush.msra.mxu0 %v472
    %1034 = vmatpush.msra.mxu0 %v468
    %1035 = vmatpush.msra.mxu0 %v464
    %1036 = vmatpush.msra.mxu0 %v460
    %1037 = vmatpush.msra.mxu0 %v456
    %1038 = vmatpush.msra.mxu0 %v452
    %1039 = vmatpush.msra.mxu0 %v448
    %1040 = vmatpush.msra.mxu0 %v444
    %1041 = vmatpush.msra.mxu0 %v440
    %1042 = vmatpush.msra.mxu0 %v436
    %1043 = vmatpush.msra.mxu0 %v432
    %1044 = vmatpush.msra.mxu0 %v428
    %1045 = vmatpush.msra.mxu0 %v424
    %1046 = vmatpush.msra.mxu0 %v420
    %1047 = vmatpush.msra.mxu0 %v416
    %1048 = vmatmul.f32.gmra.mxu0 %v1002
    %v1049 = vpop.f32.mrf.mxu0
    %v1050 = vadd.f32 0.0, %v1049
    %1051 = vdwg.mxu0
    %1052 = vmatpush.msra.mxu0 %v477
    %1053 = vmatpush.msra.mxu0 %v473
    %1054 = vmatpush.msra.mxu0 %v469
    %1055 = vmatpush.msra.mxu0 %v465
    %1056 = vmatpush.msra.mxu0 %v461
    %1057 = vmatpush.msra.mxu0 %v457
    %1058 = vmatpush.msra.mxu0 %v453
    %1059 = vmatpush.msra.mxu0 %v449
    %1060 = vmatpush.msra.mxu0 %v445
    %1061 = vmatpush.msra.mxu0 %v441
    %1062 = vmatpush.msra.mxu0 %v437
    %1063 = vmatpush.msra.mxu0 %v433
    %1064 = vmatpush.msra.mxu0 %v429
    %1065 = vmatpush.msra.mxu0 %v425
    %1066 = vmatpush.msra.mxu0 %v421
    %1067 = vmatpush.msra.mxu0 %v417
    %1068 = vmatmul.f32.gmra.mxu0 %v1002
    %v1069 = vpop.f32.mrf.mxu0
    %v1070 = vadd.f32 0.0, %v1069
    %1071 = vdwg.mxu0
    %1072 = vmatpush.msra.mxu0 %v478
    %1073 = vmatpush.msra.mxu0 %v474
    %1074 = vmatpush.msra.mxu0 %v470
    %1075 = vmatpush.msra.mxu0 %v466
    %1076 = vmatpush.msra.mxu0 %v462
    %1077 = vmatpush.msra.mxu0 %v458
    %1078 = vmatpush.msra.mxu0 %v454
    %1079 = vmatpush.msra.mxu0 %v450
    %1080 = vmatpush.msra.mxu0 %v446
    %1081 = vmatpush.msra.mxu0 %v442
    %1082 = vmatpush.msra.mxu0 %v438
    %1083 = vmatpush.msra.mxu0 %v434
    %1084 = vmatpush.msra.mxu0 %v430
    %1085 = vmatpush.msra.mxu0 %v426
    %1086 = vmatpush.msra.mxu0 %v422
    %1087 = vmatpush.msra.mxu0 %v418
    %1088 = vmatmul.f32.gmra.mxu0 %v1002
    %v1089 = vpop.f32.mrf.mxu0
    %v1090 = vadd.f32 0.0, %v1089
    %1091 = vdwg.mxu0
    %1092 = vmatpush.msra.mxu0 %v479
    %1093 = vmatpush.msra.mxu0 %v475
    %1094 = vmatpush.msra.mxu0 %v471
    %1095 = vmatpush.msra.mxu0 %v467
    %1096 = vmatpush.msra.mxu0 %v463
    %1097 = vmatpush.msra.mxu0 %v459
    %1098 = vmatpush.msra.mxu0 %v455
    %1099 = vmatpush.msra.mxu0 %v451
    %1100 = vmatpush.msra.mxu0 %v447
    %1101 = vmatpush.msra.mxu0 %v443
    %1102 = vmatpush.msra.mxu0 %v439
    %1103 = vmatpush.msra.mxu0 %v435
    %1104 = vmatpush.msra.mxu0 %v431
    %1105 = vmatpush.msra.mxu0 %v427
    %1106 = vmatpush.msra.mxu0 %v423
    %1107 = vmatpush.msra.mxu0 %v419
    %1108 = vmatmul.f32.gmra.mxu0 %v1002
    %v1109 = vpop.f32.mrf.mxu0
    %v1110 = vadd.f32 0.0, %v1109
    %1111 = vdwg.mxu0
    %v1116 = vrot.slane %v1070, 7
    %v1117 = vrot.slane %v1090, 6
    %v1118 = vrot.slane %v1110, 5
    %v1119 = vsel %vm637, %v1050, %v1116
    %v1120 = vsel %vm639, %v1117, %v1118
    %v1121 = vsel %vm641, %v1119, %v1120
    %v1123 = vadd.f32 %v1031, %v1121
    %s1124 = scalar_lea.vmem [#allocation3], 2
    %v1125 = vld [vmem:[%s1124] ss:$8 sm:$0xf]
    %1126 = vmatpush.msra.mxu0 %v541
    %1127 = vmatpush.msra.mxu0 %v537
    %1128 = vmatpush.msra.mxu0 %v533
    %1129 = vmatpush.msra.mxu0 %v529
    %1130 = vmatpush.msra.mxu0 %v525
    %1131 = vmatpush.msra.mxu0 %v521
    %1132 = vmatpush.msra.mxu0 %v517
    %1133 = vmatpush.msra.mxu0 %v513
    %1134 = vmatpush.msra.mxu0 %v509
    %1135 = vmatpush.msra.mxu0 %v505
    %1136 = vmatpush.msra.mxu0 %v501
    %1137 = vmatpush.msra.mxu0 %v497
    %1138 = vmatpush.msra.mxu0 %v493
    %1139 = vmatpush.msra.mxu0 %v489
    %1140 = vmatpush.msra.mxu0 %v485
    %1141 = vmatpush.msra.mxu0 %v481
    %1142 = vmatmul.f32.gmra.mxu0 %v1027
    %v1143 = vpop.f32.mrf.mxu0
    %v1144 = vadd.f32 0.0, %v1143
    %1145 = vdwg.mxu0
    %1146 = vmatpush.msra.mxu0 %v542
    %1147 = vmatpush.msra.mxu0 %v538
    %1148 = vmatpush.msra.mxu0 %v534
    %1149 = vmatpush.msra.mxu0 %v530
    %1150 = vmatpush.msra.mxu0 %v526
    %1151 = vmatpush.msra.mxu0 %v522
    %1152 = vmatpush.msra.mxu0 %v518
    %1153 = vmatpush.msra.mxu0 %v514
    %1154 = vmatpush.msra.mxu0 %v510
    %1155 = vmatpush.msra.mxu0 %v506
    %1156 = vmatpush.msra.mxu0 %v502
    %1157 = vmatpush.msra.mxu0 %v498
    %1158 = vmatpush.msra.mxu0 %v494
    %1159 = vmatpush.msra.mxu0 %v490
    %1160 = vmatpush.msra.mxu0 %v486
    %1161 = vmatpush.msra.mxu0 %v482
    %1162 = vmatmul.f32.gmra.mxu0 %v1027
    %v1163 = vpop.f32.mrf.mxu0
    %v1164 = vadd.f32 0.0, %v1163
    %1165 = vdwg.mxu0
    %1166 = vmatpush.msra.mxu0 %v543
    %1167 = vmatpush.msra.mxu0 %v539
    %1168 = vmatpush.msra.mxu0 %v535
    %1169 = vmatpush.msra.mxu0 %v531
    %1170 = vmatpush.msra.mxu0 %v527
    %1171 = vmatpush.msra.mxu0 %v523
    %1172 = vmatpush.msra.mxu0 %v519
    %1173 = vmatpush.msra.mxu0 %v515
    %1174 = vmatpush.msra.mxu0 %v511
    %1175 = vmatpush.msra.mxu0 %v507
    %1176 = vmatpush.msra.mxu0 %v503
    %1177 = vmatpush.msra.mxu0 %v499
    %1178 = vmatpush.msra.mxu0 %v495
    %1179 = vmatpush.msra.mxu0 %v491
    %1180 = vmatpush.msra.mxu0 %v487
    %1181 = vmatpush.msra.mxu0 %v483
    %1182 = vmatmul.f32.gmra.mxu0 %v1027
    %v1183 = vpop.f32.mrf.mxu0
    %v1184 = vadd.f32 0.0, %v1183
    %1185 = vdwg.mxu0
    %1186 = vmatpush.msra.mxu0 %v544
    %1187 = vmatpush.msra.mxu0 %v540
    %1188 = vmatpush.msra.mxu0 %v536
    %1189 = vmatpush.msra.mxu0 %v532
    %1190 = vmatpush.msra.mxu0 %v528
    %1191 = vmatpush.msra.mxu0 %v524
    %1192 = vmatpush.msra.mxu0 %v520
    %1193 = vmatpush.msra.mxu0 %v516
    %1194 = vmatpush.msra.mxu0 %v512
    %1195 = vmatpush.msra.mxu0 %v508
    %1196 = vmatpush.msra.mxu0 %v504
    %1197 = vmatpush.msra.mxu0 %v500
    %1198 = vmatpush.msra.mxu0 %v496
    %1199 = vmatpush.msra.mxu0 %v492
    %1200 = vmatpush.msra.mxu0 %v488
    %1201 = vmatpush.msra.mxu0 %v484
    %1202 = vmatmul.f32.gmra.mxu0 %v1027
    %v1203 = vpop.f32.mrf.mxu0
    %v1204 = vadd.f32 0.0, %v1203
    %1205 = vdwg.mxu0
    %v1210 = vrot.slane %v1164, 7
    %v1211 = vrot.slane %v1184, 6
    %v1212 = vrot.slane %v1204, 5
    %v1213 = vsel %vm637, %v1144, %v1210
    %v1214 = vsel %vm639, %v1211, %v1212
    %v1215 = vsel %vm641, %v1213, %v1214
    %v1217 = vadd.f32 %v1125, %v1215
    %v1218 = vmul.f32 %v1123, 0.5
    %v1219 = vtanh.pop %v1218
    %v1220 = vmul.f32 %v1219, 0.5
    %v1221 = vadd.f32 %v1220, 0.5
    %v1223 = vrot.slane %v1123, 1
    %v1225 = vmul.f32 %v1223, 0.5
    %v1226 = vtanh.pop %v1225
    %v1227 = vmul.f32 %v1226, 0.5
    %v1228 = vadd.f32 %v1227, 0.5
    %v1229 = vrot.slane %v1123, 2
    %v1231 = vtanh.pop %v1229
    %v1232 = vrot.slane %v1123, 3
    %v1234 = vmul.f32 %v1232, 0.5
    %v1235 = vtanh.pop %v1234
    %v1236 = vmul.f32 %v1235, 0.5
    %v1237 = vadd.f32 %v1236, 0.5
    %v1238 = vmul.f32 %v1228, %v1000
    %v1239 = vmul.f32 %v1221, %v1231
    %v1240 = vadd.f32 %v1238, %v1239
    %v1241 = vtanh.pop %v1240
    %v1242 = vmul.f32 %v1237, %v1241
    %v1243 = vmul.f32 %v1217, 0.5
    %v1244 = vtanh.pop %v1243
    %v1245 = vmul.f32 %v1244, 0.5
    %v1246 = vadd.f32 %v1245, 0.5
    %v1248 = vrot.slane %v1217, 1
    %v1250 = vmul.f32 %v1248, 0.5
    %v1251 = vtanh.pop %v1250
    %v1252 = vmul.f32 %v1251, 0.5
    %v1253 = vadd.f32 %v1252, 0.5
    %v1254 = vrot.slane %v1217, 2
    %v1256 = vtanh.pop %v1254
    %v1257 = vrot.slane %v1217, 3
    %v1259 = vmul.f32 %v1257, 0.5
    %v1260 = vtanh.pop %v1259
    %v1261 = vmul.f32 %v1260, 0.5
    %v1262 = vadd.f32 %v1261, 0.5
    %v1263 = vmul.f32 %v1253, %v1025
    %v1264 = vmul.f32 %v1246, %v1256
    %v1265 = vadd.f32 %v1263, %v1264
    %v1266 = vtanh.pop %v1265
    %v1267 = vmul.f32 %v1262, %v1266
    %1268 = vst [vmem:[#allocation4 + $0x2] sm:$0x1] %v1242
    %1269 = vst [vmem:[#allocation5 + $0x2] sm:$0x1] %v1267
    %s1270 = scalar_lea.vmem [#allocation2], 3
    %v1271 = vld [vmem:[%s1270] ss:$8 sm:$0xf]
    %1272 = vmatpush.msra.mxu0 %v476
    %1273 = vmatpush.msra.mxu0 %v472
    %1274 = vmatpush.msra.mxu0 %v468
    %1275 = vmatpush.msra.mxu0 %v464
    %1276 = vmatpush.msra.mxu0 %v460
    %1277 = vmatpush.msra.mxu0 %v456
    %1278 = vmatpush.msra.mxu0 %v452
    %1279 = vmatpush.msra.mxu0 %v448
    %1280 = vmatpush.msra.mxu0 %v444
    %1281 = vmatpush.msra.mxu0 %v440
    %1282 = vmatpush.msra.mxu0 %v436
    %1283 = vmatpush.msra.mxu0 %v432
    %1284 = vmatpush.msra.mxu0 %v428
    %1285 = vmatpush.msra.mxu0 %v424
    %1286 = vmatpush.msra.mxu0 %v420
    %1287 = vmatpush.msra.mxu0 %v416
    %1288 = vmatmul.f32.gmra.mxu0 %v1242
    %v1289 = vpop.f32.mrf.mxu0
    %v1290 = vadd.f32 0.0, %v1289
    %1291 = vdwg.mxu0
    %1292 = vmatpush.msra.mxu0 %v477
    %1293 = vmatpush.msra.mxu0 %v473
    %1294 = vmatpush.msra.mxu0 %v469
    %1295 = vmatpush.msra.mxu0 %v465
    %1296 = vmatpush.msra.mxu0 %v461
    %1297 = vmatpush.msra.mxu0 %v457
    %1298 = vmatpush.msra.mxu0 %v453
    %1299 = vmatpush.msra.mxu0 %v449
    %1300 = vmatpush.msra.mxu0 %v445
    %1301 = vmatpush.msra.mxu0 %v441
    %1302 = vmatpush.msra.mxu0 %v437
    %1303 = vmatpush.msra.mxu0 %v433
    %1304 = vmatpush.msra.mxu0 %v429
    %1305 = vmatpush.msra.mxu0 %v425
    %1306 = vmatpush.msra.mxu0 %v421
    %1307 = vmatpush.msra.mxu0 %v417
    %1308 = vmatmul.f32.gmra.mxu0 %v1242
    %v1309 = vpop.f32.mrf.mxu0
    %v1310 = vadd.f32 0.0, %v1309
    %1311 = vdwg.mxu0
    %1312 = vmatpush.msra.mxu0 %v478
    %1313 = vmatpush.msra.mxu0 %v474
    %1314 = vmatpush.msra.mxu0 %v470
    %1315 = vmatpush.msra.mxu0 %v466
    %1316 = vmatpush.msra.mxu0 %v462
    %1317 = vmatpush.msra.mxu0 %v458
    %1318 = vmatpush.msra.mxu0 %v454
    %1319 = vmatpush.msra.mxu0 %v450
    %1320 = vmatpush.msra.mxu0 %v446
    %1321 = vmatpush.msra.mxu0 %v442
    %1322 = vmatpush.msra.mxu0 %v438
    %1323 = vmatpush.msra.mxu0 %v434
    %1324 = vmatpush.msra.mxu0 %v430
    %1325 = vmatpush.msra.mxu0 %v426
    %1326 = vmatpush.msra.mxu0 %v422
    %1327 = vmatpush.msra.mxu0 %v418
    %1328 = vmatmul.f32.gmra.mxu0 %v1242
    %v1329 = vpop.f32.mrf.mxu0
    %v1330 = vadd.f32 0.0, %v1329
    %1331 = vdwg.mxu0
    %1332 = vmatpush.msra.mxu0 %v479
    %1333 = vmatpush.msra.mxu0 %v475
    %1334 = vmatpush.msra.mxu0 %v471
    %1335 = vmatpush.msra.mxu0 %v467
    %1336 = vmatpush.msra.mxu0 %v463
    %1337 = vmatpush.msra.mxu0 %v459
    %1338 = vmatpush.msra.mxu0 %v455
    %1339 = vmatpush.msra.mxu0 %v451
    %1340 = vmatpush.msra.mxu0 %v447
    %1341 = vmatpush.msra.mxu0 %v443
    %1342 = vmatpush.msra.mxu0 %v439
    %1343 = vmatpush.msra.mxu0 %v435
    %1344 = vmatpush.msra.mxu0 %v431
    %1345 = vmatpush.msra.mxu0 %v427
    %1346 = vmatpush.msra.mxu0 %v423
    %1347 = vmatpush.msra.mxu0 %v419
    %1348 = vmatmul.f32.gmra.mxu0 %v1242
    %v1349 = vpop.f32.mrf.mxu0
    %v1350 = vadd.f32 0.0, %v1349
    %1351 = vdwg.mxu0
    %v1356 = vrot.slane %v1310, 7
    %v1357 = vrot.slane %v1330, 6
    %v1358 = vrot.slane %v1350, 5
    %v1359 = vsel %vm637, %v1290, %v1356
    %v1360 = vsel %vm639, %v1357, %v1358
    %v1361 = vsel %vm641, %v1359, %v1360
    %v1363 = vadd.f32 %v1271, %v1361
    %s1364 = scalar_lea.vmem [#allocation3], 3
    %v1365 = vld [vmem:[%s1364] ss:$8 sm:$0xf]
    %1366 = vmatpush.msra.mxu0 %v541
    %1367 = vmatpush.msra.mxu0 %v537
    %1368 = vmatpush.msra.mxu0 %v533
    %1369 = vmatpush.msra.mxu0 %v529
    %1370 = vmatpush.msra.mxu0 %v525
    %1371 = vmatpush.msra.mxu0 %v521
    %1372 = vmatpush.msra.mxu0 %v517
    %1373 = vmatpush.msra.mxu0 %v513
    %1374 = vmatpush.msra.mxu0 %v509
    %1375 = vmatpush.msra.mxu0 %v505
    %1376 = vmatpush.msra.mxu0 %v501
    %1377 = vmatpush.msra.mxu0 %v497
    %1378 = vmatpush.msra.mxu0 %v493
    %1379 = vmatpush.msra.mxu0 %v489
    %1380 = vmatpush.msra.mxu0 %v485
    %1381 = vmatpush.msra.mxu0 %v481
    %1382 = vmatmul.f32.gmra.mxu0 %v1267
    %v1383 = vpop.f32.mrf.mxu0
    %v1384 = vadd.f32 0.0, %v1383
    %1385 = vdwg.mxu0
    %1386 = vmatpush.msra.mxu0 %v542
    %1387 = vmatpush.msra.mxu0 %v538
    %1388 = vmatpush.msra.mxu0 %v534
    %1389 = vmatpush.msra.mxu0 %v530
    %1390 = vmatpush.msra.mxu0 %v526
    %1391 = vmatpush.msra.mxu0 %v522
    %1392 = vmatpush.msra.mxu0 %v518
    %1393 = vmatpush.msra.mxu0 %v514
    %1394 = vmatpush.msra.mxu0 %v510
    %1395 = vmatpush.msra.mxu0 %v506
    %1396 = vmatpush.msra.mxu0 %v502
    %1397 = vmatpush.msra.mxu0 %v498
    %1398 = vmatpush.msra.mxu0 %v494
    %1399 = vmatpush.msra.mxu0 %v490
    %1400 = vmatpush.msra.mxu0 %v486
    %1401 = vmatpush.msra.mxu0 %v482
    %1402 = vmatmul.f32.gmra.mxu0 %v1267
    %v1403 = vpop.f32.mrf.mxu0
    %v1404 = vadd.f32 0.0, %v1403
    %1405 = vdwg.mxu0
    %1406 = vmatpush.msra.mxu0 %v543
    %1407 = vmatpush.msra.mxu0 %v539
    %1408 = vmatpush.msra.mxu0 %v535
    %1409 = vmatpush.msra.mxu0 %v531
    %1410 = vmatpush.msra.mxu0 %v527
    %1411 = vmatpush.msra.mxu0 %v523
    %1412 = vmatpush.msra.mxu0 %v519
    %1413 = vmatpush.msra.mxu0 %v515
    %1414 = vmatpush.msra.mxu0 %v511
    %1415 = vmatpush.msra.mxu0 %v507
    %1416 = vmatpush.msra.mxu0 %v503
    %1417 = vmatpush.msra.mxu0 %v499
    %1418 = vmatpush.msra.mxu0 %v495
    %1419 = vmatpush.msra.mxu0 %v491
    %1420 = vmatpush.msra.mxu0 %v487
    %1421 = vmatpush.msra.mxu0 %v483
    %1422 = vmatmul.f32.gmra.mxu0 %v1267
    %v1423 = vpop.f32.mrf.mxu0
    %v1424 = vadd.f32 0.0, %v1423
    %1425 = vdwg.mxu0
    %1426 = vmatpush.msra.mxu0 %v544
    %1427 = vmatpush.msra.mxu0 %v540
    %1428 = vmatpush.msra.mxu0 %v536
    %1429 = vmatpush.msra.mxu0 %v532
    %1430 = vmatpush.msra.mxu0 %v528
    %1431 = vmatpush.msra.mxu0 %v524
    %1432 = vmatpush.msra.mxu0 %v520
    %1433 = vmatpush.msra.mxu0 %v516
    %1434 = vmatpush.msra.mxu0 %v512
    %1435 = vmatpush.msra.mxu0 %v508
    %1436 = vmatpush.msra.mxu0 %v504
    %1437 = vmatpush.msra.mxu0 %v500
    %1438 = vmatpush.msra.mxu0 %v496
    %1439 = vmatpush.msra.mxu0 %v492
    %1440 = vmatpush.msra.mxu0 %v488
    %1441 = vmatpush.msra.mxu0 %v484
    %1442 = vmatmul.f32.gmra.mxu0 %v1267
    %v1443 = vpop.f32.mrf.mxu0
    %v1444 = vadd.f32 0.0, %v1443
    %1445 = vdwg.mxu0
    %v1450 = vrot.slane %v1404, 7
    %v1451 = vrot.slane %v1424, 6
    %v1452 = vrot.slane %v1444, 5
    %v1453 = vsel %vm637, %v1384, %v1450
    %v1454 = vsel %vm639, %v1451, %v1452
    %v1455 = vsel %vm641, %v1453, %v1454
    %v1457 = vadd.f32 %v1365, %v1455
    %v1458 = vmul.f32 %v1363, 0.5
    %v1459 = vtanh.pop %v1458
    %v1460 = vmul.f32 %v1459, 0.5
    %v1461 = vadd.f32 %v1460, 0.5
    %v1463 = vrot.slane %v1363, 1
    %v1465 = vmul.f32 %v1463, 0.5
    %v1466 = vtanh.pop %v1465
    %v1467 = vmul.f32 %v1466, 0.5
    %v1468 = vadd.f32 %v1467, 0.5
    %v1469 = vrot.slane %v1363, 2
    %v1471 = vtanh.pop %v1469
    %v1472 = vrot.slane %v1363, 3
    %v1474 = vmul.f32 %v1472, 0.5
    %v1475 = vtanh.pop %v1474
    %v1476 = vmul.f32 %v1475, 0.5
    %v1477 = vadd.f32 %v1476, 0.5
    %v1478 = vmul.f32 %v1468, %v1240
    %v1479 = vmul.f32 %v1461, %v1471
    %v1480 = vadd.f32 %v1478, %v1479
    %v1481 = vtanh.pop %v1480
    %v1482 = vmul.f32 %v1477, %v1481
    %v1483 = vmul.f32 %v1457, 0.5
    %v1484 = vtanh.pop %v1483
    %v1485 = vmul.f32 %v1484, 0.5
    %v1486 = vadd.f32 %v1485, 0.5
    %v1488 = vrot.slane %v1457, 1
    %v1490 = vmul.f32 %v1488, 0.5
    %v1491 = vtanh.pop %v1490
    %v1492 = vmul.f32 %v1491, 0.5
    %v1493 = vadd.f32 %v1492, 0.5
    %v1494 = vrot.slane %v1457, 2
    %v1496 = vtanh.pop %v1494
    %v1497 = vrot.slane %v1457, 3
    %v1499 = vmul.f32 %v1497, 0.5
    %v1500 = vtanh.pop %v1499
    %v1501 = vmul.f32 %v1500, 0.5
    %v1502 = vadd.f32 %v1501, 0.5
    %v1503 = vmul.f32 %v1493, %v1265
    %v1504 = vmul.f32 %v1486, %v1496
    %v1505 = vadd.f32 %v1503, %v1504
    %v1506 = vtanh.pop %v1505
    %v1507 = vmul.f32 %v1502, %v1506
    %1508 = vst [vmem:[#allocation4 + $0x3] sm:$0x1] %v1482
    %1509 = vst [vmem:[#allocation5 + $0x3] sm:$0x1] %v1507
    %s1510 = scalar_lea.vmem [#allocation2], 4
    %v1511 = vld [vmem:[%s1510] ss:$8 sm:$0xf]
    %1512 = vmatpush.msra.mxu0 %v476
    %1513 = vmatpush.msra.mxu0 %v472
    %1514 = vmatpush.msra.mxu0 %v468
    %1515 = vmatpush.msra.mxu0 %v464
    %1516 = vmatpush.msra.mxu0 %v460
    %1517 = vmatpush.msra.mxu0 %v456
    %1518 = vmatpush.msra.mxu0 %v452
    %1519 = vmatpush.msra.mxu0 %v448
    %1520 = vmatpush.msra.mxu0 %v444
    %1521 = vmatpush.msra.mxu0 %v440
    %1522 = vmatpush.msra.mxu0 %v436
    %1523 = vmatpush.msra.mxu0 %v432
    %1524 = vmatpush.msra.mxu0 %v428
    %1525 = vmatpush.msra.mxu0 %v424
    %1526 = vmatpush.msra.mxu0 %v420
    %1527 = vmatpush.msra.mxu0 %v416
    %1528 = vmatmul.f32.gmra.mxu0 %v1482
    %v1529 = vpop.f32.mrf.mxu0
    %v1530 = vadd.f32 0.0, %v1529
    %1531 = vdwg.mxu0
    %1532 = vmatpush.msra.mxu0 %v477
    %1533 = vmatpush.msra.mxu0 %v473
    %1534 = vmatpush.msra.mxu0 %v469
    %1535 = vmatpush.msra.mxu0 %v465
    %1536 = vmatpush.msra.mxu0 %v461
    %1537 = vmatpush.msra.mxu0 %v457
    %1538 = vmatpush.msra.mxu0 %v453
    %1539 = vmatpush.msra.mxu0 %v449
    %1540 = vmatpush.msra.mxu0 %v445
    %1541 = vmatpush.msra.mxu0 %v441
    %1542 = vmatpush.msra.mxu0 %v437
    %1543 = vmatpush.msra.mxu0 %v433
    %1544 = vmatpush.msra.mxu0 %v429
    %1545 = vmatpush.msra.mxu0 %v425
    %1546 = vmatpush.msra.mxu0 %v421
    %1547 = vmatpush.msra.mxu0 %v417
    %1548 = vmatmul.f32.gmra.mxu0 %v1482
    %v1549 = vpop.f32.mrf.mxu0
    %v1550 = vadd.f32 0.0, %v1549
    %1551 = vdwg.mxu0
    %1552 = vmatpush.msra.mxu0 %v478
    %1553 = vmatpush.msra.mxu0 %v474
    %1554 = vmatpush.msra.mxu0 %v470
    %1555 = vmatpush.msra.mxu0 %v466
    %1556 = vmatpush.msra.mxu0 %v462
    %1557 = vmatpush.msra.mxu0 %v458
    %1558 = vmatpush.msra.mxu0 %v454
    %1559 = vmatpush.msra.mxu0 %v450
    %1560 = vmatpush.msra.mxu0 %v446
    %1561 = vmatpush.msra.mxu0 %v442
    %1562 = vmatpush.msra.mxu0 %v438
    %1563 = vmatpush.msra.mxu0 %v434
    %1564 = vmatpush.msra.mxu0 %v430
    %1565 = vmatpush.msra.mxu0 %v426
    %1566 = vmatpush.msra.mxu0 %v422
    %1567 = vmatpush.msra.mxu0 %v418
    %1568 = vmatmul.f32.gmra.mxu0 %v1482
    %v1569 = vpop.f32.mrf.mxu0
    %v1570 = vadd.f32 0.0, %v1569
    %1571 = vdwg.mxu0
    %1572 = vmatpush.msra.mxu0 %v479
    %1573 = vmatpush.msra.mxu0 %v475
    %1574 = vmatpush.msra.mxu0 %v471
    %1575 = vmatpush.msra.mxu0 %v467
    %1576 = vmatpush.msra.mxu0 %v463
    %1577 = vmatpush.msra.mxu0 %v459
    %1578 = vmatpush.msra.mxu0 %v455
    %1579 = vmatpush.msra.mxu0 %v451
    %1580 = vmatpush.msra.mxu0 %v447
    %1581 = vmatpush.msra.mxu0 %v443
    %1582 = vmatpush.msra.mxu0 %v439
    %1583 = vmatpush.msra.mxu0 %v435
    %1584 = vmatpush.msra.mxu0 %v431
    %1585 = vmatpush.msra.mxu0 %v427
    %1586 = vmatpush.msra.mxu0 %v423
    %1587 = vmatpush.msra.mxu0 %v419
    %1588 = vmatmul.f32.gmra.mxu0 %v1482
    %v1589 = vpop.f32.mrf.mxu0
    %v1590 = vadd.f32 0.0, %v1589
    %1591 = vdwg.mxu0
    %v1596 = vrot.slane %v1550, 7
    %v1597 = vrot.slane %v1570, 6
    %v1598 = vrot.slane %v1590, 5
    %v1599 = vsel %vm637, %v1530, %v1596
    %v1600 = vsel %vm639, %v1597, %v1598
    %v1601 = vsel %vm641, %v1599, %v1600
    %v1603 = vadd.f32 %v1511, %v1601
    %s1604 = scalar_lea.vmem [#allocation3], 4
    %v1605 = vld [vmem:[%s1604] ss:$8 sm:$0xf]
    %1606 = vmatpush.msra.mxu0 %v541
    %1607 = vmatpush.msra.mxu0 %v537
    %1608 = vmatpush.msra.mxu0 %v533
    %1609 = vmatpush.msra.mxu0 %v529
    %1610 = vmatpush.msra.mxu0 %v525
    %1611 = vmatpush.msra.mxu0 %v521
    %1612 = vmatpush.msra.mxu0 %v517
    %1613 = vmatpush.msra.mxu0 %v513
    %1614 = vmatpush.msra.mxu0 %v509
    %1615 = vmatpush.msra.mxu0 %v505
    %1616 = vmatpush.msra.mxu0 %v501
    %1617 = vmatpush.msra.mxu0 %v497
    %1618 = vmatpush.msra.mxu0 %v493
    %1619 = vmatpush.msra.mxu0 %v489
    %1620 = vmatpush.msra.mxu0 %v485
    %1621 = vmatpush.msra.mxu0 %v481
    %1622 = vmatmul.f32.gmra.mxu0 %v1507
    %v1623 = vpop.f32.mrf.mxu0
    %v1624 = vadd.f32 0.0, %v1623
    %1625 = vdwg.mxu0
    %1626 = vmatpush.msra.mxu0 %v542
    %1627 = vmatpush.msra.mxu0 %v538
    %1628 = vmatpush.msra.mxu0 %v534
    %1629 = vmatpush.msra.mxu0 %v530
    %1630 = vmatpush.msra.mxu0 %v526
    %1631 = vmatpush.msra.mxu0 %v522
    %1632 = vmatpush.msra.mxu0 %v518
    %1633 = vmatpush.msra.mxu0 %v514
    %1634 = vmatpush.msra.mxu0 %v510
    %1635 = vmatpush.msra.mxu0 %v506
    %1636 = vmatpush.msra.mxu0 %v502
    %1637 = vmatpush.msra.mxu0 %v498
    %1638 = vmatpush.msra.mxu0 %v494
    %1639 = vmatpush.msra.mxu0 %v490
    %1640 = vmatpush.msra.mxu0 %v486
    %1641 = vmatpush.msra.mxu0 %v482
    %1642 = vmatmul.f32.gmra.mxu0 %v1507
    %v1643 = vpop.f32.mrf.mxu0
    %v1644 = vadd.f32 0.0, %v1643
    %1645 = vdwg.mxu0
    %1646 = vmatpush.msra.mxu0 %v543
    %1647 = vmatpush.msra.mxu0 %v539
    %1648 = vmatpush.msra.mxu0 %v535
    %1649 = vmatpush.msra.mxu0 %v531
    %1650 = vmatpush.msra.mxu0 %v527
    %1651 = vmatpush.msra.mxu0 %v523
    %1652 = vmatpush.msra.mxu0 %v519
    %1653 = vmatpush.msra.mxu0 %v515
    %1654 = vmatpush.msra.mxu0 %v511
    %1655 = vmatpush.msra.mxu0 %v507
    %1656 = vmatpush.msra.mxu0 %v503
    %1657 = vmatpush.msra.mxu0 %v499
    %1658 = vmatpush.msra.mxu0 %v495
    %1659 = vmatpush.msra.mxu0 %v491
    %1660 = vmatpush.msra.mxu0 %v487
    %1661 = vmatpush.msra.mxu0 %v483
    %1662 = vmatmul.f32.gmra.mxu0 %v1507
    %v1663 = vpop.f32.mrf.mxu0
    %v1664 = vadd.f32 0.0, %v1663
    %1665 = vdwg.mxu0
    %1666 = vmatpush.msra.mxu0 %v544
    %1667 = vmatpush.msra.mxu0 %v540
    %1668 = vmatpush.msra.mxu0 %v536
    %1669 = vmatpush.msra.mxu0 %v532
    %1670 = vmatpush.msra.mxu0 %v528
    %1671 = vmatpush.msra.mxu0 %v524
    %1672 = vmatpush.msra.mxu0 %v520
    %1673 = vmatpush.msra.mxu0 %v516
    %1674 = vmatpush.msra.mxu0 %v512
    %1675 = vmatpush.msra.mxu0 %v508
    %1676 = vmatpush.msra.mxu0 %v504
    %1677 = vmatpush.msra.mxu0 %v500
    %1678 = vmatpush.msra.mxu0 %v496
    %1679 = vmatpush.msra.mxu0 %v492
    %1680 = vmatpush.msra.mxu0 %v488
    %1681 = vmatpush.msra.mxu0 %v484
    %1682 = vmatmul.f32.gmra.mxu0 %v1507
    %v1683 = vpop.f32.mrf.mxu0
    %v1684 = vadd.f32 0.0, %v1683
    %1685 = vdwg.mxu0
    %v1690 = vrot.slane %v1644, 7
    %v1691 = vrot.slane %v1664, 6
    %v1692 = vrot.slane %v1684, 5
    %v1693 = vsel %vm637, %v1624, %v1690
    %v1694 = vsel %vm639, %v1691, %v1692
    %v1695 = vsel %vm641, %v1693, %v1694
    %v1697 = vadd.f32 %v1605, %v1695
    %v1698 = vmul.f32 %v1603, 0.5
    %v1699 = vtanh.pop %v1698
    %v1700 = vmul.f32 %v1699, 0.5
    %v1701 = vadd.f32 %v1700, 0.5
    %v1703 = vrot.slane %v1603, 1
    %v1705 = vmul.f32 %v1703, 0.5
    %v1706 = vtanh.pop %v1705
    %v1707 = vmul.f32 %v1706, 0.5
    %v1708 = vadd.f32 %v1707, 0.5
    %v1709 = vrot.slane %v1603, 2
    %v1711 = vtanh.pop %v1709
    %v1712 = vrot.slane %v1603, 3
    %v1714 = vmul.f32 %v1712, 0.5
    %v1715 = vtanh.pop %v1714
    %v1716 = vmul.f32 %v1715, 0.5
    %v1717 = vadd.f32 %v1716, 0.5
    %v1718 = vmul.f32 %v1708, %v1480
    %v1719 = vmul.f32 %v1701, %v1711
    %v1720 = vadd.f32 %v1718, %v1719
    %v1721 = vtanh.pop %v1720
    %v1722 = vmul.f32 %v1717, %v1721
    %v1723 = vmul.f32 %v1697, 0.5
    %v1724 = vtanh.pop %v1723
    %v1725 = vmul.f32 %v1724, 0.5
    %v1726 = vadd.f32 %v1725, 0.5
    %v1728 = vrot.slane %v1697, 1
    %v1730 = vmul.f32 %v1728, 0.5
    %v1731 = vtanh.pop %v1730
    %v1732 = vmul.f32 %v1731, 0.5
    %v1733 = vadd.f32 %v1732, 0.5
    %v1734 = vrot.slane %v1697, 2
    %v1736 = vtanh.pop %v1734
    %v1737 = vrot.slane %v1697, 3
    %v1739 = vmul.f32 %v1737, 0.5
    %v1740 = vtanh.pop %v1739
    %v1741 = vmul.f32 %v1740, 0.5
    %v1742 = vadd.f32 %v1741, 0.5
    %v1743 = vmul.f32 %v1733, %v1505
    %v1744 = vmul.f32 %v1726, %v1736
    %v1745 = vadd.f32 %v1743, %v1744
    %v1746 = vtanh.pop %v1745
    %v1747 = vmul.f32 %v1742, %v1746
    %1748 = vst [vmem:[#allocation4 + $0x4] sm:$0x1] %v1722
    %1749 = vst [vmem:[#allocation5 + $0x4] sm:$0x1] %v1747
    %s1750 = scalar_lea.vmem [#allocation2], 5
    %v1751 = vld [vmem:[%s1750] ss:$8 sm:$0xf]
    %1752 = vmatpush.msra.mxu0 %v476
    %1753 = vmatpush.msra.mxu0 %v472
    %1754 = vmatpush.msra.mxu0 %v468
    %1755 = vmatpush.msra.mxu0 %v464
    %1756 = vmatpush.msra.mxu0 %v460
    %1757 = vmatpush.msra.mxu0 %v456
    %1758 = vmatpush.msra.mxu0 %v452
    %1759 = vmatpush.msra.mxu0 %v448
    %1760 = vmatpush.msra.mxu0 %v444
    %1761 = vmatpush.msra.mxu0 %v440
    %1762 = vmatpush.msra.mxu0 %v436
    %1763 = vmatpush.msra.mxu0 %v432
    %1764 = vmatpush.msra.mxu0 %v428
    %1765 = vmatpush.msra.mxu0 %v424
    %1766 = vmatpush.msra.mxu0 %v420
    %1767 = vmatpush.msra.mxu0 %v416
    %1768 = vmatmul.f32.gmra.mxu0 %v1722
    %v1769 = vpop.f32.mrf.mxu0
    %v1770 = vadd.f32 0.0, %v1769
    %1771 = vdwg.mxu0
    %1772 = vmatpush.msra.mxu0 %v477
    %1773 = vmatpush.msra.mxu0 %v473
    %1774 = vmatpush.msra.mxu0 %v469
    %1775 = vmatpush.msra.mxu0 %v465
    %1776 = vmatpush.msra.mxu0 %v461
    %1777 = vmatpush.msra.mxu0 %v457
    %1778 = vmatpush.msra.mxu0 %v453
    %1779 = vmatpush.msra.mxu0 %v449
    %1780 = vmatpush.msra.mxu0 %v445
    %1781 = vmatpush.msra.mxu0 %v441
    %1782 = vmatpush.msra.mxu0 %v437
    %1783 = vmatpush.msra.mxu0 %v433
    %1784 = vmatpush.msra.mxu0 %v429
    %1785 = vmatpush.msra.mxu0 %v425
    %1786 = vmatpush.msra.mxu0 %v421
    %1787 = vmatpush.msra.mxu0 %v417
    %1788 = vmatmul.f32.gmra.mxu0 %v1722
    %v1789 = vpop.f32.mrf.mxu0
    %v1790 = vadd.f32 0.0, %v1789
    %1791 = vdwg.mxu0
    %1792 = vmatpush.msra.mxu0 %v478
    %1793 = vmatpush.msra.mxu0 %v474
    %1794 = vmatpush.msra.mxu0 %v470
    %1795 = vmatpush.msra.mxu0 %v466
    %1796 = vmatpush.msra.mxu0 %v462
    %1797 = vmatpush.msra.mxu0 %v458
    %1798 = vmatpush.msra.mxu0 %v454
    %1799 = vmatpush.msra.mxu0 %v450
    %1800 = vmatpush.msra.mxu0 %v446
    %1801 = vmatpush.msra.mxu0 %v442
    %1802 = vmatpush.msra.mxu0 %v438
    %1803 = vmatpush.msra.mxu0 %v434
    %1804 = vmatpush.msra.mxu0 %v430
    %1805 = vmatpush.msra.mxu0 %v426
    %1806 = vmatpush.msra.mxu0 %v422
    %1807 = vmatpush.msra.mxu0 %v418
    %1808 = vmatmul.f32.gmra.mxu0 %v1722
    %v1809 = vpop.f32.mrf.mxu0
    %v1810 = vadd.f32 0.0, %v1809
    %1811 = vdwg.mxu0
    %1812 = vmatpush.msra.mxu0 %v479
    %1813 = vmatpush.msra.mxu0 %v475
    %1814 = vmatpush.msra.mxu0 %v471
    %1815 = vmatpush.msra.mxu0 %v467
    %1816 = vmatpush.msra.mxu0 %v463
    %1817 = vmatpush.msra.mxu0 %v459
    %1818 = vmatpush.msra.mxu0 %v455
    %1819 = vmatpush.msra.mxu0 %v451
    %1820 = vmatpush.msra.mxu0 %v447
    %1821 = vmatpush.msra.mxu0 %v443
    %1822 = vmatpush.msra.mxu0 %v439
    %1823 = vmatpush.msra.mxu0 %v435
    %1824 = vmatpush.msra.mxu0 %v431
    %1825 = vmatpush.msra.mxu0 %v427
    %1826 = vmatpush.msra.mxu0 %v423
    %1827 = vmatpush.msra.mxu0 %v419
    %1828 = vmatmul.f32.gmra.mxu0 %v1722
    %v1829 = vpop.f32.mrf.mxu0
    %v1830 = vadd.f32 0.0, %v1829
    %1831 = vdwg.mxu0
    %v1836 = vrot.slane %v1790, 7
    %v1837 = vrot.slane %v1810, 6
    %v1838 = vrot.slane %v1830, 5
    %v1839 = vsel %vm637, %v1770, %v1836
    %v1840 = vsel %vm639, %v1837, %v1838
    %v1841 = vsel %vm641, %v1839, %v1840
    %v1843 = vadd.f32 %v1751, %v1841
    %s1844 = scalar_lea.vmem [#allocation3], 5
    %v1845 = vld [vmem:[%s1844] ss:$8 sm:$0xf]
    %1846 = vmatpush.msra.mxu0 %v541
    %1847 = vmatpush.msra.mxu0 %v537
    %1848 = vmatpush.msra.mxu0 %v533
    %1849 = vmatpush.msra.mxu0 %v529
    %1850 = vmatpush.msra.mxu0 %v525
    %1851 = vmatpush.msra.mxu0 %v521
    %1852 = vmatpush.msra.mxu0 %v517
    %1853 = vmatpush.msra.mxu0 %v513
    %1854 = vmatpush.msra.mxu0 %v509
    %1855 = vmatpush.msra.mxu0 %v505
    %1856 = vmatpush.msra.mxu0 %v501
    %1857 = vmatpush.msra.mxu0 %v497
    %1858 = vmatpush.msra.mxu0 %v493
    %1859 = vmatpush.msra.mxu0 %v489
    %1860 = vmatpush.msra.mxu0 %v485
    %1861 = vmatpush.msra.mxu0 %v481
    %1862 = vmatmul.f32.gmra.mxu0 %v1747
    %v1863 = vpop.f32.mrf.mxu0
    %v1864 = vadd.f32 0.0, %v1863
    %1865 = vdwg.mxu0
    %1866 = vmatpush.msra.mxu0 %v542
    %1867 = vmatpush.msra.mxu0 %v538
    %1868 = vmatpush.msra.mxu0 %v534
    %1869 = vmatpush.msra.mxu0 %v530
    %1870 = vmatpush.msra.mxu0 %v526
    %1871 = vmatpush.msra.mxu0 %v522
    %1872 = vmatpush.msra.mxu0 %v518
    %1873 = vmatpush.msra.mxu0 %v514
    %1874 = vmatpush.msra.mxu0 %v510
    %1875 = vmatpush.msra.mxu0 %v506
    %1876 = vmatpush.msra.mxu0 %v502
    %1877 = vmatpush.msra.mxu0 %v498
    %1878 = vmatpush.msra.mxu0 %v494
    %1879 = vmatpush.msra.mxu0 %v490
    %1880 = vmatpush.msra.mxu0 %v486
    %1881 = vmatpush.msra.mxu0 %v482
    %1882 = vmatmul.f32.gmra.mxu0 %v1747
    %v1883 = vpop.f32.mrf.mxu0
    %v1884 = vadd.f32 0.0, %v1883
    %1885 = vdwg.mxu0
    %1886 = vmatpush.msra.mxu0 %v543
    %1887 = vmatpush.msra.mxu0 %v539
    %1888 = vmatpush.msra.mxu0 %v535
    %1889 = vmatpush.msra.mxu0 %v531
    %1890 = vmatpush.msra.mxu0 %v527
    %1891 = vmatpush.msra.mxu0 %v523
    %1892 = vmatpush.msra.mxu0 %v519
    %1893 = vmatpush.msra.mxu0 %v515
    %1894 = vmatpush.msra.mxu0 %v511
    %1895 = vmatpush.msra.mxu0 %v507
    %1896 = vmatpush.msra.mxu0 %v503
    %1897 = vmatpush.msra.mxu0 %v499
    %1898 = vmatpush.msra.mxu0 %v495
    %1899 = vmatpush.msra.mxu0 %v491
    %1900 = vmatpush.msra.mxu0 %v487
    %1901 = vmatpush.msra.mxu0 %v483
    %1902 = vmatmul.f32.gmra.mxu0 %v1747
    %v1903 = vpop.f32.mrf.mxu0
    %v1904 = vadd.f32 0.0, %v1903
    %1905 = vdwg.mxu0
    %1906 = vmatpush.msra.mxu0 %v544
    %1907 = vmatpush.msra.mxu0 %v540
    %1908 = vmatpush.msra.mxu0 %v536
    %1909 = vmatpush.msra.mxu0 %v532
    %1910 = vmatpush.msra.mxu0 %v528
    %1911 = vmatpush.msra.mxu0 %v524
    %1912 = vmatpush.msra.mxu0 %v520
    %1913 = vmatpush.msra.mxu0 %v516
    %1914 = vmatpush.msra.mxu0 %v512
    %1915 = vmatpush.msra.mxu0 %v508
    %1916 = vmatpush.msra.mxu0 %v504
    %1917 = vmatpush.msra.mxu0 %v500
    %1918 = vmatpush.msra.mxu0 %v496
    %1919 = vmatpush.msra.mxu0 %v492
    %1920 = vmatpush.msra.mxu0 %v488
    %1921 = vmatpush.msra.mxu0 %v484
    %1922 = vmatmul.f32.gmra.mxu0 %v1747
    %v1923 = vpop.f32.mrf.mxu0
    %v1924 = vadd.f32 0.0, %v1923
    %1925 = vdwg.mxu0
    %v1930 = vrot.slane %v1884, 7
    %v1931 = vrot.slane %v1904, 6
    %v1932 = vrot.slane %v1924, 5
    %v1933 = vsel %vm637, %v1864, %v1930
    %v1934 = vsel %vm639, %v1931, %v1932
    %v1935 = vsel %vm641, %v1933, %v1934
    %v1937 = vadd.f32 %v1845, %v1935
    %v1938 = vmul.f32 %v1843, 0.5
    %v1939 = vtanh.pop %v1938
    %v1940 = vmul.f32 %v1939, 0.5
    %v1941 = vadd.f32 %v1940, 0.5
    %v1943 = vrot.slane %v1843, 1
    %v1945 = vmul.f32 %v1943, 0.5
    %v1946 = vtanh.pop %v1945
    %v1947 = vmul.f32 %v1946, 0.5
    %v1948 = vadd.f32 %v1947, 0.5
    %v1949 = vrot.slane %v1843, 2
    %v1951 = vtanh.pop %v1949
    %v1952 = vrot.slane %v1843, 3
    %v1954 = vmul.f32 %v1952, 0.5
    %v1955 = vtanh.pop %v1954
    %v1956 = vmul.f32 %v1955, 0.5
    %v1957 = vadd.f32 %v1956, 0.5
    %v1958 = vmul.f32 %v1948, %v1720
    %v1959 = vmul.f32 %v1941, %v1951
    %v1960 = vadd.f32 %v1958, %v1959
    %v1961 = vtanh.pop %v1960
    %v1962 = vmul.f32 %v1957, %v1961
    %v1963 = vmul.f32 %v1937, 0.5
    %v1964 = vtanh.pop %v1963
    %v1965 = vmul.f32 %v1964, 0.5
    %v1966 = vadd.f32 %v1965, 0.5
    %v1968 = vrot.slane %v1937, 1
    %v1970 = vmul.f32 %v1968, 0.5
    %v1971 = vtanh.pop %v1970
    %v1972 = vmul.f32 %v1971, 0.5
    %v1973 = vadd.f32 %v1972, 0.5
    %v1974 = vrot.slane %v1937, 2
    %v1976 = vtanh.pop %v1974
    %v1977 = vrot.slane %v1937, 3
    %v1979 = vmul.f32 %v1977, 0.5
    %v1980 = vtanh.pop %v1979
    %v1981 = vmul.f32 %v1980, 0.5
    %v1982 = vadd.f32 %v1981, 0.5
    %v1983 = vmul.f32 %v1973, %v1745
    %v1984 = vmul.f32 %v1966, %v1976
    %v1985 = vadd.f32 %v1983, %v1984
    %v1986 = vtanh.pop %v1985
    %v1987 = vmul.f32 %v1982, %v1986
    %1988 = vst [vmem:[#allocation4 + $0x5] sm:$0x1] %v1962
    %1989 = vst [vmem:[#allocation5 + $0x5] sm:$0x1] %v1987
    %s1990 = scalar_lea.vmem [#allocation2], 6
    %v1991 = vld [vmem:[%s1990] ss:$8 sm:$0xf]
    %1992 = vmatpush.msra.mxu0 %v476
    %1993 = vmatpush.msra.mxu0 %v472
    %1994 = vmatpush.msra.mxu0 %v468
    %1995 = vmatpush.msra.mxu0 %v464
    %1996 = vmatpush.msra.mxu0 %v460
    %1997 = vmatpush.msra.mxu0 %v456
    %1998 = vmatpush.msra.mxu0 %v452
    %1999 = vmatpush.msra.mxu0 %v448
    %2000 = vmatpush.msra.mxu0 %v444
    %2001 = vmatpush.msra.mxu0 %v440
    %2002 = vmatpush.msra.mxu0 %v436
    %2003 = vmatpush.msra.mxu0 %v432
    %2004 = vmatpush.msra.mxu0 %v428
    %2005 = vmatpush.msra.mxu0 %v424
    %2006 = vmatpush.msra.mxu0 %v420
    %2007 = vmatpush.msra.mxu0 %v416
    %2008 = vmatmul.f32.gmra.mxu0 %v1962
    %v2009 = vpop.f32.mrf.mxu0
    %v2010 = vadd.f32 0.0, %v2009
    %2011 = vdwg.mxu0
    %2012 = vmatpush.msra.mxu0 %v477
    %2013 = vmatpush.msra.mxu0 %v473
    %2014 = vmatpush.msra.mxu0 %v469
    %2015 = vmatpush.msra.mxu0 %v465
    %2016 = vmatpush.msra.mxu0 %v461
    %2017 = vmatpush.msra.mxu0 %v457
    %2018 = vmatpush.msra.mxu0 %v453
    %2019 = vmatpush.msra.mxu0 %v449
    %2020 = vmatpush.msra.mxu0 %v445
    %2021 = vmatpush.msra.mxu0 %v441
    %2022 = vmatpush.msra.mxu0 %v437
    %2023 = vmatpush.msra.mxu0 %v433
    %2024 = vmatpush.msra.mxu0 %v429
    %2025 = vmatpush.msra.mxu0 %v425
    %2026 = vmatpush.msra.mxu0 %v421
    %2027 = vmatpush.msra.mxu0 %v417
    %2028 = vmatmul.f32.gmra.mxu0 %v1962
    %v2029 = vpop.f32.mrf.mxu0
    %v2030 = vadd.f32 0.0, %v2029
    %2031 = vdwg.mxu0
    %2032 = vmatpush.msra.mxu0 %v478
    %2033 = vmatpush.msra.mxu0 %v474
    %2034 = vmatpush.msra.mxu0 %v470
    %2035 = vmatpush.msra.mxu0 %v466
    %2036 = vmatpush.msra.mxu0 %v462
    %2037 = vmatpush.msra.mxu0 %v458
    %2038 = vmatpush.msra.mxu0 %v454
    %2039 = vmatpush.msra.mxu0 %v450
    %2040 = vmatpush.msra.mxu0 %v446
    %2041 = vmatpush.msra.mxu0 %v442
    %2042 = vmatpush.msra.mxu0 %v438
    %2043 = vmatpush.msra.mxu0 %v434
    %2044 = vmatpush.msra.mxu0 %v430
    %2045 = vmatpush.msra.mxu0 %v426
    %2046 = vmatpush.msra.mxu0 %v422
    %2047 = vmatpush.msra.mxu0 %v418
    %2048 = vmatmul.f32.gmra.mxu0 %v1962
    %v2049 = vpop.f32.mrf.mxu0
    %v2050 = vadd.f32 0.0, %v2049
    %2051 = vdwg.mxu0
    %2052 = vmatpush.msra.mxu0 %v479
    %2053 = vmatpush.msra.mxu0 %v475
    %2054 = vmatpush.msra.mxu0 %v471
    %2055 = vmatpush.msra.mxu0 %v467
    %2056 = vmatpush.msra.mxu0 %v463
    %2057 = vmatpush.msra.mxu0 %v459
    %2058 = vmatpush.msra.mxu0 %v455
    %2059 = vmatpush.msra.mxu0 %v451
    %2060 = vmatpush.msra.mxu0 %v447
    %2061 = vmatpush.msra.mxu0 %v443
    %2062 = vmatpush.msra.mxu0 %v439
    %2063 = vmatpush.msra.mxu0 %v435
    %2064 = vmatpush.msra.mxu0 %v431
    %2065 = vmatpush.msra.mxu0 %v427
    %2066 = vmatpush.msra.mxu0 %v423
    %2067 = vmatpush.msra.mxu0 %v419
    %2068 = vmatmul.f32.gmra.mxu0 %v1962
    %v2069 = vpop.f32.mrf.mxu0
    %v2070 = vadd.f32 0.0, %v2069
    %2071 = vdwg.mxu0
    %v2076 = vrot.slane %v2030, 7
    %v2077 = vrot.slane %v2050, 6
    %v2078 = vrot.slane %v2070, 5
    %v2079 = vsel %vm637, %v2010, %v2076
    %v2080 = vsel %vm639, %v2077, %v2078
    %v2081 = vsel %vm641, %v2079, %v2080
    %v2083 = vadd.f32 %v1991, %v2081
    %s2084 = scalar_lea.vmem [#allocation3], 6
    %v2085 = vld [vmem:[%s2084] ss:$8 sm:$0xf]
    %2086 = vmatpush.msra.mxu0 %v541
    %2087 = vmatpush.msra.mxu0 %v537
    %2088 = vmatpush.msra.mxu0 %v533
    %2089 = vmatpush.msra.mxu0 %v529
    %2090 = vmatpush.msra.mxu0 %v525
    %2091 = vmatpush.msra.mxu0 %v521
    %2092 = vmatpush.msra.mxu0 %v517
    %2093 = vmatpush.msra.mxu0 %v513
    %2094 = vmatpush.msra.mxu0 %v509
    %2095 = vmatpush.msra.mxu0 %v505
    %2096 = vmatpush.msra.mxu0 %v501
    %2097 = vmatpush.msra.mxu0 %v497
    %2098 = vmatpush.msra.mxu0 %v493
    %2099 = vmatpush.msra.mxu0 %v489
    %2100 = vmatpush.msra.mxu0 %v485
    %2101 = vmatpush.msra.mxu0 %v481
    %2102 = vmatmul.f32.gmra.mxu0 %v1987
    %v2103 = vpop.f32.mrf.mxu0
    %v2104 = vadd.f32 0.0, %v2103
    %2105 = vdwg.mxu0
    %2106 = vmatpush.msra.mxu0 %v542
    %2107 = vmatpush.msra.mxu0 %v538
    %2108 = vmatpush.msra.mxu0 %v534
    %2109 = vmatpush.msra.mxu0 %v530
    %2110 = vmatpush.msra.mxu0 %v526
    %2111 = vmatpush.msra.mxu0 %v522
    %2112 = vmatpush.msra.mxu0 %v518
    %2113 = vmatpush.msra.mxu0 %v514
    %2114 = vmatpush.msra.mxu0 %v510
    %2115 = vmatpush.msra.mxu0 %v506
    %2116 = vmatpush.msra.mxu0 %v502
    %2117 = vmatpush.msra.mxu0 %v498
    %2118 = vmatpush.msra.mxu0 %v494
    %2119 = vmatpush.msra.mxu0 %v490
    %2120 = vmatpush.msra.mxu0 %v486
    %2121 = vmatpush.msra.mxu0 %v482
    %2122 = vmatmul.f32.gmra.mxu0 %v1987
    %v2123 = vpop.f32.mrf.mxu0
    %v2124 = vadd.f32 0.0, %v2123
    %2125 = vdwg.mxu0
    %2126 = vmatpush.msra.mxu0 %v543
    %2127 = vmatpush.msra.mxu0 %v539
    %2128 = vmatpush.msra.mxu0 %v535
    %2129 = vmatpush.msra.mxu0 %v531
    %2130 = vmatpush.msra.mxu0 %v527
    %2131 = vmatpush.msra.mxu0 %v523
    %2132 = vmatpush.msra.mxu0 %v519
    %2133 = vmatpush.msra.mxu0 %v515
    %2134 = vmatpush.msra.mxu0 %v511
    %2135 = vmatpush.msra.mxu0 %v507
    %2136 = vmatpush.msra.mxu0 %v503
    %2137 = vmatpush.msra.mxu0 %v499
    %2138 = vmatpush.msra.mxu0 %v495
    %2139 = vmatpush.msra.mxu0 %v491
    %2140 = vmatpush.msra.mxu0 %v487
    %2141 = vmatpush.msra.mxu0 %v483
    %2142 = vmatmul.f32.gmra.mxu0 %v1987
    %v2143 = vpop.f32.mrf.mxu0
    %v2144 = vadd.f32 0.0, %v2143
    %2145 = vdwg.mxu0
    %2146 = vmatpush.msra.mxu0 %v544
    %2147 = vmatpush.msra.mxu0 %v540
    %2148 = vmatpush.msra.mxu0 %v536
    %2149 = vmatpush.msra.mxu0 %v532
    %2150 = vmatpush.msra.mxu0 %v528
    %2151 = vmatpush.msra.mxu0 %v524
    %2152 = vmatpush.msra.mxu0 %v520
    %2153 = vmatpush.msra.mxu0 %v516
    %2154 = vmatpush.msra.mxu0 %v512
    %2155 = vmatpush.msra.mxu0 %v508
    %2156 = vmatpush.msra.mxu0 %v504
    %2157 = vmatpush.msra.mxu0 %v500
    %2158 = vmatpush.msra.mxu0 %v496
    %2159 = vmatpush.msra.mxu0 %v492
    %2160 = vmatpush.msra.mxu0 %v488
    %2161 = vmatpush.msra.mxu0 %v484
    %2162 = vmatmul.f32.gmra.mxu0 %v1987
    %v2163 = vpop.f32.mrf.mxu0
    %v2164 = vadd.f32 0.0, %v2163
    %2165 = vdwg.mxu0
    %v2170 = vrot.slane %v2124, 7
    %v2171 = vrot.slane %v2144, 6
    %v2172 = vrot.slane %v2164, 5
    %v2173 = vsel %vm637, %v2104, %v2170
    %v2174 = vsel %vm639, %v2171, %v2172
    %v2175 = vsel %vm641, %v2173, %v2174
    %v2177 = vadd.f32 %v2085, %v2175
    %v2178 = vmul.f32 %v2083, 0.5
    %v2179 = vtanh.pop %v2178
    %v2180 = vmul.f32 %v2179, 0.5
    %v2181 = vadd.f32 %v2180, 0.5
    %v2183 = vrot.slane %v2083, 1
    %v2185 = vmul.f32 %v2183, 0.5
    %v2186 = vtanh.pop %v2185
    %v2187 = vmul.f32 %v2186, 0.5
    %v2188 = vadd.f32 %v2187, 0.5
    %v2189 = vrot.slane %v2083, 2
    %v2191 = vtanh.pop %v2189
    %v2192 = vrot.slane %v2083, 3
    %v2194 = vmul.f32 %v2192, 0.5
    %v2195 = vtanh.pop %v2194
    %v2196 = vmul.f32 %v2195, 0.5
    %v2197 = vadd.f32 %v2196, 0.5
    %v2198 = vmul.f32 %v2188, %v1960
    %v2199 = vmul.f32 %v2181, %v2191
    %v2200 = vadd.f32 %v2198, %v2199
    %v2201 = vtanh.pop %v2200
    %v2202 = vmul.f32 %v2197, %v2201
    %v2203 = vmul.f32 %v2177, 0.5
    %v2204 = vtanh.pop %v2203
    %v2205 = vmul.f32 %v2204, 0.5
    %v2206 = vadd.f32 %v2205, 0.5
    %v2208 = vrot.slane %v2177, 1
    %v2210 = vmul.f32 %v2208, 0.5
    %v2211 = vtanh.pop %v2210
    %v2212 = vmul.f32 %v2211, 0.5
    %v2213 = vadd.f32 %v2212, 0.5
    %v2214 = vrot.slane %v2177, 2
    %v2216 = vtanh.pop %v2214
    %v2217 = vrot.slane %v2177, 3
    %v2219 = vmul.f32 %v2217, 0.5
    %v2220 = vtanh.pop %v2219
    %v2221 = vmul.f32 %v2220, 0.5
    %v2222 = vadd.f32 %v2221, 0.5
    %v2223 = vmul.f32 %v2213, %v1985
    %v2224 = vmul.f32 %v2206, %v2216
    %v2225 = vadd.f32 %v2223, %v2224
    %v2226 = vtanh.pop %v2225
    %v2227 = vmul.f32 %v2222, %v2226
    %2228 = vst [vmem:[#allocation4 + $0x6] sm:$0x1] %v2202
    %2229 = vst [vmem:[#allocation5 + $0x6] sm:$0x1] %v2227
    %s2230 = scalar_lea.vmem [#allocation2], 7
    %v2231 = vld [vmem:[%s2230] ss:$8 sm:$0xf]
    %2232 = vmatpush.msra.mxu0 %v476
    %2233 = vmatpush.msra.mxu0 %v472
    %2234 = vmatpush.msra.mxu0 %v468
    %2235 = vmatpush.msra.mxu0 %v464
    %2236 = vmatpush.msra.mxu0 %v460
    %2237 = vmatpush.msra.mxu0 %v456
    %2238 = vmatpush.msra.mxu0 %v452
    %2239 = vmatpush.msra.mxu0 %v448
    %2240 = vmatpush.msra.mxu0 %v444
    %2241 = vmatpush.msra.mxu0 %v440
    %2242 = vmatpush.msra.mxu0 %v436
    %2243 = vmatpush.msra.mxu0 %v432
    %2244 = vmatpush.msra.mxu0 %v428
    %2245 = vmatpush.msra.mxu0 %v424
    %2246 = vmatpush.msra.mxu0 %v420
    %2247 = vmatpush.msra.mxu0 %v416
    %2248 = vmatmul.f32.gmra.mxu0 %v2202
    %v2249 = vpop.f32.mrf.mxu0
    %v2250 = vadd.f32 0.0, %v2249
    %2251 = vdwg.mxu0
    %2252 = vmatpush.msra.mxu0 %v477
    %2253 = vmatpush.msra.mxu0 %v473
    %2254 = vmatpush.msra.mxu0 %v469
    %2255 = vmatpush.msra.mxu0 %v465
    %2256 = vmatpush.msra.mxu0 %v461
    %2257 = vmatpush.msra.mxu0 %v457
    %2258 = vmatpush.msra.mxu0 %v453
    %2259 = vmatpush.msra.mxu0 %v449
    %2260 = vmatpush.msra.mxu0 %v445
    %2261 = vmatpush.msra.mxu0 %v441
    %2262 = vmatpush.msra.mxu0 %v437
    %2263 = vmatpush.msra.mxu0 %v433
    %2264 = vmatpush.msra.mxu0 %v429
    %2265 = vmatpush.msra.mxu0 %v425
    %2266 = vmatpush.msra.mxu0 %v421
    %2267 = vmatpush.msra.mxu0 %v417
    %2268 = vmatmul.f32.gmra.mxu0 %v2202
    %v2269 = vpop.f32.mrf.mxu0
    %v2270 = vadd.f32 0.0, %v2269
    %2271 = vdwg.mxu0
    %2272 = vmatpush.msra.mxu0 %v478
    %2273 = vmatpush.msra.mxu0 %v474
    %2274 = vmatpush.msra.mxu0 %v470
    %2275 = vmatpush.msra.mxu0 %v466
    %2276 = vmatpush.msra.mxu0 %v462
    %2277 = vmatpush.msra.mxu0 %v458
    %2278 = vmatpush.msra.mxu0 %v454
    %2279 = vmatpush.msra.mxu0 %v450
    %2280 = vmatpush.msra.mxu0 %v446
    %2281 = vmatpush.msra.mxu0 %v442
    %2282 = vmatpush.msra.mxu0 %v438
    %2283 = vmatpush.msra.mxu0 %v434
    %2284 = vmatpush.msra.mxu0 %v430
    %2285 = vmatpush.msra.mxu0 %v426
    %2286 = vmatpush.msra.mxu0 %v422
    %2287 = vmatpush.msra.mxu0 %v418
    %2288 = vmatmul.f32.gmra.mxu0 %v2202
    %v2289 = vpop.f32.mrf.mxu0
    %v2290 = vadd.f32 0.0, %v2289
    %2291 = vdwg.mxu0
    %2292 = vmatpush.msra.mxu0 %v479
    %2293 = vmatpush.msra.mxu0 %v475
    %2294 = vmatpush.msra.mxu0 %v471
    %2295 = vmatpush.msra.mxu0 %v467
    %2296 = vmatpush.msra.mxu0 %v463
    %2297 = vmatpush.msra.mxu0 %v459
    %2298 = vmatpush.msra.mxu0 %v455
    %2299 = vmatpush.msra.mxu0 %v451
    %2300 = vmatpush.msra.mxu0 %v447
    %2301 = vmatpush.msra.mxu0 %v443
    %2302 = vmatpush.msra.mxu0 %v439
    %2303 = vmatpush.msra.mxu0 %v435
    %2304 = vmatpush.msra.mxu0 %v431
    %2305 = vmatpush.msra.mxu0 %v427
    %2306 = vmatpush.msra.mxu0 %v423
    %2307 = vmatpush.msra.mxu0 %v419
    %2308 = vmatmul.f32.gmra.mxu0 %v2202
    %v2309 = vpop.f32.mrf.mxu0
    %v2310 = vadd.f32 0.0, %v2309
    %2311 = vdwg.mxu0
    %v2316 = vrot.slane %v2270, 7
    %v2317 = vrot.slane %v2290, 6
    %v2318 = vrot.slane %v2310, 5
    %v2319 = vsel %vm637, %v2250, %v2316
    %v2320 = vsel %vm639, %v2317, %v2318
    %v2321 = vsel %vm641, %v2319, %v2320
    %v2323 = vadd.f32 %v2231, %v2321
    %s2324 = scalar_lea.vmem [#allocation3], 7
    %v2325 = vld [vmem:[%s2324] ss:$8 sm:$0xf]
    %2326 = vmatpush.msra.mxu0 %v541
    %2327 = vmatpush.msra.mxu0 %v537
    %2328 = vmatpush.msra.mxu0 %v533
    %2329 = vmatpush.msra.mxu0 %v529
    %2330 = vmatpush.msra.mxu0 %v525
    %2331 = vmatpush.msra.mxu0 %v521
    %2332 = vmatpush.msra.mxu0 %v517
    %2333 = vmatpush.msra.mxu0 %v513
    %2334 = vmatpush.msra.mxu0 %v509
    %2335 = vmatpush.msra.mxu0 %v505
    %2336 = vmatpush.msra.mxu0 %v501
    %2337 = vmatpush.msra.mxu0 %v497
    %2338 = vmatpush.msra.mxu0 %v493
    %2339 = vmatpush.msra.mxu0 %v489
    %2340 = vmatpush.msra.mxu0 %v485
    %2341 = vmatpush.msra.mxu0 %v481
    %2342 = vmatmul.f32.gmra.mxu0 %v2227
    %v2343 = vpop.f32.mrf.mxu0
    %v2344 = vadd.f32 0.0, %v2343
    %2345 = vdwg.mxu0
    %2346 = vmatpush.msra.mxu0 %v542
    %2347 = vmatpush.msra.mxu0 %v538
    %2348 = vmatpush.msra.mxu0 %v534
    %2349 = vmatpush.msra.mxu0 %v530
    %2350 = vmatpush.msra.mxu0 %v526
    %2351 = vmatpush.msra.mxu0 %v522
    %2352 = vmatpush.msra.mxu0 %v518
    %2353 = vmatpush.msra.mxu0 %v514
    %2354 = vmatpush.msra.mxu0 %v510
    %2355 = vmatpush.msra.mxu0 %v506
    %2356 = vmatpush.msra.mxu0 %v502
    %2357 = vmatpush.msra.mxu0 %v498
    %2358 = vmatpush.msra.mxu0 %v494
    %2359 = vmatpush.msra.mxu0 %v490
    %2360 = vmatpush.msra.mxu0 %v486
    %2361 = vmatpush.msra.mxu0 %v482
    %2362 = vmatmul.f32.gmra.mxu0 %v2227
    %v2363 = vpop.f32.mrf.mxu0
    %v2364 = vadd.f32 0.0, %v2363
    %2365 = vdwg.mxu0
    %2366 = vmatpush.msra.mxu0 %v543
    %2367 = vmatpush.msra.mxu0 %v539
    %2368 = vmatpush.msra.mxu0 %v535
    %2369 = vmatpush.msra.mxu0 %v531
    %2370 = vmatpush.msra.mxu0 %v527
    %2371 = vmatpush.msra.mxu0 %v523
    %2372 = vmatpush.msra.mxu0 %v519
    %2373 = vmatpush.msra.mxu0 %v515
    %2374 = vmatpush.msra.mxu0 %v511
    %2375 = vmatpush.msra.mxu0 %v507
    %2376 = vmatpush.msra.mxu0 %v503
    %2377 = vmatpush.msra.mxu0 %v499
    %2378 = vmatpush.msra.mxu0 %v495
    %2379 = vmatpush.msra.mxu0 %v491
    %2380 = vmatpush.msra.mxu0 %v487
    %2381 = vmatpush.msra.mxu0 %v483
    %2382 = vmatmul.f32.gmra.mxu0 %v2227
    %v2383 = vpop.f32.mrf.mxu0
    %v2384 = vadd.f32 0.0, %v2383
    %2385 = vdwg.mxu0
    %2386 = vmatpush.msra.mxu0 %v544
    %2387 = vmatpush.msra.mxu0 %v540
    %2388 = vmatpush.msra.mxu0 %v536
    %2389 = vmatpush.msra.mxu0 %v532
    %2390 = vmatpush.msra.mxu0 %v528
    %2391 = vmatpush.msra.mxu0 %v524
    %2392 = vmatpush.msra.mxu0 %v520
    %2393 = vmatpush.msra.mxu0 %v516
    %2394 = vmatpush.msra.mxu0 %v512
    %2395 = vmatpush.msra.mxu0 %v508
    %2396 = vmatpush.msra.mxu0 %v504
    %2397 = vmatpush.msra.mxu0 %v500
    %2398 = vmatpush.msra.mxu0 %v496
    %2399 = vmatpush.msra.mxu0 %v492
    %2400 = vmatpush.msra.mxu0 %v488
    %2401 = vmatpush.msra.mxu0 %v484
    %2402 = vmatmul.f32.gmra.mxu0 %v2227
    %v2403 = vpop.f32.mrf.mxu0
    %v2404 = vadd.f32 0.0, %v2403
    %2405 = vdwg.mxu0
    %v2410 = vrot.slane %v2364, 7
    %v2411 = vrot.slane %v2384, 6
    %v2412 = vrot.slane %v2404, 5
    %v2413 = vsel %vm637, %v2344, %v2410
    %v2414 = vsel %vm639, %v2411, %v2412
    %v2415 = vsel %vm641, %v2413, %v2414
    %v2417 = vadd.f32 %v2325, %v2415
    %v2418 = vmul.f32 %v2323, 0.5
    %v2419 = vtanh.pop %v2418
    %v2420 = vmul.f32 %v2419, 0.5
    %v2421 = vadd.f32 %v2420, 0.5
    %v2423 = vrot.slane %v2323, 1
    %v2425 = vmul.f32 %v2423, 0.5
    %v2426 = vtanh.pop %v2425
    %v2427 = vmul.f32 %v2426, 0.5
    %v2428 = vadd.f32 %v2427, 0.5
    %v2429 = vrot.slane %v2323, 2
    %v2431 = vtanh.pop %v2429
    %v2432 = vrot.slane %v2323, 3
    %v2434 = vmul.f32 %v2432, 0.5
    %v2435 = vtanh.pop %v2434
    %v2436 = vmul.f32 %v2435, 0.5
    %v2437 = vadd.f32 %v2436, 0.5
    %v2438 = vmul.f32 %v2428, %v2200
    %v2439 = vmul.f32 %v2421, %v2431
    %v2440 = vadd.f32 %v2438, %v2439
    %v2441 = vtanh.pop %v2440
    %v2442 = vmul.f32 %v2437, %v2441
    %v2443 = vmul.f32 %v2417, 0.5
    %v2444 = vtanh.pop %v2443
    %v2445 = vmul.f32 %v2444, 0.5
    %v2446 = vadd.f32 %v2445, 0.5
    %v2448 = vrot.slane %v2417, 1
    %v2450 = vmul.f32 %v2448, 0.5
    %v2451 = vtanh.pop %v2450
    %v2452 = vmul.f32 %v2451, 0.5
    %v2453 = vadd.f32 %v2452, 0.5
    %v2454 = vrot.slane %v2417, 2
    %v2456 = vtanh.pop %v2454
    %v2457 = vrot.slane %v2417, 3
    %v2459 = vmul.f32 %v2457, 0.5
    %v2460 = vtanh.pop %v2459
    %v2461 = vmul.f32 %v2460, 0.5
    %v2462 = vadd.f32 %v2461, 0.5
    %v2463 = vmul.f32 %v2453, %v2225
    %v2464 = vmul.f32 %v2446, %v2456
    %v2465 = vadd.f32 %v2463, %v2464
    %v2466 = vtanh.pop %v2465
    %v2467 = vmul.f32 %v2462, %v2466
    %2468 = vst [vmem:[#allocation4 + $0x7] sm:$0x1] %v2442
    %2469 = vst [vmem:[#allocation5 + $0x7] sm:$0x1] %v2467
    %2470 = vst [vmem:[#allocation6] sm:$0x1] %v2442
    %2471 = vst [vmem:[#allocation7] sm:$0x1] %v2440
    %2472 = vst [vmem:[#allocation8] sm:$0x1] %v2467
    %2473 = vst [vmem:[#allocation9] sm:$0x1] %v2465
    %v2474 = vld [vmem:[#allocation5] sm:$0xff]
    %v2475 = vld [vmem:[#allocation14] sm:$0xff]
    %v2476 = vld [vmem:[#allocation14 + $0x8] sm:$0xff]
    %v2477 = vld [vmem:[#allocation14 + $0x10] sm:$0xff]
    %v2478 = vld [vmem:[#allocation14 + $0x18] sm:$0xff]
    %v2479 = vld [vmem:[#allocation14 + $0x20] sm:$0xff]
    %v2480 = vld [vmem:[#allocation14 + $0x28] sm:$0xff]
    %v2481 = vld [vmem:[#allocation14 + $0x30] sm:$0xff]
    %v2482 = vld [vmem:[#allocation14 + $0x38] sm:$0xff]
    %v2483 = vld [vmem:[#allocation14 + $0x40] sm:$0xff]
    %v2484 = vld [vmem:[#allocation14 + $0x48] sm:$0xff]
    %v2485 = vld [vmem:[#allocation14 + $0x50] sm:$0xff]
    %v2486 = vld [vmem:[#allocation14 + $0x58] sm:$0xff]
    %v2487 = vld [vmem:[#allocation14 + $0x60] sm:$0xff]
    %v2488 = vld [vmem:[#allocation14 + $0x68] sm:$0xff]
    %v2489 = vld [vmem:[#allocation14 + $0x70] sm:$0xff]
    %v2490 = vld [vmem:[#allocation14 + $0x78] sm:$0xff]
    %v2491 = vld [vmem:[%s6] sm:$0x1]
    %v2493 = vperm.slane %v2491, 0
    %2495 = vmatpush.msra.mxu0 %v2490
    %2496 = vmatpush.msra.mxu0 %v2489
    %2497 = vmatpush.msra.mxu0 %v2488
    %2498 = vmatpush.msra.mxu0 %v2487
    %2499 = vmatpush.msra.mxu0 %v2486
    %2500 = vmatpush.msra.mxu0 %v2485
    %2501 = vmatpush.msra.mxu0 %v2484
    %2502 = vmatpush.msra.mxu0 %v2483
    %2503 = vmatpush.msra.mxu0 %v2482
    %2504 = vmatpush.msra.mxu0 %v2481
    %2505 = vmatpush.msra.mxu0 %v2480
    %2506 = vmatpush.msra.mxu0 %v2479
    %2507 = vmatpush.msra.mxu0 %v2478
    %2508 = vmatpush.msra.mxu0 %v2477
    %2509 = vmatpush.msra.mxu0 %v2476
    %2510 = vmatpush.msra.mxu0 %v2475
    %2511 = vmatmul.f32.gmra.mxu0 %v2474
    %v2512 = vpop.f32.mrf.mxu0
    %v2513 = vadd.f32 %v2493, %v2512
    %2514 = vdwg.mxu0
    %v2515 = vld [vmem:[#allocation4] sm:$0xff]
    %v2516 = vld [vmem:[#allocation15] sm:$0xff]
    %v2517 = vld [vmem:[#allocation15 + $0x8] sm:$0xff]
    %v2518 = vld [vmem:[#allocation15 + $0x10] sm:$0xff]
    %v2519 = vld [vmem:[#allocation15 + $0x18] sm:$0xff]
    %v2520 = vld [vmem:[#allocation15 + $0x20] sm:$0xff]
    %v2521 = vld [vmem:[#allocation15 + $0x28] sm:$0xff]
    %v2522 = vld [vmem:[#allocation15 + $0x30] sm:$0xff]
    %v2523 = vld [vmem:[#allocation15 + $0x38] sm:$0xff]
    %v2524 = vld [vmem:[#allocation15 + $0x40] sm:$0xff]
    %v2525 = vld [vmem:[#allocation15 + $0x48] sm:$0xff]
    %v2526 = vld [vmem:[#allocation15 + $0x50] sm:$0xff]
    %v2527 = vld [vmem:[#allocation15 + $0x58] sm:$0xff]
    %v2528 = vld [vmem:[#allocation15 + $0x60] sm:$0xff]
    %v2529 = vld [vmem:[#allocation15 + $0x68] sm:$0xff]
    %v2530 = vld [vmem:[#allocation15 + $0x70] sm:$0xff]
    %v2531 = vld [vmem:[#allocation15 + $0x78] sm:$0xff]
    %v2532 = vld [vmem:[#allocation15 + $0x80] sm:$0xff]
    %v2533 = vld [vmem:[#allocation15 + $0x88] sm:$0xff]
    %v2534 = vld [vmem:[#allocation15 + $0x90] sm:$0xff]
    %v2535 = vld [vmem:[#allocation15 + $0x98] sm:$0xff]
    %v2536 = vld [vmem:[#allocation15 + $0xa0] sm:$0xff]
    %v2537 = vld [vmem:[#allocation15 + $0xa8] sm:$0xff]
    %v2538 = vld [vmem:[#allocation15 + $0xb0] sm:$0xff]
    %v2539 = vld [vmem:[#allocation15 + $0xb8] sm:$0xff]
    %v2540 = vld [vmem:[#allocation15 + $0xc0] sm:$0xff]
    %v2541 = vld [vmem:[#allocation15 + $0xc8] sm:$0xff]
    %v2542 = vld [vmem:[#allocation15 + $0xd0] sm:$0xff]
    %v2543 = vld [vmem:[#allocation15 + $0xd8] sm:$0xff]
    %v2544 = vld [vmem:[#allocation15 + $0xe0] sm:$0xff]
    %v2545 = vld [vmem:[#allocation15 + $0xe8] sm:$0xff]
    %v2546 = vld [vmem:[#allocation15 + $0xf0] sm:$0xff]
    %v2547 = vld [vmem:[#allocation15 + $0xf8] sm:$0xff]
    %v2548 = vld [vmem:[%s6 + $0x1] sm:$0x3]
    %v2550 = vperm.slane %v2548, 0
    %v2551 = vperm.slane %v2548, 1
    %2554 = vmatpush.msra.mxu0 %v2546
    %2555 = vmatpush.msra.mxu0 %v2544
    %2556 = vmatpush.msra.mxu0 %v2542
    %2557 = vmatpush.msra.mxu0 %v2540
    %2558 = vmatpush.msra.mxu0 %v2538
    %2559 = vmatpush.msra.mxu0 %v2536
    %2560 = vmatpush.msra.mxu0 %v2534
    %2561 = vmatpush.msra.mxu0 %v2532
    %2562 = vmatpush.msra.mxu0 %v2530
    %2563 = vmatpush.msra.mxu0 %v2528
    %2564 = vmatpush.msra.mxu0 %v2526
    %2565 = vmatpush.msra.mxu0 %v2524
    %2566 = vmatpush.msra.mxu0 %v2522
    %2567 = vmatpush.msra.mxu0 %v2520
    %2568 = vmatpush.msra.mxu0 %v2518
    %2569 = vmatpush.msra.mxu0 %v2516
    %2570 = vmatmul.f32.gmra.mxu0 %v2515
    %v2571 = vpop.f32.mrf.mxu0
    %v2572 = vadd.f32 %v2550, %v2571
    %2573 = vdwg.mxu0
    %2574 = vmatpush.msra.mxu0 %v2547
    %2575 = vmatpush.msra.mxu0 %v2545
    %2576 = vmatpush.msra.mxu0 %v2543
    %2577 = vmatpush.msra.mxu0 %v2541
    %2578 = vmatpush.msra.mxu0 %v2539
    %2579 = vmatpush.msra.mxu0 %v2537
    %2580 = vmatpush.msra.mxu0 %v2535
    %2581 = vmatpush.msra.mxu0 %v2533
    %2582 = vmatpush.msra.mxu0 %v2531
    %2583 = vmatpush.msra.mxu0 %v2529
    %2584 = vmatpush.msra.mxu0 %v2527
    %2585 = vmatpush.msra.mxu0 %v2525
    %2586 = vmatpush.msra.mxu0 %v2523
    %2587 = vmatpush.msra.mxu0 %v2521
    %2588 = vmatpush.msra.mxu0 %v2519
    %2589 = vmatpush.msra.mxu0 %v2517
    %2590 = vmatmul.f32.gmra.mxu0 %v2515
    %v2591 = vpop.f32.mrf.mxu0
    %v2592 = vadd.f32 %v2551, %v2591
    %2593 = vdwg.mxu0
    %v2594 = vmul.f32 %v2513, 0.5
    %v2595 = vtanh.pop %v2594
    %v2596 = vmul.f32 %v2595, 0.5
    %v2597 = vadd.f32 %v2596, 0.5
    %2598 = vst [vmem:[%s7] sm:$0xff] %v2597
    %2599 = vst [vmem:[%s7 + $0x8] sm:$0xff] %v2572
    %2600 = vst [vmem:[%s7 + $0x10] sm:$0xff] %v2592
    // Predicated region
    $region50: #{decoder_forward.1} parent=1 // pred_check
      _
    $region51: #{decoder_forward.1} parent=1 // pred_check_branch
      %2602 = sbr.rel (0) target = $region53
    $region52: #{decoder_forward.1} parent=1 // pred_region
      _
    $region53: #{decoder_forward.1} parent=1 // pred_fallthru
      _
    // Predicated region
    $region54: #{decoder_forward.1} parent=1 // pred_check
      _
    $region55: #{decoder_forward.1} parent=1 // pred_check_branch
      %2604 = sbr.rel (0) target = $region57
    $region56: #{decoder_forward.1} parent=1 // pred_region
      _
    $region57: #{decoder_forward.1} parent=1 // pred_fallthru
      _
    %2605 = vsyncpa [#allocation11], 1
    %2606 = vsyncpa [#allocation13], 1
    %2607 = vsyncpa [#allocation16], 1

</llo_original>
